<compile_context>
chip_gen: v7x
topology: tpu7x:2x2x1
jax: 0.10.0
libtpu: 0.0.40
codegen_flags: <defaults>
</compile_context>

<pallas_src>
import jax
import jax.numpy as jnp
import numpy as np
from jax.experimental import pallas as pl
from jax.experimental.pallas import tpu as pltpu

_LANE = 128
_SUBLANE = 8


def _round_up(n, m):
    return ((n + m - 1) // m) * m


def _make_kernel(H, W, W_p, has_skip_conv):
    """Fused conv1(3x3)+ReLU -> conv2(3x3) -> +skip -> ReLU for one batch image."""
    M = H * W_p  # flattened spatial rows (row-major y*W_p + x)

    def kernel(*refs):
        if has_skip_conv:
            (x_ref, w1_ref, b1_ref, w2_ref, b2_ref,
             wskip_ref, bskip_ref, out_ref, xcat_ref, h1cat_ref) = refs
        else:
            (x_ref, w1_ref, b1_ref, w2_ref, b2_ref,
             out_ref, xcat_ref, h1cat_ref) = refs
            wskip_ref = bskip_ref = None

        Cin_p = x_ref.shape[-1]
        Cout_p = out_ref.shape[-1]

        # Column-in-row index (0..W_p-1) for boundary masks, broadcast over lanes.
        col = jax.lax.broadcasted_iota(jnp.int32, (M, 1), 0) % W_p
        not_first = col != 0
        not_last = col != (W_p - 1)

        def build_shifted_taps(dst_ref, v32, C):
            """dst ((H+2)*W_p, 3C) <- [S(kx=0) | S(kx=1) | S(kx=2)] + zero halo rows.

            S(kx)[row (y, x)] = input[y-1, x+kx-1] (zero outside the image), so the
            3x3 conv becomes 3 K-fused matmuls over row-slices of dst.  W-shifts go
            through pltpu.roll (XLU) + a column mask (VPU select); all stores are
            lane/sublane aligned (row offsets are multiples of W_p, W_p % 8 == 0,
            channel offsets are multiples of 128).  Only the two halo rows are
            cleared, every step (megacore-safe; interior fully overwritten below).
            """
            dst_ref[0:W_p, :] = jnp.zeros((W_p, 3 * C), dst_ref.dtype)
            dst_ref[(H + 1) * W_p:(H + 2) * W_p, :] = jnp.zeros((W_p, 3 * C),
                                                                dst_ref.dtype)
            s0 = jnp.where(not_first, pltpu.roll(v32, 1, 0), 0.0)      # (y-1, x-1)
            s2 = jnp.where(not_last, pltpu.roll(v32, M - 1, 0), 0.0)   # (y-1, x+1)
            dst_ref[W_p:W_p + M, 0:C] = s0.astype(dst_ref.dtype)
            dst_ref[W_p:W_p + M, C:2 * C] = v32.astype(dst_ref.dtype)
            dst_ref[W_p:W_p + M, 2 * C:3 * C] = s2.astype(dst_ref.dtype)

        def conv3x3(src_ref, w_ref, bias):
            # 3 matmuls, K = 3*C_p each; every row slice starts at a multiple of W_p.
            acc = jnp.zeros((M, w_ref.shape[-1]), jnp.float32)
            for ky in range(3):
                acc = acc + jnp.dot(src_ref[ky * W_p:ky * W_p + M, :], w_ref[ky],
                                    preferred_element_type=jnp.float32)
            return acc + bias

        # ---- conv1: 3x3 "same", bias, ReLU -----------------------------------
        x32 = x_ref[0].reshape(M, Cin_p)                 # f32; aligned reshape
        build_shifted_taps(xcat_ref, x32, Cin_p)
        h1 = jnp.maximum(conv3x3(xcat_ref, w1_ref, b1_ref[...]), 0.0)
        if W_p != W:
            # Zero the W-padding columns so conv2's "same" padding sees zeros there.
            h1 = jnp.where(col < W, h1, 0.0)

        # ---- conv2: 3x3 "same", bias ------------------------------------------
        # TODO(synk): h1 is quantized to the MXU dtype (bf16) here; exact-f32 h1
        # would need an f32 scratch (2x VMEM) and f32 MXU passes.
        build_shifted_taps(h1cat_ref, h1, Cout_p)
        acc2 = conv3x3(h1cat_ref, w2_ref, b2_ref[...])

        # ---- skip path + residual add + ReLU ----------------------------------
        if has_skip_conv:
            xc = xcat_ref[W_p:W_p + M, Cin_p:2 * Cin_p]  # reuse stored center slab
            acc2 = acc2 + (jnp.dot(xc, wskip_ref[...],
                                   preferred_element_type=jnp.float32)
                           + bskip_ref[...])
        else:
            acc2 = acc2 + x32                            # exact f32 identity skip

        out_ref[0] = jnp.maximum(acc2, 0.0).reshape(H, W_p, Cout_p).astype(
            out_ref.dtype)

    return kernel


def residual_block(x_nchw, params, *, mxu_dtype=jnp.bfloat16, out_layout="NCHW"):
    """Forward pass of ResidualBlock.

    x_nchw: (N, Cin, H, W) float32.
    params: (w1, b1, w2, b2, wskip, bskip); wskip/bskip are None when Cin == Cout.
    out_layout: "NCHW" (PyTorch parity) or "NHWC_PADDED" (no epilogue HBM copy,
                for chaining blocks that consume the padded NHWC layout directly).
    """
    w1, b1, w2, b2, wskip, bskip = params
    has_skip_conv = wskip is not None

    x = jnp.transpose(x_nchw, (0, 2, 3, 1)).astype(jnp.float32)   # NCHW -> NHWC
    N, H, W, Cin = x.shape
    Cout = w1.shape[-1]
    Cin_p = _round_up(Cin, _LANE)
    Cout_p = _round_up(Cout, _LANE)
    W_p = _round_up(W, _SUBLANE)

    # Lane-dense channel pad + sublane-friendly W pad (zeros).  No spatial halo
    # pad: the row halo lives as two zero rows in the in-kernel scratch and the
    # column halo comes from in-kernel shifts, so x is read from HBM exactly once,
    # in f32 (exact identity-skip add).
    x_p = jnp.pad(x, ((0, 0), (0, 0), (0, W_p - W), (0, Cin_p - Cin)))

    # Weights: pad channels, cast to the MXU dtype, and concatenate the 3 kx taps
    # along the contraction dim -> (3, 3*C_p, Cout_p) so each conv is 3 K-fused
    # matmuls (K = 3*C_p) instead of 9 (K = C_p).
    w1cat = jnp.pad(w1, ((0, 0), (0, 0), (0, Cin_p - Cin), (0, Cout_p - Cout))
                    ).astype(mxu_dtype).reshape(3, 3 * Cin_p, Cout_p)
    w2cat = jnp.pad(w2, ((0, 0), (0, 0), (0, Cout_p - Cout), (0, Cout_p - Cout))
                    ).astype(mxu_dtype).reshape(3, 3 * Cout_p, Cout_p)
    b1p = jnp.pad(b1, (0, Cout_p - Cout)).reshape(1, Cout_p).astype(jnp.float32)
    b2p = jnp.pad(b2, (0, Cout_p - Cout)).reshape(1, Cout_p).astype(jnp.float32)

    inputs = [x_p, w1cat, b1p, w2cat, b2p]
    in_specs = [
        pl.BlockSpec((1, H, W_p, Cin_p), lambda n: (n, 0, 0, 0)),
        # Grid-invariant index_maps: weights/biases are fetched once, not per step.
        pl.BlockSpec((3, 3 * Cin_p, Cout_p), lambda n: (0, 0, 0)),
        pl.BlockSpec((1, Cout_p), lambda n: (0, 0)),
        pl.BlockSpec((3, 3 * Cout_p, Cout_p), lambda n: (0, 0, 0)),
        pl.BlockSpec((1, Cout_p), lambda n: (0, 0)),
    ]
    if has_skip_conv:
        wskip_p = jnp.pad(wskip, ((0, Cin_p - Cin),
                                  (0, Cout_p - Cout))).astype(mxu_dtype)
        bskip_p = jnp.pad(bskip, (0, Cout_p - Cout)).reshape(1, Cout_p).astype(
            jnp.float32)
        inputs += [wskip_p, bskip_p]
        in_specs += [
            pl.BlockSpec((Cin_p, Cout_p), lambda n: (0, 0)),
            pl.BlockSpec((1, Cout_p), lambda n: (0, 0)),
        ]

    out = pl.pallas_call(
        _make_kernel(H, W, W_p, has_skip_conv),
        out_shape=jax.ShapeDtypeStruct((N, H, W_p, Cout_p), jnp.float32),
        grid=(N,),
        in_specs=in_specs,
        out_specs=pl.BlockSpec((1, H, W_p, Cout_p), lambda n: (n, 0, 0, 0)),
        scratch_shapes=[
            pltpu.VMEM(((H + 2) * W_p, 3 * Cin_p), mxu_dtype),   # shifted x taps
            pltpu.VMEM(((H + 2) * W_p, 3 * Cout_p), mxu_dtype),  # shifted h1 taps
        ],
        compiler_params=pltpu.CompilerParams(
            dimension_semantics=("parallel",),
            vmem_limit_bytes=64 * 1024 * 1024),
    )(*inputs)

    if out_layout == "NHWC_PADDED":
        return out
    # Single fused slice + transpose copy back to the PyTorch NCHW layout.
    return jnp.transpose(out[:, :, :W, :Cout], (0, 3, 1, 2))


def _reference(x_nchw, params):
    """Pure-JAX f32 reference (mirrors the PyTorch forward)."""
    w1, b1, w2, b2, wskip, bskip = params
    x = jnp.transpose(x_nchw, (0, 2, 3, 1))
    dn = ('NHWC', 'HWIO', 'NHWC')

    def conv(a, w, b):
        return jax.lax.conv_general_dilated(
            a, w, (1, 1), 'SAME', dimension_numbers=dn,
            precision=jax.lax.Precision.HIGHEST) + b

    h1 = jax.nn.relu(conv(x, w1, b1))
    out = conv(h1, w2, b2)
    skip = conv(x, wskip.reshape(1, 1, *wskip.shape), bskip) if wskip is not None else x
    y = jax.nn.relu(out + skip)
    return jnp.transpose(y, (0, 3, 1, 2))


def _make_params(key, Cin, Cout):
    k1, k2, k3, k4, k5, k6 = jax.random.split(key, 6)
    w1 = 0.1 * jax.random.normal(k1, (3, 3, Cin, Cout), jnp.float32)
    b1 = 0.1 * jax.random.normal(k2, (Cout,), jnp.float32)
    w2 = 0.1 * jax.random.normal(k3, (3, 3, Cout, Cout), jnp.float32)
    b2 = 0.1 * jax.random.normal(k4, (Cout,), jnp.float32)
    if Cin != Cout:
        wskip = 0.1 * jax.random.normal(k5, (Cin, Cout), jnp.float32)
        bskip = 0.1 * jax.random.normal(k6, (Cout,), jnp.float32)
    else:
        wskip = bskip = None   # identity skip (nn.Sequential())
    return (w1, b1, w2, b2, wskip, bskip)


def _check(key, N, Cin, Cout, H, W, rtol, atol):
    kp, kx = jax.random.split(key)
    params = _make_params(kp, Cin, Cout)
    x = jax.random.normal(kx, (N, Cin, H, W), jnp.float32)
    y = jax.block_until_ready(residual_block(x, params))
    assert y.shape == (N, Cout, H, W) and y.dtype == jnp.float32
    y_ref = jax.block_until_ready(_reference(x, params))
    np.testing.assert_allclose(np.asarray(y), np.asarray(y_ref),
                               rtol=rtol, atol=atol)


if __name__ == "__main__":
    key = jax.random.PRNGKey(0)
    # bf16 MXU operands (f32 accumulate) vs f32 reference -> bf16-scale tolerance.
    RTOL = ATOL = 3e-2

    k1, k2, k3 = jax.random.split(key, 3)
    # case 1: Cin != Cout (1x1-conv skip path)
    _check(k1, N=2, Cin=4, Cout=8, H=16, W=16, rtol=RTOL, atol=ATOL)
    # case 2: Cin == Cout (exact f32 identity skip)
    _check(k2, N=2, Cin=8, Cout=8, H=16, W=16, rtol=RTOL, atol=ATOL)
    # case 3: W not a multiple of 8 (exercises the W-padding / column-mask path)
    _check(k3, N=1, Cin=3, Cout=8, H=9, W=12, rtol=RTOL, atol=ATOL)

    print("KERNEL_OK")
</pallas_src>

<mosaic_0001>
module attributes {stable_mosaic.version = 11 : i64} {
  func.func @kernel(%arg0: i32, %arg1: memref<1x16x16x128xf32, #tpu.memory_space<vmem>>, %arg2: memref<3x384x128xbf16, #tpu.memory_space<vmem>>, %arg3: memref<1x128xf32, #tpu.memory_space<vmem>>, %arg4: memref<3x384x128xbf16, #tpu.memory_space<vmem>>, %arg5: memref<1x128xf32, #tpu.memory_space<vmem>>, %arg6: memref<128x128xbf16, #tpu.memory_space<vmem>>, %arg7: memref<1x128xf32, #tpu.memory_space<vmem>>, %arg8: memref<1x16x16x128xf32, #tpu.memory_space<vmem>>, %arg9: memref<288x384xbf16, #tpu.memory_space<vmem>>, %arg10: memref<288x384xbf16, #tpu.memory_space<vmem>>) attributes {dimension_semantics = [#tpu.dimension_semantics<parallel>], iteration_bounds = array<i64: 2>, scalar_prefetch = 0 : i64, scratch_operands = 2 : i64, tpu.core_type = #tpu.core_type<tc>, window_params = [{transform_indices = @transform_0, window_bounds = array<i64: 1, 16, 16, 128>}, {pipeline_mode = #tpu.pipeline_mode<synchronous>, transform_indices = @transform_1, window_bounds = array<i64: 3, 384, 128>}, {pipeline_mode = #tpu.pipeline_mode<synchronous>, transform_indices = @transform_2, window_bounds = array<i64: 1, 128>}, {pipeline_mode = #tpu.pipeline_mode<synchronous>, transform_indices = @transform_3, window_bounds = array<i64: 3, 384, 128>}, {pipeline_mode = #tpu.pipeline_mode<synchronous>, transform_indices = @transform_4, window_bounds = array<i64: 1, 128>}, {pipeline_mode = #tpu.pipeline_mode<synchronous>, transform_indices = @transform_5, window_bounds = array<i64: 128, 128>}, {pipeline_mode = #tpu.pipeline_mode<synchronous>, transform_indices = @transform_6, window_bounds = array<i64: 1, 128>}, {transform_indices = @transform_7, window_bounds = array<i64: 1, 16, 16, 128>}]} {
    %0 = tpu.iota {dimensions = array<i32: 0>} : vector<256x1xi32>
    %c16_i32 = arith.constant 16 : i32
    %c0_i32 = arith.constant 0 : i32
    %1 = arith.cmpi eq, %c16_i32, %c0_i32 : i32
    %c1_i32 = arith.constant 1 : i32
    %2 = arith.select %1, %c1_i32, %c16_i32 : i32
    %3 = vector.broadcast %2 : i32 to vector<256x1xi32>
    %4 = arith.remsi %0, %3 : vector<256x1xi32>
    %c0_i32_0 = arith.constant 0 : i32
    %5 = vector.broadcast %c0_i32_0 : i32 to vector<256x1xi32>
    %6 = arith.cmpi ne, %4, %5 : vector<256x1xi32>
    %c0_i32_1 = arith.constant 0 : i32
    %7 = vector.broadcast %c0_i32_1 : i32 to vector<256x1xi32>
    %8 = arith.cmpi slt, %4, %7 : vector<256x1xi32>
    %c0_i32_2 = arith.constant 0 : i32
    %9 = arith.cmpi slt, %2, %c0_i32_2 : i32
    %10 = vector.broadcast %9 : i1 to vector<256x1xi1>
    %11 = vector.broadcast %10 : vector<256x1xi1> to vector<256x1xi1>
    %12 = arith.xori %8, %11 : vector<256x1xi1>
    %13 = arith.andi %12, %6 : vector<256x1xi1>
    %14 = vector.broadcast %2 : i32 to vector<256x1xi32>
    %15 = arith.addi %4, %14 : vector<256x1xi32>
    %16 = arith.select %13, %15, %4 : vector<256x1xi1>, vector<256x1xi32>
    %c0_i32_3 = arith.constant 0 : i32
    %17 = vector.broadcast %c0_i32_3 : i32 to vector<256x1xi32>
    %18 = arith.cmpi ne, %16, %17 : vector<256x1xi32>
    %c15_i32 = arith.constant 15 : i32
    %19 = vector.broadcast %c15_i32 : i32 to vector<256x1xi32>
    %20 = arith.cmpi ne, %16, %19 : vector<256x1xi32>
    %c0 = arith.constant 0 : index
    %c0_4 = arith.constant 0 : index
    %c0_5 = arith.constant 0 : index
    %c0_6 = arith.constant 0 : index
    %21 = vector.load %arg1[%c0, %c0_4, %c0_5, %c0_6] : memref<1x16x16x128xf32, #tpu.memory_space<vmem>>, vector<1x16x16x128xf32>
    %22 = vector.shape_cast %21 : vector<1x16x16x128xf32> to vector<16x16x128xf32>
    %23 = vector.shape_cast %22 : vector<16x16x128xf32> to vector<256x128xf32>
    %cst = arith.constant 0.000000e+00 : bf16
    %24 = vector.broadcast %cst : bf16 to vector<16x384xbf16>
    %c0_7 = arith.constant 0 : index
    %c0_8 = arith.constant 0 : index
    %25 = vector.load %arg9[%c0_7, %c0_8] : memref<288x384xbf16, #tpu.memory_space<vmem>>, vector<16x384xbf16>
    tpu.vector_store %arg9[%c0_7, %c0_8], %24 {strides = array<i32>} : memref<288x384xbf16, #tpu.memory_space<vmem>>, vector<16x384xbf16>,
    %cst_9 = arith.constant 0.000000e+00 : bf16
    %26 = vector.broadcast %cst_9 : bf16 to vector<16x384xbf16>
    %c272 = arith.constant 272 : index
    %c0_10 = arith.constant 0 : index
    %27 = vector.load %arg9[%c272, %c0_10] : memref<288x384xbf16, #tpu.memory_space<vmem>>, vector<16x384xbf16>
    tpu.vector_store %arg9[%c272, %c0_10], %26 {strides = array<i32>} : memref<288x384xbf16, #tpu.memory_space<vmem>>, vector<16x384xbf16>,
    %c1_i32_11 = arith.constant 1 : i32
    %28 = tpu.dynamic_rotate %23 by %c1_i32_11 dim 0 : vector<256x128xf32>, i32 -> vector<256x128xf32>
    %cst_12 = arith.constant 0.000000e+00 : f32
    %29 = vector.shape_cast %18 : vector<256x1xi1> to vector<256x1xi1>
    %30 = vector.broadcast %29 : vector<256x1xi1> to vector<256x128xi1>
    %31 = vector.broadcast %cst_12 : f32 to vector<256x128xf32>
    %32 = arith.select %30, %28, %31 : vector<256x128xi1>, vector<256x128xf32>
    %c255_i32 = arith.constant 255 : i32
    %33 = tpu.dynamic_rotate %23 by %c255_i32 dim 0 : vector<256x128xf32>, i32 -> vector<256x128xf32>
    %cst_13 = arith.constant 0.000000e+00 : f32
    %34 = vector.shape_cast %20 : vector<256x1xi1> to vector<256x1xi1>
    %35 = vector.broadcast %34 : vector<256x1xi1> to vector<256x128xi1>
    %36 = vector.broadcast %cst_13 : f32 to vector<256x128xf32>
    %37 = arith.select %35, %33, %36 : vector<256x128xi1>, vector<256x128xf32>
    %38 = arith.truncf %32 : vector<256x128xf32> to vector<256x128xbf16>
    %c16 = arith.constant 16 : index
    %c0_14 = arith.constant 0 : index
    %39 = vector.load %arg9[%c16, %c0_14] : memref<288x384xbf16, #tpu.memory_space<vmem>>, vector<256x128xbf16>
    tpu.vector_store %arg9[%c16, %c0_14], %38 {strides = array<i32>} : memref<288x384xbf16, #tpu.memory_space<vmem>>, vector<256x128xbf16>,
    %40 = arith.truncf %23 : vector<256x128xf32> to vector<256x128xbf16>
    %c16_15 = arith.constant 16 : index
    %c128 = arith.constant 128 : index
    %41 = vector.load %arg9[%c16_15, %c128] : memref<288x384xbf16, #tpu.memory_space<vmem>>, vector<256x128xbf16>
    tpu.vector_store %arg9[%c16_15, %c128], %40 {strides = array<i32>} : memref<288x384xbf16, #tpu.memory_space<vmem>>, vector<256x128xbf16>,
    %42 = arith.truncf %37 : vector<256x128xf32> to vector<256x128xbf16>
    %c16_16 = arith.constant 16 : index
    %c256 = arith.constant 256 : index
    %43 = vector.load %arg9[%c16_16, %c256] : memref<288x384xbf16, #tpu.memory_space<vmem>>, vector<256x128xbf16>
    tpu.vector_store %arg9[%c16_16, %c256], %42 {strides = array<i32>} : memref<288x384xbf16, #tpu.memory_space<vmem>>, vector<256x128xbf16>,
    %c0_17 = arith.constant 0 : index
    %c0_18 = arith.constant 0 : index
    %44 = vector.load %arg3[%c0_17, %c0_18] : memref<1x128xf32, #tpu.memory_space<vmem>>, vector<1x128xf32>
    %cst_19 = arith.constant 0.000000e+00 : f32
    %45 = vector.broadcast %cst_19 : f32 to vector<256x128xf32>
    %c0_20 = arith.constant 0 : index
    %c0_21 = arith.constant 0 : index
    %46 = vector.load %arg9[%c0_20, %c0_21] : memref<288x384xbf16, #tpu.memory_space<vmem>>, vector<256x384xbf16>
    %c0_22 = arith.constant 0 : index
    %c0_23 = arith.constant 0 : index
    %c0_24 = arith.constant 0 : index
    %47 = vector.load %arg2[%c0_22, %c0_23, %c0_24] : memref<3x384x128xbf16, #tpu.memory_space<vmem>>, vector<1x384x128xbf16>
    %48 = vector.shape_cast %47 : vector<1x384x128xbf16> to vector<384x128xbf16>
    %cst_25 = arith.constant dense<0.000000e+00> : vector<256x128xf32>
    %49 = tpu.matmul %46, %48, %cst_25 {dimension_numbers = #tpu.dot_dimension_numbers<[1], [0], [0], [1], [0, 0, 1, 1], [], []>} : vector<256x384xbf16>, vector<384x128xbf16>, vector<256x128xf32> -> vector<256x128xf32>
    %50 = arith.addf %45, %49 : vector<256x128xf32>
    %c16_26 = arith.constant 16 : index
    %c0_27 = arith.constant 0 : index
    %51 = vector.load %arg9[%c16_26, %c0_27] : memref<288x384xbf16, #tpu.memory_space<vmem>>, vector<256x384xbf16>
    %c1 = arith.constant 1 : index
    %c0_28 = arith.constant 0 : index
    %c0_29 = arith.constant 0 : index
    %52 = vector.load %arg2[%c1, %c0_28, %c0_29] : memref<3x384x128xbf16, #tpu.memory_space<vmem>>, vector<1x384x128xbf16>
    %53 = vector.shape_cast %52 : vector<1x384x128xbf16> to vector<384x128xbf16>
    %cst_30 = arith.constant dense<0.000000e+00> : vector<256x128xf32>
    %54 = tpu.matmul %51, %53, %cst_30 {dimension_numbers = #tpu.dot_dimension_numbers<[1], [0], [0], [1], [0, 0, 1, 1], [], []>} : vector<256x384xbf16>, vector<384x128xbf16>, vector<256x128xf32> -> vector<256x128xf32>
    %55 = arith.addf %50, %54 : vector<256x128xf32>
    %c32 = arith.constant 32 : index
    %c0_31 = arith.constant 0 : index
    %56 = vector.load %arg9[%c32, %c0_31] : memref<288x384xbf16, #tpu.memory_space<vmem>>, vector<256x384xbf16>
    %c2 = arith.constant 2 : index
    %c0_32 = arith.constant 0 : index
    %c0_33 = arith.constant 0 : index
    %57 = vector.load %arg2[%c2, %c0_32, %c0_33] : memref<3x384x128xbf16, #tpu.memory_space<vmem>>, vector<1x384x128xbf16>
    %58 = vector.shape_cast %57 : vector<1x384x128xbf16> to vector<384x128xbf16>
    %cst_34 = arith.constant dense<0.000000e+00> : vector<256x128xf32>
    %59 = tpu.matmul %56, %58, %cst_34 {dimension_numbers = #tpu.dot_dimension_numbers<[1], [0], [0], [1], [0, 0, 1, 1], [], []>} : vector<256x384xbf16>, vector<384x128xbf16>, vector<256x128xf32> -> vector<256x128xf32>
    %60 = arith.addf %55, %59 : vector<256x128xf32>
    %61 = vector.broadcast %44 : vector<1x128xf32> to vector<256x128xf32>
    %62 = arith.addf %60, %61 : vector<256x128xf32>
    %cst_35 = arith.constant 0.000000e+00 : f32
    %63 = vector.broadcast %cst_35 : f32 to vector<256x128xf32>
    %64 = arith.maximumf %62, %63 : vector<256x128xf32>
    %cst_36 = arith.constant 0.000000e+00 : bf16
    %65 = vector.broadcast %cst_36 : bf16 to vector<16x384xbf16>
    %c0_37 = arith.constant 0 : index
    %c0_38 = arith.constant 0 : index
    %66 = vector.load %arg10[%c0_37, %c0_38] : memref<288x384xbf16, #tpu.memory_space<vmem>>, vector<16x384xbf16>
    tpu.vector_store %arg10[%c0_37, %c0_38], %65 {strides = array<i32>} : memref<288x384xbf16, #tpu.memory_space<vmem>>, vector<16x384xbf16>,
    %cst_39 = arith.constant 0.000000e+00 : bf16
    %67 = vector.broadcast %cst_39 : bf16 to vector<16x384xbf16>
    %c272_40 = arith.constant 272 : index
    %c0_41 = arith.constant 0 : index
    %68 = vector.load %arg10[%c272_40, %c0_41] : memref<288x384xbf16, #tpu.memory_space<vmem>>, vector<16x384xbf16>
    tpu.vector_store %arg10[%c272_40, %c0_41], %67 {strides = array<i32>} : memref<288x384xbf16, #tpu.memory_space<vmem>>, vector<16x384xbf16>,
    %c1_i32_42 = arith.constant 1 : i32
    %69 = tpu.dynamic_rotate %64 by %c1_i32_42 dim 0 : vector<256x128xf32>, i32 -> vector<256x128xf32>
    %cst_43 = arith.constant 0.000000e+00 : f32
    %70 = vector.shape_cast %18 : vector<256x1xi1> to vector<256x1xi1>
    %71 = vector.broadcast %70 : vector<256x1xi1> to vector<256x128xi1>
    %72 = vector.broadcast %cst_43 : f32 to vector<256x128xf32>
    %73 = arith.select %71, %69, %72 : vector<256x128xi1>, vector<256x128xf32>
    %c255_i32_44 = arith.constant 255 : i32
    %74 = tpu.dynamic_rotate %64 by %c255_i32_44 dim 0 : vector<256x128xf32>, i32 -> vector<256x128xf32>
    %cst_45 = arith.constant 0.000000e+00 : f32
    %75 = vector.shape_cast %20 : vector<256x1xi1> to vector<256x1xi1>
    %76 = vector.broadcast %75 : vector<256x1xi1> to vector<256x128xi1>
    %77 = vector.broadcast %cst_45 : f32 to vector<256x128xf32>
    %78 = arith.select %76, %74, %77 : vector<256x128xi1>, vector<256x128xf32>
    %79 = arith.truncf %73 : vector<256x128xf32> to vector<256x128xbf16>
    %c16_46 = arith.constant 16 : index
    %c0_47 = arith.constant 0 : index
    %80 = vector.load %arg10[%c16_46, %c0_47] : memref<288x384xbf16, #tpu.memory_space<vmem>>, vector<256x128xbf16>
    tpu.vector_store %arg10[%c16_46, %c0_47], %79 {strides = array<i32>} : memref<288x384xbf16, #tpu.memory_space<vmem>>, vector<256x128xbf16>,
    %81 = arith.truncf %64 : vector<256x128xf32> to vector<256x128xbf16>
    %c16_48 = arith.constant 16 : index
    %c128_49 = arith.constant 128 : index
    %82 = vector.load %arg10[%c16_48, %c128_49] : memref<288x384xbf16, #tpu.memory_space<vmem>>, vector<256x128xbf16>
    tpu.vector_store %arg10[%c16_48, %c128_49], %81 {strides = array<i32>} : memref<288x384xbf16, #tpu.memory_space<vmem>>, vector<256x128xbf16>,
    %83 = arith.truncf %78 : vector<256x128xf32> to vector<256x128xbf16>
    %c16_50 = arith.constant 16 : index
    %c256_51 = arith.constant 256 : index
    %84 = vector.load %arg10[%c16_50, %c256_51] : memref<288x384xbf16, #tpu.memory_space<vmem>>, vector<256x128xbf16>
    tpu.vector_store %arg10[%c16_50, %c256_51], %83 {strides = array<i32>} : memref<288x384xbf16, #tpu.memory_space<vmem>>, vector<256x128xbf16>,
    %c0_52 = arith.constant 0 : index
    %c0_53 = arith.constant 0 : index
    %85 = vector.load %arg5[%c0_52, %c0_53] : memref<1x128xf32, #tpu.memory_space<vmem>>, vector<1x128xf32>
    %cst_54 = arith.constant 0.000000e+00 : f32
    %86 = vector.broadcast %cst_54 : f32 to vector<256x128xf32>
    %c0_55 = arith.constant 0 : index
    %c0_56 = arith.constant 0 : index
    %87 = vector.load %arg10[%c0_55, %c0_56] : memref<288x384xbf16, #tpu.memory_space<vmem>>, vector<256x384xbf16>
    %c0_57 = arith.constant 0 : index
    %c0_58 = arith.constant 0 : index
    %c0_59 = arith.constant 0 : index
    %88 = vector.load %arg4[%c0_57, %c0_58, %c0_59] : memref<3x384x128xbf16, #tpu.memory_space<vmem>>, vector<1x384x128xbf16>
    %89 = vector.shape_cast %88 : vector<1x384x128xbf16> to vector<384x128xbf16>
    %cst_60 = arith.constant dense<0.000000e+00> : vector<256x128xf32>
    %90 = tpu.matmul %87, %89, %cst_60 {dimension_numbers = #tpu.dot_dimension_numbers<[1], [0], [0], [1], [0, 0, 1, 1], [], []>} : vector<256x384xbf16>, vector<384x128xbf16>, vector<256x128xf32> -> vector<256x128xf32>
    %91 = arith.addf %86, %90 : vector<256x128xf32>
    %c16_61 = arith.constant 16 : index
    %c0_62 = arith.constant 0 : index
    %92 = vector.load %arg10[%c16_61, %c0_62] : memref<288x384xbf16, #tpu.memory_space<vmem>>, vector<256x384xbf16>
    %c1_63 = arith.constant 1 : index
    %c0_64 = arith.constant 0 : index
    %c0_65 = arith.constant 0 : index
    %93 = vector.load %arg4[%c1_63, %c0_64, %c0_65] : memref<3x384x128xbf16, #tpu.memory_space<vmem>>, vector<1x384x128xbf16>
    %94 = vector.shape_cast %93 : vector<1x384x128xbf16> to vector<384x128xbf16>
    %cst_66 = arith.constant dense<0.000000e+00> : vector<256x128xf32>
    %95 = tpu.matmul %92, %94, %cst_66 {dimension_numbers = #tpu.dot_dimension_numbers<[1], [0], [0], [1], [0, 0, 1, 1], [], []>} : vector<256x384xbf16>, vector<384x128xbf16>, vector<256x128xf32> -> vector<256x128xf32>
    %96 = arith.addf %91, %95 : vector<256x128xf32>
    %c32_67 = arith.constant 32 : index
    %c0_68 = arith.constant 0 : index
    %97 = vector.load %arg10[%c32_67, %c0_68] : memref<288x384xbf16, #tpu.memory_space<vmem>>, vector<256x384xbf16>
    %c2_69 = arith.constant 2 : index
    %c0_70 = arith.constant 0 : index
    %c0_71 = arith.constant 0 : index
    %98 = vector.load %arg4[%c2_69, %c0_70, %c0_71] : memref<3x384x128xbf16, #tpu.memory_space<vmem>>, vector<1x384x128xbf16>
    %99 = vector.shape_cast %98 : vector<1x384x128xbf16> to vector<384x128xbf16>
    %cst_72 = arith.constant dense<0.000000e+00> : vector<256x128xf32>
    %100 = tpu.matmul %97, %99, %cst_72 {dimension_numbers = #tpu.dot_dimension_numbers<[1], [0], [0], [1], [0, 0, 1, 1], [], []>} : vector<256x384xbf16>, vector<384x128xbf16>, vector<256x128xf32> -> vector<256x128xf32>
    %101 = arith.addf %96, %100 : vector<256x128xf32>
    %102 = vector.broadcast %85 : vector<1x128xf32> to vector<256x128xf32>
    %103 = arith.addf %101, %102 : vector<256x128xf32>
    %c16_73 = arith.constant 16 : index
    %c128_74 = arith.constant 128 : index
    %104 = vector.load %arg9[%c16_73, %c128_74] : memref<288x384xbf16, #tpu.memory_space<vmem>>, vector<256x128xbf16>
    %c0_75 = arith.constant 0 : index
    %c0_76 = arith.constant 0 : index
    %105 = vector.load %arg6[%c0_75, %c0_76] : memref<128x128xbf16, #tpu.memory_space<vmem>>, vector<128x128xbf16>
    %cst_77 = arith.constant dense<0.000000e+00> : vector<256x128xf32>
    %106 = tpu.matmul %104, %105, %cst_77 {dimension_numbers = #tpu.dot_dimension_numbers<[1], [0], [0], [1], [0, 0, 1, 1], [], []>} : vector<256x128xbf16>, vector<128x128xbf16>, vector<256x128xf32> -> vector<256x128xf32>
    %c0_78 = arith.constant 0 : index
    %c0_79 = arith.constant 0 : index
    %107 = vector.load %arg7[%c0_78, %c0_79] : memref<1x128xf32, #tpu.memory_space<vmem>>, vector<1x128xf32>
    %108 = vector.broadcast %107 : vector<1x128xf32> to vector<256x128xf32>
    %109 = arith.addf %106, %108 : vector<256x128xf32>
    %110 = arith.addf %103, %109 : vector<256x128xf32>
    %cst_80 = arith.constant 0.000000e+00 : f32
    %111 = vector.broadcast %cst_80 : f32 to vector<256x128xf32>
    %112 = arith.maximumf %110, %111 : vector<256x128xf32>
    %113 = vector.shape_cast %112 : vector<256x128xf32> to vector<16x16x128xf32>
    %c0_81 = arith.constant 0 : index
    %c0_82 = arith.constant 0 : index
    %c0_83 = arith.constant 0 : index
    %c0_84 = arith.constant 0 : index
    %114 = vector.load %arg8[%c0_81, %c0_82, %c0_83, %c0_84] : memref<1x16x16x128xf32, #tpu.memory_space<vmem>>, vector<1x16x16x128xf32>
    %115 = vector.shape_cast %114 : vector<1x16x16x128xf32> to vector<16x16x128xf32>
    %116 = vector.shape_cast %113 : vector<16x16x128xf32> to vector<1x16x16x128xf32>
    tpu.vector_store %arg8[%c0_81, %c0_82, %c0_83, %c0_84], %116 {strides = array<i32>} : memref<1x16x16x128xf32, #tpu.memory_space<vmem>>, vector<1x16x16x128xf32>,
    return
  }
  func.func @transform_0(%arg0: i32) -> (i32, i32, i32, i32) {
    %c0_i32 = arith.constant 0 : i32
    %c0_i32_0 = arith.constant 0 : i32
    %c0_i32_1 = arith.constant 0 : i32
    %c0_i32_2 = arith.constant 0 : i32
    return %arg0, %c0_i32, %c0_i32_0, %c0_i32_1 : i32, i32, i32, i32
  }
  func.func @transform_1(%arg0: i32) -> (i32, i32, i32) {
    %c0_i32 = arith.constant 0 : i32
    %c0_i32_0 = arith.constant 0 : i32
    %c0_i32_1 = arith.constant 0 : i32
    %c0_i32_2 = arith.constant 0 : i32
    return %c0_i32, %c0_i32_0, %c0_i32_1 : i32, i32, i32
  }
  func.func @transform_2(%arg0: i32) -> (i32, i32) {
    %c0_i32 = arith.constant 0 : i32
    %c0_i32_0 = arith.constant 0 : i32
    %c0_i32_1 = arith.constant 0 : i32
    return %c0_i32, %c0_i32_0 : i32, i32
  }
  func.func @transform_3(%arg0: i32) -> (i32, i32, i32) {
    %c0_i32 = arith.constant 0 : i32
    %c0_i32_0 = arith.constant 0 : i32
    %c0_i32_1 = arith.constant 0 : i32
    %c0_i32_2 = arith.constant 0 : i32
    return %c0_i32, %c0_i32_0, %c0_i32_1 : i32, i32, i32
  }
  func.func @transform_4(%arg0: i32) -> (i32, i32) {
    %c0_i32 = arith.constant 0 : i32
    %c0_i32_0 = arith.constant 0 : i32
    %c0_i32_1 = arith.constant 0 : i32
    return %c0_i32, %c0_i32_0 : i32, i32
  }
  func.func @transform_5(%arg0: i32) -> (i32, i32) {
    %c0_i32 = arith.constant 0 : i32
    %c0_i32_0 = arith.constant 0 : i32
    %c0_i32_1 = arith.constant 0 : i32
    return %c0_i32, %c0_i32_0 : i32, i32
  }
  func.func @transform_6(%arg0: i32) -> (i32, i32) {
    %c0_i32 = arith.constant 0 : i32
    %c0_i32_0 = arith.constant 0 : i32
    %c0_i32_1 = arith.constant 0 : i32
    return %c0_i32, %c0_i32_0 : i32, i32
  }
  func.func @transform_7(%arg0: i32) -> (i32, i32, i32, i32) {
    %c0_i32 = arith.constant 0 : i32
    %c0_i32_0 = arith.constant 0 : i32
    %c0_i32_1 = arith.constant 0 : i32
    %c0_i32_2 = arith.constant 0 : i32
    return %arg0, %c0_i32, %c0_i32_0, %c0_i32_1 : i32, i32, i32, i32
  }
}

</mosaic_0001>

<llo_original>
// kernel: tpu_custom_call.1
$region0: #{tpu_custom_call.1}
  #allocation0 [shape = 'u32[]', space=smem, size = 0x4, offset = 0x4, fixed_abs, tag = 'smem constant byte address 0x4 - core index']
  #allocation1 [shape = 'u32[144,128]{1,0:T(1,128)}', space=vmem, size = 0x12000, scoped, tag = 'internal scratch']
  #allocation2 [shape = 'bf16[288,384]{1,0:T(16,128)(2,1)}', space=vmem, size = 0x36000, scoped, tag = 'scratch operand']
  #allocation3 [shape = 'bf16[288,384]{1,0:T(16,128)(2,1)}', space=vmem, size = 0x36000, scoped, tag = 'scratch operand']
  %s0 = inlined_call_operand.hbm [shape: f32[2,16,16,128], index: 0, kind: input, shape index: {}]
  %s1 = inlined_call_operand.hbm [shape: bf16[3,384,128], index: 1, kind: input, shape index: {}]
  %s2 = inlined_call_operand.hbm [shape: f32[1,128], index: 2, kind: input, shape index: {}]
  %s3 = inlined_call_operand.hbm [shape: bf16[3,384,128], index: 3, kind: input, shape index: {}]
  %s4 = inlined_call_operand.hbm [shape: f32[1,128], index: 4, kind: input, shape index: {}]
  %s5 = inlined_call_operand.hbm [shape: bf16[128,128], index: 5, kind: input, shape index: {}]
  %s6 = inlined_call_operand.hbm [shape: f32[1,128], index: 6, kind: input, shape index: {}]
  %s7 = inlined_call_operand.hbm [shape: f32[2,16,16,128], index: 7, kind: output, shape index: {}]
  %s8 = sld [smem:[#allocation0]]
  $region89: #{tpu_custom_call.1} parent=0
    _
  %s10 = ssub.s32 1, %s8
  %s11 = scalar_select 0, %s10, %s8
  $region1: #{tpu_custom_call.1} parent=0
    #allocation4 [shape = 'u8[262144]{0}', space=vmem, size = 0x40000, scoped, tag = 'input window, operand 0']
    #allocation5 [shape = 's32[2]{0}', space=sflag, size = 0x8, scoped, tag = 'scoped memory for tpu_custom_call.1']
    #allocation6 [shape = 's32[2]{0}', space=sflag, size = 0x8, scoped, tag = 'scoped memory for tpu_custom_call.1']
    #allocation7 [shape = 'u8[294912]{0}', space=vmem, size = 0x48000, scoped, tag = 'input window, operand 1, single buffered']
    #allocation8 [shape = 's32[1]{0}', space=sflag, size = 0x4, scoped, tag = 'scoped memory for tpu_custom_call.1']
    #allocation9 [shape = 'u8[512]{0}', space=vmem, size = 0x400, scoped, tag = 'input window, operand 2, single buffered']
    #allocation10 [shape = 'u8[294912]{0}', space=vmem, size = 0x48000, scoped, tag = 'input window, operand 3, single buffered']
    #allocation11 [shape = 's32[1]{0}', space=sflag, size = 0x4, scoped, tag = 'scoped memory for tpu_custom_call.1']
    #allocation12 [shape = 'u8[512]{0}', space=vmem, size = 0x400, scoped, tag = 'input window, operand 4, single buffered']
    #allocation13 [shape = 'u8[32768]{0}', space=vmem, size = 0x8000, scoped, tag = 'input window, operand 5, single buffered']
    #allocation14 [shape = 's32[1]{0}', space=sflag, size = 0x4, scoped, tag = 'scoped memory for tpu_custom_call.1']
    #allocation15 [shape = 'u8[512]{0}', space=vmem, size = 0x400, scoped, tag = 'input window, operand 6, single buffered']
    #allocation16 [shape = 'u8[262144]{0}', space=vmem, size = 0x40000, scoped, tag = 'output window, operand 0']
    %12 = vsyncpa [#allocation5], 0
    %s13 = scalar_lea.sflag [#allocation5], 1
    %14 = vsyncpa %s13, 0
    %15 = vsyncpa [#allocation8], 0
    %16 = vsyncpa [#allocation11], 0
    %17 = vsyncpa [#allocation14], 0
    %18 = vsyncpa [#allocation6], 0
    %s19 = scalar_lea.sflag [#allocation6], 1
    %20 = vsyncpa %s19, 0
    loop: start=0, step=1, limit=4
    $region2: #{tpu_custom_call.1} parent=1 // loop_pre_header
      _
    $region3: #{tpu_custom_call.1} parent=1 // loop_header
      %s22 = sphi 0, %s26
      %p23 = scmp.ge.s32.totalorder %s22, 4
      %s32 = sphi 0, %s34
      %s35 = sphi 0, %s32
      %s36 = sphi 0, %s35
      %s52 = sphi 0, %s36
      %s56 = sphi 0, %s56
      %s58 = sphi 0, %s56
      %s59 = sphi 0, %s58
      %s73 = sphi 0, %s59
      %s77 = sphi 0, %s77
      %s79 = sphi 0, %s77
      %s80 = sphi 0, %s79
      %s94 = sphi 0, %s80
      %s98 = sphi 0, %s98
      %s100 = sphi 0, %s98
      %s101 = sphi 0, %s100
      %s115 = sphi 0, %s101
      %s119 = sphi 0, %s119
      %s121 = sphi 0, %s119
      %s122 = sphi 0, %s121
      %s136 = sphi 0, %s122
      %s140 = sphi 0, %s140
      %s142 = sphi 0, %s140
      %s143 = sphi 0, %s142
      %s157 = sphi 0, %s143
      %s161 = sphi 0, %s161
      %s163 = sphi 0, %s161
      %s164 = sphi 0, %s163
      %s178 = sphi 0, %s164
      %s184 = sphi 0, %s186
      %s187 = sphi 0, %s184
      %s188 = sphi 0, %s187
      %s204 = sphi 0, %s188
    $region4: #{tpu_custom_call.1} parent=1 // loop_header_branch
      %25 = sbr.rel (%p23) target = $region8
    $region5: #{tpu_custom_call.1} parent=1 // loop_body
      %s27 = ssub.s32 %s22, 1
      %s28 = ssub.s32 %s22, 2
      %s29 = sadd.s32 %s22, 1
      %s30 = ssub.s32 %s22, %s29
      %p31 = scmp.eq.s32.totalorder %s30, 0
      %s33 = sadd.s32 %s32, 1
      %s34 = scalar_select %p31, %s32, %s33
      %p37 = pneg %p31
      %p38 = scmp.eq.s32.totalorder %s22, 1
      %p39 = por %p37, %p38
      %p40 = scmp.ne.s32.totalorder %s32, %s35
      %p41 = scmp.eq.s32.totalorder %s22, 0
      %p42 = por %p40, %p41
      %p43 = scmp.ne.s32.totalorder %s32, %s35
      %p44 = scmp.eq.s32.totalorder %s27, 1
      %p45 = por %p43, %p44
      %p46 = scmp.ne.s32.totalorder %s35, %s36
      %p47 = scmp.eq.s32.totalorder %s27, 0
      %p48 = por %p46, %p47
      %p49 = scmp.ne.s32.totalorder %s35, %s36
      %p50 = scmp.eq.s32.totalorder %s28, 1
      %p51 = por %p49, %p50
      %p53 = scmp.ne.s32.totalorder %s36, %s52
      %p54 = scmp.eq.s32.totalorder %s28, 0
      %p55 = por %p53, %p54
      %s57 = sadd.s32 %s56, 1
      %p60 = scmp.eq.s32.totalorder %s22, 1
      %p61 = scmp.ne.s32.totalorder %s56, %s58
      %p62 = scmp.eq.s32.totalorder %s22, 0
      %p63 = por %p61, %p62
      %p64 = scmp.ne.s32.totalorder %s56, %s58
      %p65 = scmp.eq.s32.totalorder %s27, 1
      %p66 = por %p64, %p65
      %p67 = scmp.ne.s32.totalorder %s58, %s59
      %p68 = scmp.eq.s32.totalorder %s27, 0
      %p69 = por %p67, %p68
      %p70 = scmp.ne.s32.totalorder %s58, %s59
      %p71 = scmp.eq.s32.totalorder %s28, 1
      %p72 = por %p70, %p71
      %p74 = scmp.ne.s32.totalorder %s59, %s73
      %p75 = scmp.eq.s32.totalorder %s28, 0
      %p76 = por %p74, %p75
      %s78 = sadd.s32 %s77, 1
      %p81 = scmp.eq.s32.totalorder %s22, 1
      %p82 = scmp.ne.s32.totalorder %s77, %s79
      %p83 = scmp.eq.s32.totalorder %s22, 0
      %p84 = por %p82, %p83
      %p85 = scmp.ne.s32.totalorder %s77, %s79
      %p86 = scmp.eq.s32.totalorder %s27, 1
      %p87 = por %p85, %p86
      %p88 = scmp.ne.s32.totalorder %s79, %s80
      %p89 = scmp.eq.s32.totalorder %s27, 0
      %p90 = por %p88, %p89
      %p91 = scmp.ne.s32.totalorder %s79, %s80
      %p92 = scmp.eq.s32.totalorder %s28, 1
      %p93 = por %p91, %p92
      %p95 = scmp.ne.s32.totalorder %s80, %s94
      %p96 = scmp.eq.s32.totalorder %s28, 0
      %p97 = por %p95, %p96
      %s99 = sadd.s32 %s98, 1
      %p102 = scmp.eq.s32.totalorder %s22, 1
      %p103 = scmp.ne.s32.totalorder %s98, %s100
      %p104 = scmp.eq.s32.totalorder %s22, 0
      %p105 = por %p103, %p104
      %p106 = scmp.ne.s32.totalorder %s98, %s100
      %p107 = scmp.eq.s32.totalorder %s27, 1
      %p108 = por %p106, %p107
      %p109 = scmp.ne.s32.totalorder %s100, %s101
      %p110 = scmp.eq.s32.totalorder %s27, 0
      %p111 = por %p109, %p110
      %p112 = scmp.ne.s32.totalorder %s100, %s101
      %p113 = scmp.eq.s32.totalorder %s28, 1
      %p114 = por %p112, %p113
      %p116 = scmp.ne.s32.totalorder %s101, %s115
      %p117 = scmp.eq.s32.totalorder %s28, 0
      %p118 = por %p116, %p117
      %s120 = sadd.s32 %s119, 1
      %p123 = scmp.eq.s32.totalorder %s22, 1
      %p124 = scmp.ne.s32.totalorder %s119, %s121
      %p125 = scmp.eq.s32.totalorder %s22, 0
      %p126 = por %p124, %p125
      %p127 = scmp.ne.s32.totalorder %s119, %s121
      %p128 = scmp.eq.s32.totalorder %s27, 1
      %p129 = por %p127, %p128
      %p130 = scmp.ne.s32.totalorder %s121, %s122
      %p131 = scmp.eq.s32.totalorder %s27, 0
      %p132 = por %p130, %p131
      %p133 = scmp.ne.s32.totalorder %s121, %s122
      %p134 = scmp.eq.s32.totalorder %s28, 1
      %p135 = por %p133, %p134
      %p137 = scmp.ne.s32.totalorder %s122, %s136
      %p138 = scmp.eq.s32.totalorder %s28, 0
      %p139 = por %p137, %p138
      %s141 = sadd.s32 %s140, 1
      %p144 = scmp.eq.s32.totalorder %s22, 1
      %p145 = scmp.ne.s32.totalorder %s140, %s142
      %p146 = scmp.eq.s32.totalorder %s22, 0
      %p147 = por %p145, %p146
      %p148 = scmp.ne.s32.totalorder %s140, %s142
      %p149 = scmp.eq.s32.totalorder %s27, 1
      %p150 = por %p148, %p149
      %p151 = scmp.ne.s32.totalorder %s142, %s143
      %p152 = scmp.eq.s32.totalorder %s27, 0
      %p153 = por %p151, %p152
      %p154 = scmp.ne.s32.totalorder %s142, %s143
      %p155 = scmp.eq.s32.totalorder %s28, 1
      %p156 = por %p154, %p155
      %p158 = scmp.ne.s32.totalorder %s143, %s157
      %p159 = scmp.eq.s32.totalorder %s28, 0
      %p160 = por %p158, %p159
      %s162 = sadd.s32 %s161, 1
      %p165 = scmp.eq.s32.totalorder %s22, 1
      %p166 = scmp.ne.s32.totalorder %s161, %s163
      %p167 = scmp.eq.s32.totalorder %s22, 0
      %p168 = por %p166, %p167
      %p169 = scmp.ne.s32.totalorder %s161, %s163
      %p170 = scmp.eq.s32.totalorder %s27, 1
      %p171 = por %p169, %p170
      %p172 = scmp.ne.s32.totalorder %s163, %s164
      %p173 = scmp.eq.s32.totalorder %s27, 0
      %p174 = por %p172, %p173
      %p175 = scmp.ne.s32.totalorder %s163, %s164
      %p176 = scmp.eq.s32.totalorder %s28, 1
      %p177 = por %p175, %p176
      %p179 = scmp.ne.s32.totalorder %s164, %s178
      %p180 = scmp.eq.s32.totalorder %s28, 0
      %p181 = por %p179, %p180
      %s182 = ssub.s32 %s22, %s29
      %p183 = scmp.eq.s32.totalorder %s182, 0
      %s185 = sadd.s32 %s184, 1
      %s186 = scalar_select %p183, %s184, %s185
      %p189 = pneg %p183
      %p190 = scmp.eq.s32.totalorder %s22, 1
      %p191 = por %p189, %p190
      %p192 = scmp.ne.s32.totalorder %s184, %s187
      %p193 = scmp.eq.s32.totalorder %s22, 0
      %p194 = por %p192, %p193
      %p195 = scmp.ne.s32.totalorder %s184, %s187
      %p196 = scmp.eq.s32.totalorder %s27, 1
      %p197 = por %p195, %p196
      %p198 = scmp.ne.s32.totalorder %s187, %s188
      %p199 = scmp.eq.s32.totalorder %s27, 0
      %p200 = por %p198, %p199
      %p201 = scmp.ne.s32.totalorder %s187, %s188
      %p202 = scmp.eq.s32.totalorder %s28, 1
      %p203 = por %p201, %p202
      %p205 = scmp.ne.s32.totalorder %s188, %s204
      %p206 = scmp.eq.s32.totalorder %s28, 0
      %p207 = por %p205, %p206
      %p208 = scmp.le.s32.totalorder 1, %s22
      %p209 = scmp.lt.s32.totalorder %s22, 3
      %p210 = pnand %p208, %p209
      %p211 = pneg %p210
      // Predicated region
      $region9: #{tpu_custom_call.1} parent=5 // pred_check
        _
      $region10: #{tpu_custom_call.1} parent=5 // pred_check_branch
        %213 = sbr.rel (%p210) target = $region12
      $region11: #{tpu_custom_call.1} parent=5 // pred_region
        %s214 = ssub.s32 %s22, 1
        // Predicated region
        $region13: #{tpu_custom_call.1} parent=11 // pred_check
          %p215 = pneg %p69
        $region14: #{tpu_custom_call.1} parent=11 // pred_check_branch
          %217 = sbr.rel (%p215) target = $region16
        $region15: #{tpu_custom_call.1} parent=11 // pred_region
          %s219 = ssub.s32 9216, 9216
          %220 = vsyncadd [#allocation8], %s219
          %s221 = sshll.u32 [#allocation7], 4
          %s222 = int_to_ptr.vmem [resolvable:$true] %s221
          %227 = dma.hbm_to_vmem [thread:$0]  %s1, 9216, %s222, [#allocation8], 64, 64, 4
        $region16: #{tpu_custom_call.1} parent=11 // pred_fallthru
          _
        // Predicated region
        $region17: #{tpu_custom_call.1} parent=11 // pred_check
          %p228 = pneg %p90
        $region18: #{tpu_custom_call.1} parent=11 // pred_check_branch
          %230 = sbr.rel (%p228) target = $region20
        $region19: #{tpu_custom_call.1} parent=11 // pred_region
          %s232 = ssub.s32 16, 16
          %233 = vsyncadd [#allocation8], %s232
          %s235 = sshll.u32 [#allocation9], 4
          %s236 = int_to_ptr.vmem [resolvable:$true] %s235
          %238 = dma.hbm_to_vmem [thread:$0]  %s2, 16, %s236, [#allocation8]
        $region20: #{tpu_custom_call.1} parent=11 // pred_fallthru
          _
        // Predicated region
        $region21: #{tpu_custom_call.1} parent=11 // pred_check
          %p239 = pneg %p111
        $region22: #{tpu_custom_call.1} parent=11 // pred_check_branch
          %241 = sbr.rel (%p239) target = $region24
        $region23: #{tpu_custom_call.1} parent=11 // pred_region
          %s243 = ssub.s32 9216, 9216
          %244 = vsyncadd [#allocation11], %s243
          %s245 = sshll.u32 [#allocation10], 4
          %s246 = int_to_ptr.vmem [resolvable:$true] %s245
          %251 = dma.hbm_to_vmem [thread:$0]  %s3, 9216, %s246, [#allocation11], 64, 64, 4
        $region24: #{tpu_custom_call.1} parent=11 // pred_fallthru
          _
        // Predicated region
        $region25: #{tpu_custom_call.1} parent=11 // pred_check
          %p252 = pneg %p132
        $region26: #{tpu_custom_call.1} parent=11 // pred_check_branch
          %254 = sbr.rel (%p252) target = $region28
        $region27: #{tpu_custom_call.1} parent=11 // pred_region
          %s256 = ssub.s32 16, 16
          %257 = vsyncadd [#allocation11], %s256
          %s259 = sshll.u32 [#allocation12], 4
          %s260 = int_to_ptr.vmem [resolvable:$true] %s259
          %262 = dma.hbm_to_vmem [thread:$0]  %s4, 16, %s260, [#allocation11]
        $region28: #{tpu_custom_call.1} parent=11 // pred_fallthru
          _
        // Predicated region
        $region29: #{tpu_custom_call.1} parent=11 // pred_check
          %p263 = pneg %p153
        $region30: #{tpu_custom_call.1} parent=11 // pred_check_branch
          %265 = sbr.rel (%p263) target = $region32
        $region31: #{tpu_custom_call.1} parent=11 // pred_region
          %s267 = ssub.s32 1024, 1024
          %268 = vsyncadd [#allocation14], %s267
          %s269 = sshll.u32 [#allocation13], 4
          %s270 = int_to_ptr.vmem [resolvable:$true] %s269
          %275 = dma.hbm_to_vmem [thread:$0]  %s5, 1024, %s270, [#allocation14], 64, 64, 4
        $region32: #{tpu_custom_call.1} parent=11 // pred_fallthru
          _
        // Predicated region
        $region33: #{tpu_custom_call.1} parent=11 // pred_check
          %p276 = pneg %p174
        $region34: #{tpu_custom_call.1} parent=11 // pred_check_branch
          %278 = sbr.rel (%p276) target = $region36
        $region35: #{tpu_custom_call.1} parent=11 // pred_region
          %s280 = ssub.s32 16, 16
          %281 = vsyncadd [#allocation14], %s280
          %s283 = sshll.u32 [#allocation15], 4
          %s284 = int_to_ptr.vmem [resolvable:$true] %s283
          %286 = dma.hbm_to_vmem [thread:$0]  %s6, 16, %s284, [#allocation14]
        $region36: #{tpu_custom_call.1} parent=11 // pred_fallthru
          _
      $region12: #{tpu_custom_call.1} parent=5 // pred_fallthru
        _
      %p287 = scmp.lt.s32.totalorder %s22, 2
      // Predicated region
      $region37: #{tpu_custom_call.1} parent=5 // pred_check
        %p288 = pneg %p287
      $region38: #{tpu_custom_call.1} parent=5 // pred_check_branch
        %290 = sbr.rel (%p288) target = $region40
      $region39: #{tpu_custom_call.1} parent=5 // pred_region
        // Predicated region
        $region41: #{tpu_custom_call.1} parent=39 // pred_check
          %p291 = pneg %p42
        $region42: #{tpu_custom_call.1} parent=39 // pred_check_branch
          %293 = sbr.rel (%p291) target = $region44
        $region43: #{tpu_custom_call.1} parent=39 // pred_region
          %s294 = sand.u32 %s32, 1
          %s295 = scalar_lea.sflag [#allocation5], %s294
          %s296 = sand.u32 %s32, 1
          %s297 = smul.addr %s296, 256
          %s298 = scalar_lea.vmem [#allocation4], %s297
          %s300 = ssub.s32 4096, 4096
          %301 = vsyncadd %s295, %s300
          %s302 = smul.addr %s22, 32
          %s303 = smul.addr %s302, 128
          %s304 = scalar_lea.hbm %s0, %s303
          %s305 = sshll.u32 %s298, 4
          %s306 = int_to_ptr.vmem [resolvable:$true] %s305
          %311 = dma.hbm_to_vmem [thread:$0]  %s304, 4096, %s306, %s295, 128, 128, 8
        $region44: #{tpu_custom_call.1} parent=39 // pred_fallthru
          _
      $region40: #{tpu_custom_call.1} parent=5 // pred_fallthru
        _
      %p312 = scmp.le.s32.totalorder 1, %s22
      %p313 = scmp.lt.s32.totalorder %s22, 3
      %p314 = pnand %p312, %p313
      %p315 = pneg %p314
      // Predicated region
      $region45: #{tpu_custom_call.1} parent=5 // pred_check
        _
      $region46: #{tpu_custom_call.1} parent=5 // pred_check_branch
        %317 = sbr.rel (%p314) target = $region48
      $region47: #{tpu_custom_call.1} parent=5 // pred_region
        %s318 = ssub.s32 %s22, 1
        %s319 = sand.u32 %s35, 1
        %s320 = scalar_lea.sflag [#allocation5], %s319
        %s321 = sand.u32 %s35, 1
        %s322 = smul.addr %s321, 256
        %s323 = scalar_lea.vmem [#allocation4], %s322
        // Predicated region
        $region49: #{tpu_custom_call.1} parent=47 // pred_check
          %p324 = pneg %p48
        $region50: #{tpu_custom_call.1} parent=47 // pred_check_branch
          %326 = sbr.rel (%p324) target = $region52
        $region51: #{tpu_custom_call.1} parent=47 // pred_region
          %327 = dma.done %s320, 4096
        $region52: #{tpu_custom_call.1} parent=47 // pred_fallthru
          _
        // Predicated region
        $region53: #{tpu_custom_call.1} parent=47 // pred_check
          %p328 = pneg %p69
        $region54: #{tpu_custom_call.1} parent=47 // pred_check_branch
          %330 = sbr.rel (%p328) target = $region56
        $region55: #{tpu_custom_call.1} parent=47 // pred_region
          %331 = dma.done [#allocation8], 9216
        $region56: #{tpu_custom_call.1} parent=47 // pred_fallthru
          _
        // Predicated region
        $region57: #{tpu_custom_call.1} parent=47 // pred_check
          %p332 = pneg %p90
        $region58: #{tpu_custom_call.1} parent=47 // pred_check_branch
          %334 = sbr.rel (%p332) target = $region60
        $region59: #{tpu_custom_call.1} parent=47 // pred_region
          %335 = dma.done [#allocation8], 16
        $region60: #{tpu_custom_call.1} parent=47 // pred_fallthru
          _
        // Predicated region
        $region61: #{tpu_custom_call.1} parent=47 // pred_check
          %p336 = pneg %p111
        $region62: #{tpu_custom_call.1} parent=47 // pred_check_branch
          %338 = sbr.rel (%p336) target = $region64
        $region63: #{tpu_custom_call.1} parent=47 // pred_region
          %339 = dma.done [#allocation11], 9216
        $region64: #{tpu_custom_call.1} parent=47 // pred_fallthru
          _
        // Predicated region
        $region65: #{tpu_custom_call.1} parent=47 // pred_check
          %p340 = pneg %p132
        $region66: #{tpu_custom_call.1} parent=47 // pred_check_branch
          %342 = sbr.rel (%p340) target = $region68
        $region67: #{tpu_custom_call.1} parent=47 // pred_region
          %343 = dma.done [#allocation11], 16
        $region68: #{tpu_custom_call.1} parent=47 // pred_fallthru
          _
        // Predicated region
        $region69: #{tpu_custom_call.1} parent=47 // pred_check
          %p344 = pneg %p153
        $region70: #{tpu_custom_call.1} parent=47 // pred_check_branch
          %346 = sbr.rel (%p344) target = $region72
        $region71: #{tpu_custom_call.1} parent=47 // pred_region
          %347 = dma.done [#allocation14], 1024
        $region72: #{tpu_custom_call.1} parent=47 // pred_fallthru
          _
        // Predicated region
        $region73: #{tpu_custom_call.1} parent=47 // pred_check
          %p348 = pneg %p174
        $region74: #{tpu_custom_call.1} parent=47 // pred_check_branch
          %350 = sbr.rel (%p348) target = $region76
        $region75: #{tpu_custom_call.1} parent=47 // pred_region
          %351 = dma.done [#allocation14], 16
        $region76: #{tpu_custom_call.1} parent=47 // pred_fallthru
          _
        %s352 = sand.u32 %s35, 1
        %s353 = scalar_lea.sflag [#allocation5], %s352
        %s354 = sand.u32 %s35, 1
        %s355 = smul.addr %s354, 256
        %s356 = scalar_lea.vmem [#allocation4], %s355
        %p357 = pneg %p48
        %p358 = pneg %p45
        %p359 = pneg %p69
        %p360 = pneg %p66
        %p361 = pneg %p90
        %p362 = pneg %p87
        %p363 = pneg %p111
        %p364 = pneg %p108
        %p365 = pneg %p132
        %p366 = pneg %p129
        %p367 = pneg %p153
        %p368 = pneg %p150
        %p369 = pneg %p174
        %p370 = pneg %p171
        %p371 = pneg %p200
        %p372 = pneg %p197
        %s373 = sand.u32 %s187, 1
        %s374 = scalar_lea.sflag [#allocation6], %s373
        %s375 = sand.u32 %s187, 1
        %s376 = smul.addr %s375, 256
        %s377 = scalar_lea.vmem [#allocation16], %s376
        %v379 = vlaneseq
        %v380 = vshrl.u32 %v379, 7
        %v381 = vadd.s32 %v380, 8
        %v382 = vadd.s32 %v380, 16
        %v383 = vadd.s32 %v380, 24
        %v384 = vadd.s32 %v380, 32
        %v385 = vadd.s32 %v380, 40
        %v386 = vadd.s32 %v380, 48
        %v387 = vadd.s32 %v380, 56
        %v388 = vadd.s32 %v380, 64
        %v389 = vadd.s32 %v380, 72
        %v390 = vadd.s32 %v380, 80
        %v391 = vadd.s32 %v380, 88
        %v392 = vadd.s32 %v380, 96
        %v393 = vadd.s32 %v380, 104
        %v394 = vadd.s32 %v380, 112
        %v395 = vadd.s32 %v380, 120
        %v396 = vadd.s32 %v380, 128
        %v397 = vadd.s32 %v380, 136
        %v398 = vadd.s32 %v380, 144
        %v399 = vadd.s32 %v380, 152
        %v400 = vadd.s32 %v380, 160
        %v401 = vadd.s32 %v380, 168
        %v402 = vadd.s32 %v380, 176
        %v403 = vadd.s32 %v380, 184
        %v404 = vadd.s32 %v380, 192
        %v405 = vadd.s32 %v380, 200
        %v406 = vadd.s32 %v380, 208
        %v407 = vadd.s32 %v380, 216
        %v408 = vadd.s32 %v380, 224
        %v409 = vadd.s32 %v380, 232
        %v410 = vadd.s32 %v380, 240
        %v411 = vadd.s32 %v380, 248
        %vm412 = vcmp.lt.s32.totalorder %v380, 0
        %v413 = vsub.s32 0, %v380
        %v414 = vsel %vm412, %v413, %v380
        %v415 = vshrl.u32 %v414, 4
        %v416 = vand.u32 %v414, 15
        %v417 = vsub.s32 0, %v416
        %v418 = vsel %vm412, %v417, %v416
        %vm419 = vcmp.lt.s32.totalorder %v381, 0
        %v420 = vsub.s32 0, %v381
        %v421 = vsel %vm419, %v420, %v381
        %v422 = vshrl.u32 %v421, 4
        %v423 = vand.u32 %v421, 15
        %v424 = vsub.s32 0, %v423
        %v425 = vsel %vm419, %v424, %v423
        %vm426 = vcmp.lt.s32.totalorder %v382, 0
        %v427 = vsub.s32 0, %v382
        %v428 = vsel %vm426, %v427, %v382
        %v429 = vshrl.u32 %v428, 4
        %v430 = vand.u32 %v428, 15
        %v431 = vsub.s32 0, %v430
        %v432 = vsel %vm426, %v431, %v430
        %vm433 = vcmp.lt.s32.totalorder %v383, 0
        %v434 = vsub.s32 0, %v383
        %v435 = vsel %vm433, %v434, %v383
        %v436 = vshrl.u32 %v435, 4
        %v437 = vand.u32 %v435, 15
        %v438 = vsub.s32 0, %v437
        %v439 = vsel %vm433, %v438, %v437
        %vm440 = vcmp.lt.s32.totalorder %v384, 0
        %v441 = vsub.s32 0, %v384
        %v442 = vsel %vm440, %v441, %v384
        %v443 = vshrl.u32 %v442, 4
        %v444 = vand.u32 %v442, 15
        %v445 = vsub.s32 0, %v444
        %v446 = vsel %vm440, %v445, %v444
        %vm447 = vcmp.lt.s32.totalorder %v385, 0
        %v448 = vsub.s32 0, %v385
        %v449 = vsel %vm447, %v448, %v385
        %v450 = vshrl.u32 %v449, 4
        %v451 = vand.u32 %v449, 15
        %v452 = vsub.s32 0, %v451
        %v453 = vsel %vm447, %v452, %v451
        %vm454 = vcmp.lt.s32.totalorder %v386, 0
        %v455 = vsub.s32 0, %v386
        %v456 = vsel %vm454, %v455, %v386
        %v457 = vshrl.u32 %v456, 4
        %v458 = vand.u32 %v456, 15
        %v459 = vsub.s32 0, %v458
        %v460 = vsel %vm454, %v459, %v458
        %vm461 = vcmp.lt.s32.totalorder %v387, 0
        %v462 = vsub.s32 0, %v387
        %v463 = vsel %vm461, %v462, %v387
        %v464 = vshrl.u32 %v463, 4
        %v465 = vand.u32 %v463, 15
        %v466 = vsub.s32 0, %v465
        %v467 = vsel %vm461, %v466, %v465
        %vm468 = vcmp.lt.s32.totalorder %v388, 0
        %v469 = vsub.s32 0, %v388
        %v470 = vsel %vm468, %v469, %v388
        %v471 = vshrl.u32 %v470, 4
        %v472 = vand.u32 %v470, 15
        %v473 = vsub.s32 0, %v472
        %v474 = vsel %vm468, %v473, %v472
        %vm475 = vcmp.lt.s32.totalorder %v389, 0
        %v476 = vsub.s32 0, %v389
        %v477 = vsel %vm475, %v476, %v389
        %v478 = vshrl.u32 %v477, 4
        %v479 = vand.u32 %v477, 15
        %v480 = vsub.s32 0, %v479
        %v481 = vsel %vm475, %v480, %v479
        %vm482 = vcmp.lt.s32.totalorder %v390, 0
        %v483 = vsub.s32 0, %v390
        %v484 = vsel %vm482, %v483, %v390
        %v485 = vshrl.u32 %v484, 4
        %v486 = vand.u32 %v484, 15
        %v487 = vsub.s32 0, %v486
        %v488 = vsel %vm482, %v487, %v486
        %vm489 = vcmp.lt.s32.totalorder %v391, 0
        %v490 = vsub.s32 0, %v391
        %v491 = vsel %vm489, %v490, %v391
        %v492 = vshrl.u32 %v491, 4
        %v493 = vand.u32 %v491, 15
        %v494 = vsub.s32 0, %v493
        %v495 = vsel %vm489, %v494, %v493
        %vm496 = vcmp.lt.s32.totalorder %v392, 0
        %v497 = vsub.s32 0, %v392
        %v498 = vsel %vm496, %v497, %v392
        %v499 = vshrl.u32 %v498, 4
        %v500 = vand.u32 %v498, 15
        %v501 = vsub.s32 0, %v500
        %v502 = vsel %vm496, %v501, %v500
        %vm503 = vcmp.lt.s32.totalorder %v393, 0
        %v504 = vsub.s32 0, %v393
        %v505 = vsel %vm503, %v504, %v393
        %v506 = vshrl.u32 %v505, 4
        %v507 = vand.u32 %v505, 15
        %v508 = vsub.s32 0, %v507
        %v509 = vsel %vm503, %v508, %v507
        %vm510 = vcmp.lt.s32.totalorder %v394, 0
        %v511 = vsub.s32 0, %v394
        %v512 = vsel %vm510, %v511, %v394
        %v513 = vshrl.u32 %v512, 4
        %v514 = vand.u32 %v512, 15
        %v515 = vsub.s32 0, %v514
        %v516 = vsel %vm510, %v515, %v514
        %vm517 = vcmp.lt.s32.totalorder %v395, 0
        %v518 = vsub.s32 0, %v395
        %v519 = vsel %vm517, %v518, %v395
        %v520 = vshrl.u32 %v519, 4
        %v521 = vand.u32 %v519, 15
        %v522 = vsub.s32 0, %v521
        %v523 = vsel %vm517, %v522, %v521
        %vm524 = vcmp.lt.s32.totalorder %v396, 0
        %v525 = vsub.s32 0, %v396
        %v526 = vsel %vm524, %v525, %v396
        %v527 = vshrl.u32 %v526, 4
        %v528 = vand.u32 %v526, 15
        %v529 = vsub.s32 0, %v528
        %v530 = vsel %vm524, %v529, %v528
        %vm531 = vcmp.lt.s32.totalorder %v397, 0
        %v532 = vsub.s32 0, %v397
        %v533 = vsel %vm531, %v532, %v397
        %v534 = vshrl.u32 %v533, 4
        %v535 = vand.u32 %v533, 15
        %v536 = vsub.s32 0, %v535
        %v537 = vsel %vm531, %v536, %v535
        %vm538 = vcmp.lt.s32.totalorder %v398, 0
        %v539 = vsub.s32 0, %v398
        %v540 = vsel %vm538, %v539, %v398
        %v541 = vshrl.u32 %v540, 4
        %v542 = vand.u32 %v540, 15
        %v543 = vsub.s32 0, %v542
        %v544 = vsel %vm538, %v543, %v542
        %vm545 = vcmp.lt.s32.totalorder %v399, 0
        %v546 = vsub.s32 0, %v399
        %v547 = vsel %vm545, %v546, %v399
        %v548 = vshrl.u32 %v547, 4
        %v549 = vand.u32 %v547, 15
        %v550 = vsub.s32 0, %v549
        %v551 = vsel %vm545, %v550, %v549
        %vm552 = vcmp.lt.s32.totalorder %v400, 0
        %v553 = vsub.s32 0, %v400
        %v554 = vsel %vm552, %v553, %v400
        %v555 = vshrl.u32 %v554, 4
        %v556 = vand.u32 %v554, 15
        %v557 = vsub.s32 0, %v556
        %v558 = vsel %vm552, %v557, %v556
        %vm559 = vcmp.lt.s32.totalorder %v401, 0
        %v560 = vsub.s32 0, %v401
        %v561 = vsel %vm559, %v560, %v401
        %v562 = vshrl.u32 %v561, 4
        %v563 = vand.u32 %v561, 15
        %v564 = vsub.s32 0, %v563
        %v565 = vsel %vm559, %v564, %v563
        %vm566 = vcmp.lt.s32.totalorder %v402, 0
        %v567 = vsub.s32 0, %v402
        %v568 = vsel %vm566, %v567, %v402
        %v569 = vshrl.u32 %v568, 4
        %v570 = vand.u32 %v568, 15
        %v571 = vsub.s32 0, %v570
        %v572 = vsel %vm566, %v571, %v570
        %vm573 = vcmp.lt.s32.totalorder %v403, 0
        %v574 = vsub.s32 0, %v403
        %v575 = vsel %vm573, %v574, %v403
        %v576 = vshrl.u32 %v575, 4
        %v577 = vand.u32 %v575, 15
        %v578 = vsub.s32 0, %v577
        %v579 = vsel %vm573, %v578, %v577
        %vm580 = vcmp.lt.s32.totalorder %v404, 0
        %v581 = vsub.s32 0, %v404
        %v582 = vsel %vm580, %v581, %v404
        %v583 = vshrl.u32 %v582, 4
        %v584 = vand.u32 %v582, 15
        %v585 = vsub.s32 0, %v584
        %v586 = vsel %vm580, %v585, %v584
        %vm587 = vcmp.lt.s32.totalorder %v405, 0
        %v588 = vsub.s32 0, %v405
        %v589 = vsel %vm587, %v588, %v405
        %v590 = vshrl.u32 %v589, 4
        %v591 = vand.u32 %v589, 15
        %v592 = vsub.s32 0, %v591
        %v593 = vsel %vm587, %v592, %v591
        %vm594 = vcmp.lt.s32.totalorder %v406, 0
        %v595 = vsub.s32 0, %v406
        %v596 = vsel %vm594, %v595, %v406
        %v597 = vshrl.u32 %v596, 4
        %v598 = vand.u32 %v596, 15
        %v599 = vsub.s32 0, %v598
        %v600 = vsel %vm594, %v599, %v598
        %vm601 = vcmp.lt.s32.totalorder %v407, 0
        %v602 = vsub.s32 0, %v407
        %v603 = vsel %vm601, %v602, %v407
        %v604 = vshrl.u32 %v603, 4
        %v605 = vand.u32 %v603, 15
        %v606 = vsub.s32 0, %v605
        %v607 = vsel %vm601, %v606, %v605
        %vm608 = vcmp.lt.s32.totalorder %v408, 0
        %v609 = vsub.s32 0, %v408
        %v610 = vsel %vm608, %v609, %v408
        %v611 = vshrl.u32 %v610, 4
        %v612 = vand.u32 %v610, 15
        %v613 = vsub.s32 0, %v612
        %v614 = vsel %vm608, %v613, %v612
        %vm615 = vcmp.lt.s32.totalorder %v409, 0
        %v616 = vsub.s32 0, %v409
        %v617 = vsel %vm615, %v616, %v409
        %v618 = vshrl.u32 %v617, 4
        %v619 = vand.u32 %v617, 15
        %v620 = vsub.s32 0, %v619
        %v621 = vsel %vm615, %v620, %v619
        %vm622 = vcmp.lt.s32.totalorder %v410, 0
        %v623 = vsub.s32 0, %v410
        %v624 = vsel %vm622, %v623, %v410
        %v625 = vshrl.u32 %v624, 4
        %v626 = vand.u32 %v624, 15
        %v627 = vsub.s32 0, %v626
        %v628 = vsel %vm622, %v627, %v626
        %vm629 = vcmp.lt.s32.totalorder %v411, 0
        %v630 = vsub.s32 0, %v411
        %v631 = vsel %vm629, %v630, %v411
        %v632 = vshrl.u32 %v631, 4
        %v633 = vand.u32 %v631, 15
        %v634 = vsub.s32 0, %v633
        %v635 = vsel %vm629, %v634, %v633
        %vm636 = vcmp.ne.s32.totalorder %v418, 0
        %vm637 = vcmp.ne.s32.totalorder %v425, 0
        %vm638 = vcmp.ne.s32.totalorder %v432, 0
        %vm639 = vcmp.ne.s32.totalorder %v439, 0
        %vm640 = vcmp.ne.s32.totalorder %v446, 0
        %vm641 = vcmp.ne.s32.totalorder %v453, 0
        %vm642 = vcmp.ne.s32.totalorder %v460, 0
        %vm643 = vcmp.ne.s32.totalorder %v467, 0
        %vm644 = vcmp.ne.s32.totalorder %v474, 0
        %vm645 = vcmp.ne.s32.totalorder %v481, 0
        %vm646 = vcmp.ne.s32.totalorder %v488, 0
        %vm647 = vcmp.ne.s32.totalorder %v495, 0
        %vm648 = vcmp.ne.s32.totalorder %v502, 0
        %vm649 = vcmp.ne.s32.totalorder %v509, 0
        %vm650 = vcmp.ne.s32.totalorder %v516, 0
        %vm651 = vcmp.ne.s32.totalorder %v523, 0
        %vm652 = vcmp.ne.s32.totalorder %v530, 0
        %vm653 = vcmp.ne.s32.totalorder %v537, 0
        %vm654 = vcmp.ne.s32.totalorder %v544, 0
        %vm655 = vcmp.ne.s32.totalorder %v551, 0
        %vm656 = vcmp.ne.s32.totalorder %v558, 0
        %vm657 = vcmp.ne.s32.totalorder %v565, 0
        %vm658 = vcmp.ne.s32.totalorder %v572, 0
        %vm659 = vcmp.ne.s32.totalorder %v579, 0
        %vm660 = vcmp.ne.s32.totalorder %v586, 0
        %vm661 = vcmp.ne.s32.totalorder %v593, 0
        %vm662 = vcmp.ne.s32.totalorder %v600, 0
        %vm663 = vcmp.ne.s32.totalorder %v607, 0
        %vm664 = vcmp.ne.s32.totalorder %v614, 0
        %vm665 = vcmp.ne.s32.totalorder %v621, 0
        %vm666 = vcmp.ne.s32.totalorder %v628, 0
        %vm667 = vcmp.ne.s32.totalorder %v635, 0
        %vm668 = vcmp.lt.s32.totalorder %v418, 0
        %vm669 = vcmp.lt.s32.totalorder %v425, 0
        %vm670 = vcmp.lt.s32.totalorder %v432, 0
        %vm671 = vcmp.lt.s32.totalorder %v439, 0
        %vm672 = vcmp.lt.s32.totalorder %v446, 0
        %vm673 = vcmp.lt.s32.totalorder %v453, 0
        %vm674 = vcmp.lt.s32.totalorder %v460, 0
        %vm675 = vcmp.lt.s32.totalorder %v467, 0
        %vm676 = vcmp.lt.s32.totalorder %v474, 0
        %vm677 = vcmp.lt.s32.totalorder %v481, 0
        %vm678 = vcmp.lt.s32.totalorder %v488, 0
        %vm679 = vcmp.lt.s32.totalorder %v495, 0
        %vm680 = vcmp.lt.s32.totalorder %v502, 0
        %vm681 = vcmp.lt.s32.totalorder %v509, 0
        %vm682 = vcmp.lt.s32.totalorder %v516, 0
        %vm683 = vcmp.lt.s32.totalorder %v523, 0
        %vm684 = vcmp.lt.s32.totalorder %v530, 0
        %vm685 = vcmp.lt.s32.totalorder %v537, 0
        %vm686 = vcmp.lt.s32.totalorder %v544, 0
        %vm687 = vcmp.lt.s32.totalorder %v551, 0
        %vm688 = vcmp.lt.s32.totalorder %v558, 0
        %vm689 = vcmp.lt.s32.totalorder %v565, 0
        %vm690 = vcmp.lt.s32.totalorder %v572, 0
        %vm691 = vcmp.lt.s32.totalorder %v579, 0
        %vm692 = vcmp.lt.s32.totalorder %v586, 0
        %vm693 = vcmp.lt.s32.totalorder %v593, 0
        %vm694 = vcmp.lt.s32.totalorder %v600, 0
        %vm695 = vcmp.lt.s32.totalorder %v607, 0
        %vm696 = vcmp.lt.s32.totalorder %v614, 0
        %vm697 = vcmp.lt.s32.totalorder %v621, 0
        %vm698 = vcmp.lt.s32.totalorder %v628, 0
        %vm699 = vcmp.lt.s32.totalorder %v635, 0
        %vm700 = vmand %vm668, %vm636
        %vm701 = vmand %vm669, %vm637
        %vm702 = vmand %vm670, %vm638
        %vm703 = vmand %vm671, %vm639
        %vm704 = vmand %vm672, %vm640
        %vm705 = vmand %vm673, %vm641
        %vm706 = vmand %vm674, %vm642
        %vm707 = vmand %vm675, %vm643
        %vm708 = vmand %vm676, %vm644
        %vm709 = vmand %vm677, %vm645
        %vm710 = vmand %vm678, %vm646
        %vm711 = vmand %vm679, %vm647
        %vm712 = vmand %vm680, %vm648
        %vm713 = vmand %vm681, %vm649
        %vm714 = vmand %vm682, %vm650
        %vm715 = vmand %vm683, %vm651
        %vm716 = vmand %vm684, %vm652
        %vm717 = vmand %vm685, %vm653
        %vm718 = vmand %vm686, %vm654
        %vm719 = vmand %vm687, %vm655
        %vm720 = vmand %vm688, %vm656
        %vm721 = vmand %vm689, %vm657
        %vm722 = vmand %vm690, %vm658
        %vm723 = vmand %vm691, %vm659
        %vm724 = vmand %vm692, %vm660
        %vm725 = vmand %vm693, %vm661
        %vm726 = vmand %vm694, %vm662
        %vm727 = vmand %vm695, %vm663
        %vm728 = vmand %vm696, %vm664
        %vm729 = vmand %vm697, %vm665
        %vm730 = vmand %vm698, %vm666
        %vm731 = vmand %vm699, %vm667
        %v732 = vadd.s32 %v418, 16
        %v733 = vadd.s32 %v425, 16
        %v734 = vadd.s32 %v432, 16
        %v735 = vadd.s32 %v439, 16
        %v736 = vadd.s32 %v446, 16
        %v737 = vadd.s32 %v453, 16
        %v738 = vadd.s32 %v460, 16
        %v739 = vadd.s32 %v467, 16
        %v740 = vadd.s32 %v474, 16
        %v741 = vadd.s32 %v481, 16
        %v742 = vadd.s32 %v488, 16
        %v743 = vadd.s32 %v495, 16
        %v744 = vadd.s32 %v502, 16
        %v745 = vadd.s32 %v509, 16
        %v746 = vadd.s32 %v516, 16
        %v747 = vadd.s32 %v523, 16
        %v748 = vadd.s32 %v530, 16
        %v749 = vadd.s32 %v537, 16
        %v750 = vadd.s32 %v544, 16
        %v751 = vadd.s32 %v551, 16
        %v752 = vadd.s32 %v558, 16
        %v753 = vadd.s32 %v565, 16
        %v754 = vadd.s32 %v572, 16
        %v755 = vadd.s32 %v579, 16
        %v756 = vadd.s32 %v586, 16
        %v757 = vadd.s32 %v593, 16
        %v758 = vadd.s32 %v600, 16
        %v759 = vadd.s32 %v607, 16
        %v760 = vadd.s32 %v614, 16
        %v761 = vadd.s32 %v621, 16
        %v762 = vadd.s32 %v628, 16
        %v763 = vadd.s32 %v635, 16
        %v764 = vsel %vm700, %v732, %v418
        %v765 = vsel %vm701, %v733, %v425
        %v766 = vsel %vm702, %v734, %v432
        %v767 = vsel %vm703, %v735, %v439
        %v768 = vsel %vm704, %v736, %v446
        %v769 = vsel %vm705, %v737, %v453
        %v770 = vsel %vm706, %v738, %v460
        %v771 = vsel %vm707, %v739, %v467
        %v772 = vsel %vm708, %v740, %v474
        %v773 = vsel %vm709, %v741, %v481
        %v774 = vsel %vm710, %v742, %v488
        %v775 = vsel %vm711, %v743, %v495
        %v776 = vsel %vm712, %v744, %v502
        %v777 = vsel %vm713, %v745, %v509
        %v778 = vsel %vm714, %v746, %v516
        %v779 = vsel %vm715, %v747, %v523
        %v780 = vsel %vm716, %v748, %v530
        %v781 = vsel %vm717, %v749, %v537
        %v782 = vsel %vm718, %v750, %v544
        %v783 = vsel %vm719, %v751, %v551
        %v784 = vsel %vm720, %v752, %v558
        %v785 = vsel %vm721, %v753, %v565
        %v786 = vsel %vm722, %v754, %v572
        %v787 = vsel %vm723, %v755, %v579
        %v788 = vsel %vm724, %v756, %v586
        %v789 = vsel %vm725, %v757, %v593
        %v790 = vsel %vm726, %v758, %v600
        %v791 = vsel %vm727, %v759, %v607
        %v792 = vsel %vm728, %v760, %v614
        %v793 = vsel %vm729, %v761, %v621
        %v794 = vsel %vm730, %v762, %v628
        %v795 = vsel %vm731, %v763, %v635
        %vm796 = vcmp.ne.s32.totalorder %v764, 0
        %vm797 = vcmp.ne.s32.totalorder %v765, 0
        %vm798 = vcmp.ne.s32.totalorder %v766, 0
        %vm799 = vcmp.ne.s32.totalorder %v767, 0
        %vm800 = vcmp.ne.s32.totalorder %v768, 0
        %vm801 = vcmp.ne.s32.totalorder %v769, 0
        %vm802 = vcmp.ne.s32.totalorder %v770, 0
        %vm803 = vcmp.ne.s32.totalorder %v771, 0
        %vm804 = vcmp.ne.s32.totalorder %v772, 0
        %vm805 = vcmp.ne.s32.totalorder %v773, 0
        %vm806 = vcmp.ne.s32.totalorder %v774, 0
        %vm807 = vcmp.ne.s32.totalorder %v775, 0
        %vm808 = vcmp.ne.s32.totalorder %v776, 0
        %vm809 = vcmp.ne.s32.totalorder %v777, 0
        %vm810 = vcmp.ne.s32.totalorder %v778, 0
        %vm811 = vcmp.ne.s32.totalorder %v779, 0
        %vm812 = vcmp.ne.s32.totalorder %v780, 0
        %vm813 = vcmp.ne.s32.totalorder %v781, 0
        %vm814 = vcmp.ne.s32.totalorder %v782, 0
        %vm815 = vcmp.ne.s32.totalorder %v783, 0
        %vm816 = vcmp.ne.s32.totalorder %v784, 0
        %vm817 = vcmp.ne.s32.totalorder %v785, 0
        %vm818 = vcmp.ne.s32.totalorder %v786, 0
        %vm819 = vcmp.ne.s32.totalorder %v787, 0
        %vm820 = vcmp.ne.s32.totalorder %v788, 0
        %vm821 = vcmp.ne.s32.totalorder %v789, 0
        %vm822 = vcmp.ne.s32.totalorder %v790, 0
        %vm823 = vcmp.ne.s32.totalorder %v791, 0
        %vm824 = vcmp.ne.s32.totalorder %v792, 0
        %vm825 = vcmp.ne.s32.totalorder %v793, 0
        %vm826 = vcmp.ne.s32.totalorder %v794, 0
        %vm827 = vcmp.ne.s32.totalorder %v795, 0
        %vm828 = vcmp.ne.s32.totalorder %v764, 15
        %vm829 = vcmp.ne.s32.totalorder %v765, 15
        %vm830 = vcmp.ne.s32.totalorder %v766, 15
        %vm831 = vcmp.ne.s32.totalorder %v767, 15
        %vm832 = vcmp.ne.s32.totalorder %v768, 15
        %vm833 = vcmp.ne.s32.totalorder %v769, 15
        %vm834 = vcmp.ne.s32.totalorder %v770, 15
        %vm835 = vcmp.ne.s32.totalorder %v771, 15
        %vm836 = vcmp.ne.s32.totalorder %v772, 15
        %vm837 = vcmp.ne.s32.totalorder %v773, 15
        %vm838 = vcmp.ne.s32.totalorder %v774, 15
        %vm839 = vcmp.ne.s32.totalorder %v775, 15
        %vm840 = vcmp.ne.s32.totalorder %v776, 15
        %vm841 = vcmp.ne.s32.totalorder %v777, 15
        %vm842 = vcmp.ne.s32.totalorder %v778, 15
        %vm843 = vcmp.ne.s32.totalorder %v779, 15
        %vm844 = vcmp.ne.s32.totalorder %v780, 15
        %vm845 = vcmp.ne.s32.totalorder %v781, 15
        %vm846 = vcmp.ne.s32.totalorder %v782, 15
        %vm847 = vcmp.ne.s32.totalorder %v783, 15
        %vm848 = vcmp.ne.s32.totalorder %v784, 15
        %vm849 = vcmp.ne.s32.totalorder %v785, 15
        %vm850 = vcmp.ne.s32.totalorder %v786, 15
        %vm851 = vcmp.ne.s32.totalorder %v787, 15
        %vm852 = vcmp.ne.s32.totalorder %v788, 15
        %vm853 = vcmp.ne.s32.totalorder %v789, 15
        %vm854 = vcmp.ne.s32.totalorder %v790, 15
        %vm855 = vcmp.ne.s32.totalorder %v791, 15
        %vm856 = vcmp.ne.s32.totalorder %v792, 15
        %vm857 = vcmp.ne.s32.totalorder %v793, 15
        %vm858 = vcmp.ne.s32.totalorder %v794, 15
        %vm859 = vcmp.ne.s32.totalorder %v795, 15
        %v860 = vld [vmem:[%s323] sm:$0xff]
        %v861 = vld [vmem:[%s323 + $0x8] sm:$0xff]
        %v862 = vld [vmem:[%s323 + $0x10] sm:$0xff]
        %v863 = vld [vmem:[%s323 + $0x18] sm:$0xff]
        %v864 = vld [vmem:[%s323 + $0x20] sm:$0xff]
        %v865 = vld [vmem:[%s323 + $0x28] sm:$0xff]
        %v866 = vld [vmem:[%s323 + $0x30] sm:$0xff]
        %v867 = vld [vmem:[%s323 + $0x38] sm:$0xff]
        %v868 = vld [vmem:[%s323 + $0x40] sm:$0xff]
        %v869 = vld [vmem:[%s323 + $0x48] sm:$0xff]
        %v870 = vld [vmem:[%s323 + $0x50] sm:$0xff]
        %v871 = vld [vmem:[%s323 + $0x58] sm:$0xff]
        %v872 = vld [vmem:[%s323 + $0x60] sm:$0xff]
        %v873 = vld [vmem:[%s323 + $0x68] sm:$0xff]
        %v874 = vld [vmem:[%s323 + $0x70] sm:$0xff]
        %v875 = vld [vmem:[%s323 + $0x78] sm:$0xff]
        %v876 = vld [vmem:[%s323 + $0x80] sm:$0xff]
        %v877 = vld [vmem:[%s323 + $0x88] sm:$0xff]
        %v878 = vld [vmem:[%s323 + $0x90] sm:$0xff]
        %v879 = vld [vmem:[%s323 + $0x98] sm:$0xff]
        %v880 = vld [vmem:[%s323 + $0xa0] sm:$0xff]
        %v881 = vld [vmem:[%s323 + $0xa8] sm:$0xff]
        %v882 = vld [vmem:[%s323 + $0xb0] sm:$0xff]
        %v883 = vld [vmem:[%s323 + $0xb8] sm:$0xff]
        %v884 = vld [vmem:[%s323 + $0xc0] sm:$0xff]
        %v885 = vld [vmem:[%s323 + $0xc8] sm:$0xff]
        %v886 = vld [vmem:[%s323 + $0xd0] sm:$0xff]
        %v887 = vld [vmem:[%s323 + $0xd8] sm:$0xff]
        %v888 = vld [vmem:[%s323 + $0xe0] sm:$0xff]
        %v889 = vld [vmem:[%s323 + $0xe8] sm:$0xff]
        %v890 = vld [vmem:[%s323 + $0xf0] sm:$0xff]
        %v891 = vld [vmem:[%s323 + $0xf8] sm:$0xff]
        %892 = vst [vmem:[#allocation2] sm:$0xff] 0
        %893 = vst [vmem:[#allocation2 + $0x8] sm:$0xff] 0
        %894 = vst [vmem:[#allocation2 + $0x10] sm:$0xff] 0
        %895 = vst [vmem:[#allocation2 + $0x198] sm:$0xff] 0
        %896 = vst [vmem:[#allocation2 + $0x1a0] sm:$0xff] 0
        %897 = vst [vmem:[#allocation2 + $0x1a8] sm:$0xff] 0
        %v898 = vrot.slane %v860, 7
        %v899 = vrot.slane %v861, 7
        %v900 = vrot.slane %v862, 7
        %v901 = vrot.slane %v863, 7
        %v902 = vrot.slane %v864, 7
        %v903 = vrot.slane %v865, 7
        %v904 = vrot.slane %v866, 7
        %v905 = vrot.slane %v867, 7
        %v906 = vrot.slane %v868, 7
        %v907 = vrot.slane %v869, 7
        %v908 = vrot.slane %v870, 7
        %v909 = vrot.slane %v871, 7
        %v910 = vrot.slane %v872, 7
        %v911 = vrot.slane %v873, 7
        %v912 = vrot.slane %v874, 7
        %v913 = vrot.slane %v875, 7
        %v914 = vrot.slane %v876, 7
        %v915 = vrot.slane %v877, 7
        %v916 = vrot.slane %v878, 7
        %v917 = vrot.slane %v879, 7
        %v918 = vrot.slane %v880, 7
        %v919 = vrot.slane %v881, 7
        %v920 = vrot.slane %v882, 7
        %v921 = vrot.slane %v883, 7
        %v922 = vrot.slane %v884, 7
        %v923 = vrot.slane %v885, 7
        %v924 = vrot.slane %v886, 7
        %v925 = vrot.slane %v887, 7
        %v926 = vrot.slane %v888, 7
        %v927 = vrot.slane %v889, 7
        %v928 = vrot.slane %v890, 7
        %v929 = vrot.slane %v891, 7
        %vm930 = vcmp.lt.s32.totalorder %v380, 1
        %v931 = vsel %vm930, %v928, %v929
        %v932 = vsel %vm930, %v927, %v928
        %v933 = vsel %vm930, %v926, %v927
        %v934 = vsel %vm930, %v925, %v926
        %v935 = vsel %vm930, %v924, %v925
        %v936 = vsel %vm930, %v923, %v924
        %v937 = vsel %vm930, %v922, %v923
        %v938 = vsel %vm930, %v921, %v922
        %v939 = vsel %vm930, %v920, %v921
        %v940 = vsel %vm930, %v919, %v920
        %v941 = vsel %vm930, %v918, %v919
        %v942 = vsel %vm930, %v917, %v918
        %v943 = vsel %vm930, %v916, %v917
        %v944 = vsel %vm930, %v915, %v916
        %v945 = vsel %vm930, %v914, %v915
        %v946 = vsel %vm930, %v913, %v914
        %v947 = vsel %vm930, %v912, %v913
        %v948 = vsel %vm930, %v911, %v912
        %v949 = vsel %vm930, %v910, %v911
        %v950 = vsel %vm930, %v909, %v910
        %v951 = vsel %vm930, %v908, %v909
        %v952 = vsel %vm930, %v907, %v908
        %v953 = vsel %vm930, %v906, %v907
        %v954 = vsel %vm930, %v905, %v906
        %v955 = vsel %vm930, %v904, %v905
        %v956 = vsel %vm930, %v903, %v904
        %v957 = vsel %vm930, %v902, %v903
        %v958 = vsel %vm930, %v901, %v902
        %v959 = vsel %vm930, %v900, %v901
        %v960 = vsel %vm930, %v899, %v900
        %v961 = vsel %vm930, %v898, %v899
        %v962 = vsel %vm930, %v929, %v898
        %v963 = vsel %vm796, 1, 0
        %v964 = vsel %vm797, 1, 0
        %v965 = vsel %vm798, 1, 0
        %v966 = vsel %vm799, 1, 0
        %v967 = vsel %vm800, 1, 0
        %v968 = vsel %vm801, 1, 0
        %v969 = vsel %vm802, 1, 0
        %v970 = vsel %vm803, 1, 0
        %v971 = vsel %vm804, 1, 0
        %v972 = vsel %vm805, 1, 0
        %v973 = vsel %vm806, 1, 0
        %v974 = vsel %vm807, 1, 0
        %v975 = vsel %vm808, 1, 0
        %v976 = vsel %vm809, 1, 0
        %v977 = vsel %vm810, 1, 0
        %v978 = vsel %vm811, 1, 0
        %v979 = vsel %vm812, 1, 0
        %v980 = vsel %vm813, 1, 0
        %v981 = vsel %vm814, 1, 0
        %v982 = vsel %vm815, 1, 0
        %v983 = vsel %vm816, 1, 0
        %v984 = vsel %vm817, 1, 0
        %v985 = vsel %vm818, 1, 0
        %v986 = vsel %vm819, 1, 0
        %v987 = vsel %vm820, 1, 0
        %v988 = vsel %vm821, 1, 0
        %v989 = vsel %vm822, 1, 0
        %v990 = vsel %vm823, 1, 0
        %v991 = vsel %vm824, 1, 0
        %v992 = vsel %vm825, 1, 0
        %v993 = vsel %vm826, 1, 0
        %v994 = vsel %vm827, 1, 0
        %vm995 = vcmp.eq.s32.totalorder %v963, 1
        %vm996 = vcmp.eq.s32.totalorder %v964, 1
        %vm997 = vcmp.eq.s32.totalorder %v965, 1
        %vm998 = vcmp.eq.s32.totalorder %v966, 1
        %vm999 = vcmp.eq.s32.totalorder %v967, 1
        %vm1000 = vcmp.eq.s32.totalorder %v968, 1
        %vm1001 = vcmp.eq.s32.totalorder %v969, 1
        %vm1002 = vcmp.eq.s32.totalorder %v970, 1
        %vm1003 = vcmp.eq.s32.totalorder %v971, 1
        %vm1004 = vcmp.eq.s32.totalorder %v972, 1
        %vm1005 = vcmp.eq.s32.totalorder %v973, 1
        %vm1006 = vcmp.eq.s32.totalorder %v974, 1
        %vm1007 = vcmp.eq.s32.totalorder %v975, 1
        %vm1008 = vcmp.eq.s32.totalorder %v976, 1
        %vm1009 = vcmp.eq.s32.totalorder %v977, 1
        %vm1010 = vcmp.eq.s32.totalorder %v978, 1
        %vm1011 = vcmp.eq.s32.totalorder %v979, 1
        %vm1012 = vcmp.eq.s32.totalorder %v980, 1
        %vm1013 = vcmp.eq.s32.totalorder %v981, 1
        %vm1014 = vcmp.eq.s32.totalorder %v982, 1
        %vm1015 = vcmp.eq.s32.totalorder %v983, 1
        %vm1016 = vcmp.eq.s32.totalorder %v984, 1
        %vm1017 = vcmp.eq.s32.totalorder %v985, 1
        %vm1018 = vcmp.eq.s32.totalorder %v986, 1
        %vm1019 = vcmp.eq.s32.totalorder %v987, 1
        %vm1020 = vcmp.eq.s32.totalorder %v988, 1
        %vm1021 = vcmp.eq.s32.totalorder %v989, 1
        %vm1022 = vcmp.eq.s32.totalorder %v990, 1
        %vm1023 = vcmp.eq.s32.totalorder %v991, 1
        %vm1024 = vcmp.eq.s32.totalorder %v992, 1
        %vm1025 = vcmp.eq.s32.totalorder %v993, 1
        %vm1026 = vcmp.eq.s32.totalorder %v994, 1
        %v1027 = vsel %vm995, %v962, 0.0
        %v1028 = vsel %vm996, %v961, 0.0
        %v1029 = vsel %vm997, %v960, 0.0
        %v1030 = vsel %vm998, %v959, 0.0
        %v1031 = vsel %vm999, %v958, 0.0
        %v1032 = vsel %vm1000, %v957, 0.0
        %v1033 = vsel %vm1001, %v956, 0.0
        %v1034 = vsel %vm1002, %v955, 0.0
        %v1035 = vsel %vm1003, %v954, 0.0
        %v1036 = vsel %vm1004, %v953, 0.0
        %v1037 = vsel %vm1005, %v952, 0.0
        %v1038 = vsel %vm1006, %v951, 0.0
        %v1039 = vsel %vm1007, %v950, 0.0
        %v1040 = vsel %vm1008, %v949, 0.0
        %v1041 = vsel %vm1009, %v948, 0.0
        %v1042 = vsel %vm1010, %v947, 0.0
        %v1043 = vsel %vm1011, %v946, 0.0
        %v1044 = vsel %vm1012, %v945, 0.0
        %v1045 = vsel %vm1013, %v944, 0.0
        %v1046 = vsel %vm1014, %v943, 0.0
        %v1047 = vsel %vm1015, %v942, 0.0
        %v1048 = vsel %vm1016, %v941, 0.0
        %v1049 = vsel %vm1017, %v940, 0.0
        %v1050 = vsel %vm1018, %v939, 0.0
        %v1051 = vsel %vm1019, %v938, 0.0
        %v1052 = vsel %vm1020, %v937, 0.0
        %v1053 = vsel %vm1021, %v936, 0.0
        %v1054 = vsel %vm1022, %v935, 0.0
        %v1055 = vsel %vm1023, %v934, 0.0
        %v1056 = vsel %vm1024, %v933, 0.0
        %v1057 = vsel %vm1025, %v932, 0.0
        %v1058 = vsel %vm1026, %v931, 0.0
        %v1059 = vrot.slane %v860, 1
        %v1060 = vrot.slane %v861, 1
        %v1061 = vrot.slane %v862, 1
        %v1062 = vrot.slane %v863, 1
        %v1063 = vrot.slane %v864, 1
        %v1064 = vrot.slane %v865, 1
        %v1065 = vrot.slane %v866, 1
        %v1066 = vrot.slane %v867, 1
        %v1067 = vrot.slane %v868, 1
        %v1068 = vrot.slane %v869, 1
        %v1069 = vrot.slane %v870, 1
        %v1070 = vrot.slane %v871, 1
        %v1071 = vrot.slane %v872, 1
        %v1072 = vrot.slane %v873, 1
        %v1073 = vrot.slane %v874, 1
        %v1074 = vrot.slane %v875, 1
        %v1075 = vrot.slane %v876, 1
        %v1076 = vrot.slane %v877, 1
        %v1077 = vrot.slane %v878, 1
        %v1078 = vrot.slane %v879, 1
        %v1079 = vrot.slane %v880, 1
        %v1080 = vrot.slane %v881, 1
        %v1081 = vrot.slane %v882, 1
        %v1082 = vrot.slane %v883, 1
        %v1083 = vrot.slane %v884, 1
        %v1084 = vrot.slane %v885, 1
        %v1085 = vrot.slane %v886, 1
        %v1086 = vrot.slane %v887, 1
        %v1087 = vrot.slane %v888, 1
        %v1088 = vrot.slane %v889, 1
        %v1089 = vrot.slane %v890, 1
        %v1090 = vrot.slane %v891, 1
        %vm1091 = vcmp.lt.s32.totalorder %v380, 7
        %v1092 = vsel %vm1091, %v1089, %v1090
        %v1093 = vsel %vm1091, %v1088, %v1089
        %v1094 = vsel %vm1091, %v1087, %v1088
        %v1095 = vsel %vm1091, %v1086, %v1087
        %v1096 = vsel %vm1091, %v1085, %v1086
        %v1097 = vsel %vm1091, %v1084, %v1085
        %v1098 = vsel %vm1091, %v1083, %v1084
        %v1099 = vsel %vm1091, %v1082, %v1083
        %v1100 = vsel %vm1091, %v1081, %v1082
        %v1101 = vsel %vm1091, %v1080, %v1081
        %v1102 = vsel %vm1091, %v1079, %v1080
        %v1103 = vsel %vm1091, %v1078, %v1079
        %v1104 = vsel %vm1091, %v1077, %v1078
        %v1105 = vsel %vm1091, %v1076, %v1077
        %v1106 = vsel %vm1091, %v1075, %v1076
        %v1107 = vsel %vm1091, %v1074, %v1075
        %v1108 = vsel %vm1091, %v1073, %v1074
        %v1109 = vsel %vm1091, %v1072, %v1073
        %v1110 = vsel %vm1091, %v1071, %v1072
        %v1111 = vsel %vm1091, %v1070, %v1071
        %v1112 = vsel %vm1091, %v1069, %v1070
        %v1113 = vsel %vm1091, %v1068, %v1069
        %v1114 = vsel %vm1091, %v1067, %v1068
        %v1115 = vsel %vm1091, %v1066, %v1067
        %v1116 = vsel %vm1091, %v1065, %v1066
        %v1117 = vsel %vm1091, %v1064, %v1065
        %v1118 = vsel %vm1091, %v1063, %v1064
        %v1119 = vsel %vm1091, %v1062, %v1063
        %v1120 = vsel %vm1091, %v1061, %v1062
        %v1121 = vsel %vm1091, %v1060, %v1061
        %v1122 = vsel %vm1091, %v1059, %v1060
        %v1123 = vsel %vm1091, %v1090, %v1059
        %v1124 = vsel %vm828, 1, 0
        %v1125 = vsel %vm829, 1, 0
        %v1126 = vsel %vm830, 1, 0
        %v1127 = vsel %vm831, 1, 0
        %v1128 = vsel %vm832, 1, 0
        %v1129 = vsel %vm833, 1, 0
        %v1130 = vsel %vm834, 1, 0
        %v1131 = vsel %vm835, 1, 0
        %v1132 = vsel %vm836, 1, 0
        %v1133 = vsel %vm837, 1, 0
        %v1134 = vsel %vm838, 1, 0
        %v1135 = vsel %vm839, 1, 0
        %v1136 = vsel %vm840, 1, 0
        %v1137 = vsel %vm841, 1, 0
        %v1138 = vsel %vm842, 1, 0
        %v1139 = vsel %vm843, 1, 0
        %v1140 = vsel %vm844, 1, 0
        %v1141 = vsel %vm845, 1, 0
        %v1142 = vsel %vm846, 1, 0
        %v1143 = vsel %vm847, 1, 0
        %v1144 = vsel %vm848, 1, 0
        %v1145 = vsel %vm849, 1, 0
        %v1146 = vsel %vm850, 1, 0
        %v1147 = vsel %vm851, 1, 0
        %v1148 = vsel %vm852, 1, 0
        %v1149 = vsel %vm853, 1, 0
        %v1150 = vsel %vm854, 1, 0
        %v1151 = vsel %vm855, 1, 0
        %v1152 = vsel %vm856, 1, 0
        %v1153 = vsel %vm857, 1, 0
        %v1154 = vsel %vm858, 1, 0
        %v1155 = vsel %vm859, 1, 0
        %vm1156 = vcmp.eq.s32.totalorder %v1124, 1
        %vm1157 = vcmp.eq.s32.totalorder %v1125, 1
        %vm1158 = vcmp.eq.s32.totalorder %v1126, 1
        %vm1159 = vcmp.eq.s32.totalorder %v1127, 1
        %vm1160 = vcmp.eq.s32.totalorder %v1128, 1
        %vm1161 = vcmp.eq.s32.totalorder %v1129, 1
        %vm1162 = vcmp.eq.s32.totalorder %v1130, 1
        %vm1163 = vcmp.eq.s32.totalorder %v1131, 1
        %vm1164 = vcmp.eq.s32.totalorder %v1132, 1
        %vm1165 = vcmp.eq.s32.totalorder %v1133, 1
        %vm1166 = vcmp.eq.s32.totalorder %v1134, 1
        %vm1167 = vcmp.eq.s32.totalorder %v1135, 1
        %vm1168 = vcmp.eq.s32.totalorder %v1136, 1
        %vm1169 = vcmp.eq.s32.totalorder %v1137, 1
        %vm1170 = vcmp.eq.s32.totalorder %v1138, 1
        %vm1171 = vcmp.eq.s32.totalorder %v1139, 1
        %vm1172 = vcmp.eq.s32.totalorder %v1140, 1
        %vm1173 = vcmp.eq.s32.totalorder %v1141, 1
        %vm1174 = vcmp.eq.s32.totalorder %v1142, 1
        %vm1175 = vcmp.eq.s32.totalorder %v1143, 1
        %vm1176 = vcmp.eq.s32.totalorder %v1144, 1
        %vm1177 = vcmp.eq.s32.totalorder %v1145, 1
        %vm1178 = vcmp.eq.s32.totalorder %v1146, 1
        %vm1179 = vcmp.eq.s32.totalorder %v1147, 1
        %vm1180 = vcmp.eq.s32.totalorder %v1148, 1
        %vm1181 = vcmp.eq.s32.totalorder %v1149, 1
        %vm1182 = vcmp.eq.s32.totalorder %v1150, 1
        %vm1183 = vcmp.eq.s32.totalorder %v1151, 1
        %vm1184 = vcmp.eq.s32.totalorder %v1152, 1
        %vm1185 = vcmp.eq.s32.totalorder %v1153, 1
        %vm1186 = vcmp.eq.s32.totalorder %v1154, 1
        %vm1187 = vcmp.eq.s32.totalorder %v1155, 1
        %v1188 = vsel %vm1156, %v1122, 0.0
        %v1189 = vsel %vm1157, %v1121, 0.0
        %v1190 = vsel %vm1158, %v1120, 0.0
        %v1191 = vsel %vm1159, %v1119, 0.0
        %v1192 = vsel %vm1160, %v1118, 0.0
        %v1193 = vsel %vm1161, %v1117, 0.0
        %v1194 = vsel %vm1162, %v1116, 0.0
        %v1195 = vsel %vm1163, %v1115, 0.0
        %v1196 = vsel %vm1164, %v1114, 0.0
        %v1197 = vsel %vm1165, %v1113, 0.0
        %v1198 = vsel %vm1166, %v1112, 0.0
        %v1199 = vsel %vm1167, %v1111, 0.0
        %v1200 = vsel %vm1168, %v1110, 0.0
        %v1201 = vsel %vm1169, %v1109, 0.0
        %v1202 = vsel %vm1170, %v1108, 0.0
        %v1203 = vsel %vm1171, %v1107, 0.0
        %v1204 = vsel %vm1172, %v1106, 0.0
        %v1205 = vsel %vm1173, %v1105, 0.0
        %v1206 = vsel %vm1174, %v1104, 0.0
        %v1207 = vsel %vm1175, %v1103, 0.0
        %v1208 = vsel %vm1176, %v1102, 0.0
        %v1209 = vsel %vm1177, %v1101, 0.0
        %v1210 = vsel %vm1178, %v1100, 0.0
        %v1211 = vsel %vm1179, %v1099, 0.0
        %v1212 = vsel %vm1180, %v1098, 0.0
        %v1213 = vsel %vm1181, %v1097, 0.0
        %v1214 = vsel %vm1182, %v1096, 0.0
        %v1215 = vsel %vm1183, %v1095, 0.0
        %v1216 = vsel %vm1184, %v1094, 0.0
        %v1217 = vsel %vm1185, %v1093, 0.0
        %v1218 = vsel %vm1186, %v1092, 0.0
        %v1219 = vsel %vm1187, %v1123, 0.0
        %v1220 = vpack.c.bf16 %v1028, %v1027
        %v1221 = vpack.c.bf16 %v1030, %v1029
        %v1222 = vpack.c.bf16 %v1032, %v1031
        %v1223 = vpack.c.bf16 %v1034, %v1033
        %v1224 = vpack.c.bf16 %v1036, %v1035
        %v1225 = vpack.c.bf16 %v1038, %v1037
        %v1226 = vpack.c.bf16 %v1040, %v1039
        %v1227 = vpack.c.bf16 %v1042, %v1041
        %v1228 = vpack.c.bf16 %v1044, %v1043
        %v1229 = vpack.c.bf16 %v1046, %v1045
        %v1230 = vpack.c.bf16 %v1048, %v1047
        %v1231 = vpack.c.bf16 %v1050, %v1049
        %v1232 = vpack.c.bf16 %v1052, %v1051
        %v1233 = vpack.c.bf16 %v1054, %v1053
        %v1234 = vpack.c.bf16 %v1056, %v1055
        %v1235 = vpack.c.bf16 %v1058, %v1057
        %1236 = vst [vmem:[#allocation2 + $0x18] sm:$0xff] %v1220
        %1237 = vst [vmem:[#allocation2 + $0x30] sm:$0xff] %v1221
        %1238 = vst [vmem:[#allocation2 + $0x48] sm:$0xff] %v1222
        %1239 = vst [vmem:[#allocation2 + $0x60] sm:$0xff] %v1223
        %1240 = vst [vmem:[#allocation2 + $0x78] sm:$0xff] %v1224
        %1241 = vst [vmem:[#allocation2 + $0x90] sm:$0xff] %v1225
        %1242 = vst [vmem:[#allocation2 + $0xa8] sm:$0xff] %v1226
        %1243 = vst [vmem:[#allocation2 + $0xc0] sm:$0xff] %v1227
        %1244 = vst [vmem:[#allocation2 + $0xd8] sm:$0xff] %v1228
        %1245 = vst [vmem:[#allocation2 + $0xf0] sm:$0xff] %v1229
        %1246 = vst [vmem:[#allocation2 + $0x108] sm:$0xff] %v1230
        %1247 = vst [vmem:[#allocation2 + $0x120] sm:$0xff] %v1231
        %1248 = vst [vmem:[#allocation2 + $0x138] sm:$0xff] %v1232
        %1249 = vst [vmem:[#allocation2 + $0x150] sm:$0xff] %v1233
        %1250 = vst [vmem:[#allocation2 + $0x168] sm:$0xff] %v1234
        %1251 = vst [vmem:[#allocation2 + $0x180] sm:$0xff] %v1235
        %v1252 = vpack.c.bf16 %v861, %v860
        %v1253 = vpack.c.bf16 %v863, %v862
        %v1254 = vpack.c.bf16 %v865, %v864
        %v1255 = vpack.c.bf16 %v867, %v866
        %v1256 = vpack.c.bf16 %v869, %v868
        %v1257 = vpack.c.bf16 %v871, %v870
        %v1258 = vpack.c.bf16 %v873, %v872
        %v1259 = vpack.c.bf16 %v875, %v874
        %v1260 = vpack.c.bf16 %v877, %v876
        %v1261 = vpack.c.bf16 %v879, %v878
        %v1262 = vpack.c.bf16 %v881, %v880
        %v1263 = vpack.c.bf16 %v883, %v882
        %v1264 = vpack.c.bf16 %v885, %v884
        %v1265 = vpack.c.bf16 %v887, %v886
        %v1266 = vpack.c.bf16 %v889, %v888
        %v1267 = vpack.c.bf16 %v891, %v890
        %1268 = vst [vmem:[#allocation2 + $0x20] sm:$0xff] %v1252
        %1269 = vst [vmem:[#allocation2 + $0x38] sm:$0xff] %v1253
        %1270 = vst [vmem:[#allocation2 + $0x50] sm:$0xff] %v1254
        %1271 = vst [vmem:[#allocation2 + $0x68] sm:$0xff] %v1255
        %1272 = vst [vmem:[#allocation2 + $0x80] sm:$0xff] %v1256
        %1273 = vst [vmem:[#allocation2 + $0x98] sm:$0xff] %v1257
        %1274 = vst [vmem:[#allocation2 + $0xb0] sm:$0xff] %v1258
        %1275 = vst [vmem:[#allocation2 + $0xc8] sm:$0xff] %v1259
        %1276 = vst [vmem:[#allocation2 + $0xe0] sm:$0xff] %v1260
        %1277 = vst [vmem:[#allocation2 + $0xf8] sm:$0xff] %v1261
        %1278 = vst [vmem:[#allocation2 + $0x110] sm:$0xff] %v1262
        %1279 = vst [vmem:[#allocation2 + $0x128] sm:$0xff] %v1263
        %1280 = vst [vmem:[#allocation2 + $0x140] sm:$0xff] %v1264
        %1281 = vst [vmem:[#allocation2 + $0x158] sm:$0xff] %v1265
        %1282 = vst [vmem:[#allocation2 + $0x170] sm:$0xff] %v1266
        %1283 = vst [vmem:[#allocation2 + $0x188] sm:$0xff] %v1267
        %v1284 = vpack.c.bf16 %v1189, %v1188
        %v1285 = vpack.c.bf16 %v1191, %v1190
        %v1286 = vpack.c.bf16 %v1193, %v1192
        %v1287 = vpack.c.bf16 %v1195, %v1194
        %v1288 = vpack.c.bf16 %v1197, %v1196
        %v1289 = vpack.c.bf16 %v1199, %v1198
        %v1290 = vpack.c.bf16 %v1201, %v1200
        %v1291 = vpack.c.bf16 %v1203, %v1202
        %v1292 = vpack.c.bf16 %v1205, %v1204
        %v1293 = vpack.c.bf16 %v1207, %v1206
        %v1294 = vpack.c.bf16 %v1209, %v1208
        %v1295 = vpack.c.bf16 %v1211, %v1210
        %v1296 = vpack.c.bf16 %v1213, %v1212
        %v1297 = vpack.c.bf16 %v1215, %v1214
        %v1298 = vpack.c.bf16 %v1217, %v1216
        %v1299 = vpack.c.bf16 %v1219, %v1218
        %1300 = vst [vmem:[#allocation2 + $0x28] sm:$0xff] %v1284
        %1301 = vst [vmem:[#allocation2 + $0x40] sm:$0xff] %v1285
        %1302 = vst [vmem:[#allocation2 + $0x58] sm:$0xff] %v1286
        %1303 = vst [vmem:[#allocation2 + $0x70] sm:$0xff] %v1287
        %1304 = vst [vmem:[#allocation2 + $0x88] sm:$0xff] %v1288
        %1305 = vst [vmem:[#allocation2 + $0xa0] sm:$0xff] %v1289
        %1306 = vst [vmem:[#allocation2 + $0xb8] sm:$0xff] %v1290
        %1307 = vst [vmem:[#allocation2 + $0xd0] sm:$0xff] %v1291
        %1308 = vst [vmem:[#allocation2 + $0xe8] sm:$0xff] %v1292
        %1309 = vst [vmem:[#allocation2 + $0x100] sm:$0xff] %v1293
        %1310 = vst [vmem:[#allocation2 + $0x118] sm:$0xff] %v1294
        %1311 = vst [vmem:[#allocation2 + $0x130] sm:$0xff] %v1295
        %1312 = vst [vmem:[#allocation2 + $0x148] sm:$0xff] %v1296
        %1313 = vst [vmem:[#allocation2 + $0x160] sm:$0xff] %v1297
        %1314 = vst [vmem:[#allocation2 + $0x178] sm:$0xff] %v1298
        %1315 = vst [vmem:[#allocation2 + $0x190] sm:$0xff] %v1299
        %v1316 = vld [vmem:[#allocation9] sm:$0x1]
        %v1317 = vld [vmem:[#allocation2] sm:$0xff]
        %v1318 = vld [vmem:[#allocation2 + $0x8] sm:$0xff]
        %v1319 = vld [vmem:[#allocation2 + $0x10] sm:$0xff]
        %v1320 = vld [vmem:[#allocation2 + $0x18] sm:$0xff]
        %v1321 = vld [vmem:[#allocation2 + $0x20] sm:$0xff]
        %v1322 = vld [vmem:[#allocation2 + $0x28] sm:$0xff]
        %v1323 = vld [vmem:[#allocation2 + $0x30] sm:$0xff]
        %v1324 = vld [vmem:[#allocation2 + $0x38] sm:$0xff]
        %v1325 = vld [vmem:[#allocation2 + $0x40] sm:$0xff]
        %v1326 = vld [vmem:[#allocation2 + $0x48] sm:$0xff]
        %v1327 = vld [vmem:[#allocation2 + $0x50] sm:$0xff]
        %v1328 = vld [vmem:[#allocation2 + $0x58] sm:$0xff]
        %v1329 = vld [vmem:[#allocation2 + $0x60] sm:$0xff]
        %v1330 = vld [vmem:[#allocation2 + $0x68] sm:$0xff]
        %v1331 = vld [vmem:[#allocation2 + $0x70] sm:$0xff]
        %v1332 = vld [vmem:[#allocation2 + $0x78] sm:$0xff]
        %v1333 = vld [vmem:[#allocation2 + $0x80] sm:$0xff]
        %v1334 = vld [vmem:[#allocation2 + $0x88] sm:$0xff]
        %v1335 = vld [vmem:[#allocation2 + $0x90] sm:$0xff]
        %v1336 = vld [vmem:[#allocation2 + $0x98] sm:$0xff]
        %v1337 = vld [vmem:[#allocation2 + $0xa0] sm:$0xff]
        %v1338 = vld [vmem:[#allocation2 + $0xa8] sm:$0xff]
        %v1339 = vld [vmem:[#allocation2 + $0xb0] sm:$0xff]
        %v1340 = vld [vmem:[#allocation2 + $0xb8] sm:$0xff]
        %v1341 = vld [vmem:[#allocation2 + $0xc0] sm:$0xff]
        %v1342 = vld [vmem:[#allocation2 + $0xc8] sm:$0xff]
        %v1343 = vld [vmem:[#allocation2 + $0xd0] sm:$0xff]
        %v1344 = vld [vmem:[#allocation2 + $0xd8] sm:$0xff]
        %v1345 = vld [vmem:[#allocation2 + $0xe0] sm:$0xff]
        %v1346 = vld [vmem:[#allocation2 + $0xe8] sm:$0xff]
        %v1347 = vld [vmem:[#allocation2 + $0xf0] sm:$0xff]
        %v1348 = vld [vmem:[#allocation2 + $0xf8] sm:$0xff]
        %v1349 = vld [vmem:[#allocation2 + $0x100] sm:$0xff]
        %v1350 = vld [vmem:[#allocation2 + $0x108] sm:$0xff]
        %v1351 = vld [vmem:[#allocation2 + $0x110] sm:$0xff]
        %v1352 = vld [vmem:[#allocation2 + $0x118] sm:$0xff]
        %v1353 = vld [vmem:[#allocation2 + $0x120] sm:$0xff]
        %v1354 = vld [vmem:[#allocation2 + $0x128] sm:$0xff]
        %v1355 = vld [vmem:[#allocation2 + $0x130] sm:$0xff]
        %v1356 = vld [vmem:[#allocation2 + $0x138] sm:$0xff]
        %v1357 = vld [vmem:[#allocation2 + $0x140] sm:$0xff]
        %v1358 = vld [vmem:[#allocation2 + $0x148] sm:$0xff]
        %v1359 = vld [vmem:[#allocation2 + $0x150] sm:$0xff]
        %v1360 = vld [vmem:[#allocation2 + $0x158] sm:$0xff]
        %v1361 = vld [vmem:[#allocation2 + $0x160] sm:$0xff]
        %v1362 = vld [vmem:[#allocation2 + $0x168] sm:$0xff]
        %v1363 = vld [vmem:[#allocation2 + $0x170] sm:$0xff]
        %v1364 = vld [vmem:[#allocation2 + $0x178] sm:$0xff]
        %v1365 = vld [vmem:[#allocation7] sm:$0xf]
        %v1366 = vld [vmem:[#allocation7 + $0x4] sm:$0xf]
        %v1367 = vld [vmem:[#allocation7 + $0x8] sm:$0xf]
        %v1368 = vld [vmem:[#allocation7 + $0xc] sm:$0xf]
        %v1369 = vld [vmem:[#allocation7 + $0x10] sm:$0xf]
        %v1370 = vld [vmem:[#allocation7 + $0x14] sm:$0xf]
        %v1371 = vld [vmem:[#allocation7 + $0x18] sm:$0xf]
        %v1372 = vld [vmem:[#allocation7 + $0x1c] sm:$0xf]
        %v1373 = vld [vmem:[#allocation7 + $0x20] sm:$0xf]
        %v1374 = vld [vmem:[#allocation7 + $0x24] sm:$0xf]
        %v1375 = vld [vmem:[#allocation7 + $0x28] sm:$0xf]
        %v1376 = vld [vmem:[#allocation7 + $0x2c] sm:$0xf]
        %v1377 = vld [vmem:[#allocation7 + $0x30] sm:$0xf]
        %v1378 = vld [vmem:[#allocation7 + $0x34] sm:$0xf]
        %v1379 = vld [vmem:[#allocation7 + $0x38] sm:$0xf]
        %v1380 = vld [vmem:[#allocation7 + $0x3c] sm:$0xf]
        %v1381 = vld [vmem:[#allocation7 + $0x40] sm:$0xf]
        %v1382 = vld [vmem:[#allocation7 + $0x44] sm:$0xf]
        %v1383 = vld [vmem:[#allocation7 + $0x48] sm:$0xf]
        %v1384 = vld [vmem:[#allocation7 + $0x4c] sm:$0xf]
        %v1385 = vld [vmem:[#allocation7 + $0x50] sm:$0xf]
        %v1386 = vld [vmem:[#allocation7 + $0x54] sm:$0xf]
        %v1387 = vld [vmem:[#allocation7 + $0x58] sm:$0xf]
        %v1388 = vld [vmem:[#allocation7 + $0x5c] sm:$0xf]
        %v1389 = vld [vmem:[#allocation7 + $0x60] sm:$0xf]
        %v1390 = vld [vmem:[#allocation7 + $0x64] sm:$0xf]
        %v1391 = vld [vmem:[#allocation7 + $0x68] sm:$0xf]
        %v1392 = vld [vmem:[#allocation7 + $0x6c] sm:$0xf]
        %v1393 = vld [vmem:[#allocation7 + $0x70] sm:$0xf]
        %v1394 = vld [vmem:[#allocation7 + $0x74] sm:$0xf]
        %v1395 = vld [vmem:[#allocation7 + $0x78] sm:$0xf]
        %v1396 = vld [vmem:[#allocation7 + $0x7c] sm:$0xf]
        %v1397 = vld [vmem:[#allocation7 + $0x80] sm:$0xf]
        %v1398 = vld [vmem:[#allocation7 + $0x84] sm:$0xf]
        %v1399 = vld [vmem:[#allocation7 + $0x88] sm:$0xf]
        %v1400 = vld [vmem:[#allocation7 + $0x8c] sm:$0xf]
        %v1401 = vld [vmem:[#allocation7 + $0x90] sm:$0xf]
        %v1402 = vld [vmem:[#allocation7 + $0x94] sm:$0xf]
        %v1403 = vld [vmem:[#allocation7 + $0x98] sm:$0xf]
        %v1404 = vld [vmem:[#allocation7 + $0x9c] sm:$0xf]
        %v1405 = vld [vmem:[#allocation7 + $0xa0] sm:$0xf]
        %v1406 = vld [vmem:[#allocation7 + $0xa4] sm:$0xf]
        %v1407 = vld [vmem:[#allocation7 + $0xa8] sm:$0xf]
        %v1408 = vld [vmem:[#allocation7 + $0xac] sm:$0xf]
        %v1409 = vld [vmem:[#allocation7 + $0xb0] sm:$0xf]
        %v1410 = vld [vmem:[#allocation7 + $0xb4] sm:$0xf]
        %v1411 = vld [vmem:[#allocation7 + $0xb8] sm:$0xf]
        %v1412 = vld [vmem:[#allocation7 + $0xbc] sm:$0xf]
        %v1413 = vld [vmem:[#allocation2 + $0x180] sm:$0xff]
        %v1414 = vld [vmem:[#allocation2 + $0x188] sm:$0xff]
        %v1415 = vld [vmem:[#allocation2 + $0x190] sm:$0xff]
        %s1416 = scalar_lea.vmem [#allocation7], 192
        %v1417 = vld [vmem:[%s1416] sm:$0xf]
        %v1418 = vld [vmem:[%s1416 + $0x4] sm:$0xf]
        %v1419 = vld [vmem:[%s1416 + $0x8] sm:$0xf]
        %v1420 = vld [vmem:[%s1416 + $0xc] sm:$0xf]
        %v1421 = vld [vmem:[%s1416 + $0x10] sm:$0xf]
        %v1422 = vld [vmem:[%s1416 + $0x14] sm:$0xf]
        %v1423 = vld [vmem:[%s1416 + $0x18] sm:$0xf]
        %v1424 = vld [vmem:[%s1416 + $0x1c] sm:$0xf]
        %v1425 = vld [vmem:[%s1416 + $0x20] sm:$0xf]
        %v1426 = vld [vmem:[%s1416 + $0x24] sm:$0xf]
        %v1427 = vld [vmem:[%s1416 + $0x28] sm:$0xf]
        %v1428 = vld [vmem:[%s1416 + $0x2c] sm:$0xf]
        %v1429 = vld [vmem:[%s1416 + $0x30] sm:$0xf]
        %v1430 = vld [vmem:[%s1416 + $0x34] sm:$0xf]
        %v1431 = vld [vmem:[%s1416 + $0x38] sm:$0xf]
        %v1432 = vld [vmem:[%s1416 + $0x3c] sm:$0xf]
        %v1433 = vld [vmem:[%s1416 + $0x40] sm:$0xf]
        %v1434 = vld [vmem:[%s1416 + $0x44] sm:$0xf]
        %v1435 = vld [vmem:[%s1416 + $0x48] sm:$0xf]
        %v1436 = vld [vmem:[%s1416 + $0x4c] sm:$0xf]
        %v1437 = vld [vmem:[%s1416 + $0x50] sm:$0xf]
        %v1438 = vld [vmem:[%s1416 + $0x54] sm:$0xf]
        %v1439 = vld [vmem:[%s1416 + $0x58] sm:$0xf]
        %v1440 = vld [vmem:[%s1416 + $0x5c] sm:$0xf]
        %v1441 = vld [vmem:[%s1416 + $0x60] sm:$0xf]
        %v1442 = vld [vmem:[%s1416 + $0x64] sm:$0xf]
        %v1443 = vld [vmem:[%s1416 + $0x68] sm:$0xf]
        %v1444 = vld [vmem:[%s1416 + $0x6c] sm:$0xf]
        %v1445 = vld [vmem:[%s1416 + $0x70] sm:$0xf]
        %v1446 = vld [vmem:[%s1416 + $0x74] sm:$0xf]
        %v1447 = vld [vmem:[%s1416 + $0x78] sm:$0xf]
        %v1448 = vld [vmem:[%s1416 + $0x7c] sm:$0xf]
        %v1449 = vld [vmem:[%s1416 + $0x80] sm:$0xf]
        %v1450 = vld [vmem:[%s1416 + $0x84] sm:$0xf]
        %v1451 = vld [vmem:[%s1416 + $0x88] sm:$0xf]
        %v1452 = vld [vmem:[%s1416 + $0x8c] sm:$0xf]
        %v1453 = vld [vmem:[%s1416 + $0x90] sm:$0xf]
        %v1454 = vld [vmem:[%s1416 + $0x94] sm:$0xf]
        %v1455 = vld [vmem:[%s1416 + $0x98] sm:$0xf]
        %v1456 = vld [vmem:[%s1416 + $0x9c] sm:$0xf]
        %v1457 = vld [vmem:[%s1416 + $0xa0] sm:$0xf]
        %v1458 = vld [vmem:[%s1416 + $0xa4] sm:$0xf]
        %v1459 = vld [vmem:[%s1416 + $0xa8] sm:$0xf]
        %v1460 = vld [vmem:[%s1416 + $0xac] sm:$0xf]
        %v1461 = vld [vmem:[%s1416 + $0xb0] sm:$0xf]
        %v1462 = vld [vmem:[%s1416 + $0xb4] sm:$0xf]
        %v1463 = vld [vmem:[%s1416 + $0xb8] sm:$0xf]
        %v1464 = vld [vmem:[%s1416 + $0xbc] sm:$0xf]
        %v1513 = vunpack.c.l.b16 %v1417
        %v1514 = vunpack.c.l.b16 %v1418
        %v1515 = vunpack.c.l.b16 %v1419
        %v1516 = vunpack.c.l.b16 %v1420
        %v1517 = vunpack.c.l.b16 %v1421
        %v1518 = vunpack.c.l.b16 %v1422
        %v1519 = vunpack.c.l.b16 %v1423
        %v1520 = vunpack.c.l.b16 %v1424
        %v1521 = vunpack.c.l.b16 %v1425
        %v1522 = vunpack.c.l.b16 %v1426
        %v1523 = vunpack.c.l.b16 %v1427
        %v1524 = vunpack.c.l.b16 %v1428
        %v1525 = vunpack.c.l.b16 %v1429
        %v1526 = vunpack.c.l.b16 %v1430
        %v1527 = vunpack.c.l.b16 %v1431
        %v1528 = vunpack.c.l.b16 %v1432
        %v1529 = vunpack.c.l.b16 %v1433
        %v1530 = vunpack.c.l.b16 %v1434
        %v1531 = vunpack.c.l.b16 %v1435
        %v1532 = vunpack.c.l.b16 %v1436
        %v1533 = vunpack.c.l.b16 %v1437
        %v1534 = vunpack.c.l.b16 %v1438
        %v1535 = vunpack.c.l.b16 %v1439
        %v1536 = vunpack.c.l.b16 %v1440
        %v1537 = vunpack.c.l.b16 %v1441
        %v1538 = vunpack.c.l.b16 %v1442
        %v1539 = vunpack.c.l.b16 %v1443
        %v1540 = vunpack.c.l.b16 %v1444
        %v1541 = vunpack.c.l.b16 %v1445
        %v1542 = vunpack.c.l.b16 %v1446
        %v1543 = vunpack.c.l.b16 %v1447
        %v1544 = vunpack.c.l.b16 %v1448
        %v1545 = vunpack.c.l.b16 %v1449
        %v1546 = vunpack.c.l.b16 %v1450
        %v1547 = vunpack.c.l.b16 %v1451
        %v1548 = vunpack.c.l.b16 %v1452
        %v1549 = vunpack.c.l.b16 %v1453
        %v1550 = vunpack.c.l.b16 %v1454
        %v1551 = vunpack.c.l.b16 %v1455
        %v1552 = vunpack.c.l.b16 %v1456
        %v1553 = vunpack.c.l.b16 %v1457
        %v1554 = vunpack.c.l.b16 %v1458
        %v1555 = vunpack.c.l.b16 %v1459
        %v1556 = vunpack.c.l.b16 %v1460
        %v1557 = vunpack.c.l.b16 %v1461
        %v1558 = vunpack.c.l.b16 %v1462
        %v1559 = vunpack.c.l.b16 %v1463
        %v1560 = vunpack.c.l.b16 %v1464
        %v1561 = vpack.c.b16 %v1514, %v1513
        %v1562 = vpack.c.b16 %v1516, %v1515
        %v1563 = vpack.c.b16 %v1518, %v1517
        %v1564 = vpack.c.b16 %v1520, %v1519
        %v1565 = vpack.c.b16 %v1522, %v1521
        %v1566 = vpack.c.b16 %v1524, %v1523
        %v1567 = vpack.c.b16 %v1526, %v1525
        %v1568 = vpack.c.b16 %v1528, %v1527
        %v1569 = vpack.c.b16 %v1530, %v1529
        %v1570 = vpack.c.b16 %v1532, %v1531
        %v1571 = vpack.c.b16 %v1534, %v1533
        %v1572 = vpack.c.b16 %v1536, %v1535
        %v1573 = vpack.c.b16 %v1538, %v1537
        %v1574 = vpack.c.b16 %v1540, %v1539
        %v1575 = vpack.c.b16 %v1542, %v1541
        %v1576 = vpack.c.b16 %v1544, %v1543
        %v1577 = vpack.c.b16 %v1546, %v1545
        %v1578 = vpack.c.b16 %v1548, %v1547
        %v1579 = vpack.c.b16 %v1550, %v1549
        %v1580 = vpack.c.b16 %v1552, %v1551
        %v1581 = vpack.c.b16 %v1554, %v1553
        %v1582 = vpack.c.b16 %v1556, %v1555
        %v1583 = vpack.c.b16 %v1558, %v1557
        %v1584 = vpack.c.b16 %v1560, %v1559
        %1609 = vmatprep.subr.bf16.mxu0 0
        %1610 = vmatpush1.bf16.msra.mxu0 %v1561
        %1611 = vmatprep.subr.bf16.mxu0 0
        %1612 = vmatpush1.bf16.msra.mxu0 %v1562
        %1613 = vmatprep.subr.bf16.mxu0 0
        %1614 = vmatpush1.bf16.msra.mxu0 %v1563
        %1615 = vmatprep.subr.bf16.mxu0 0
        %1616 = vmatpush1.bf16.msra.mxu0 %v1564
        %1617 = vmatprep.subr.bf16.mxu0 0
        %1618 = vmatpush1.bf16.msra.mxu0 %v1565
        %1619 = vmatprep.subr.bf16.mxu0 0
        %1620 = vmatpush1.bf16.msra.mxu0 %v1566
        %1621 = vmatprep.subr.bf16.mxu0 0
        %1622 = vmatpush1.bf16.msra.mxu0 %v1567
        %1623 = vmatprep.subr.bf16.mxu0 0
        %1624 = vmatpush1.bf16.msra.mxu0 %v1568
        %1625 = vmatprep.subr.bf16.mxu0 0
        %1626 = vmatpush1.bf16.msra.mxu0 %v1569
        %1627 = vmatprep.subr.bf16.mxu0 0
        %1628 = vmatpush1.bf16.msra.mxu0 %v1570
        %1629 = vmatprep.subr.bf16.mxu0 0
        %1630 = vmatpush1.bf16.msra.mxu0 %v1571
        %1631 = vmatprep.subr.bf16.mxu0 0
        %1632 = vmatpush1.bf16.msra.mxu0 %v1572
        %1633 = vmatprep.subr.bf16.mxu0 0
        %1634 = vmatpush1.bf16.msra.mxu0 %v1573
        %1635 = vmatprep.subr.bf16.mxu0 0
        %1636 = vmatpush1.bf16.msra.mxu0 %v1574
        %1637 = vmatprep.subr.bf16.mxu0 0
        %1638 = vmatpush1.bf16.msra.mxu0 %v1575
        %1639 = vmatprep.subr.bf16.mxu0 0
        %1640 = vmatpush1.bf16.msra.mxu0 %v1576
        %1641 = vmatprep.mubr.bf16.mxu0 %v1321
        %1642 = vmatmul.mubr.bf16.gmra.mrb[0].mxu0 %v1320
        %v1643 = vpop.f32.mrb[0].mxu0
        %v1644 = vadd.f32 0.0, %v1643
        %v1645 = vpop.f32.mrb[0].mxu0
        %v1646 = vpop.f32.mrb[0].mxu0
        %v1647 = vadd.f32 0.0, %v1646
        %v1648 = vpop.f32.mrb[0].mxu0
        %1649 = vmatprep.mubr.bf16.mxu0 %v1324
        %1650 = vmatmul.mubr.bf16.gmra.mrb[0].mxu0 %v1323
        %v1651 = vpop.f32.mrb[0].mxu0
        %v1652 = vadd.f32 0.0, %v1651
        %v1653 = vpop.f32.mrb[0].mxu0
        %v1654 = vpop.f32.mrb[0].mxu0
        %v1655 = vadd.f32 0.0, %v1654
        %v1656 = vpop.f32.mrb[0].mxu0
        %1657 = vmatprep.mubr.bf16.mxu0 %v1327
        %1658 = vmatmul.mubr.bf16.gmra.mrb[0].mxu0 %v1326
        %v1659 = vpop.f32.mrb[0].mxu0
        %v1660 = vadd.f32 0.0, %v1659
        %v1661 = vpop.f32.mrb[0].mxu0
        %v1662 = vpop.f32.mrb[0].mxu0
        %v1663 = vadd.f32 0.0, %v1662
        %v1664 = vpop.f32.mrb[0].mxu0
        %1665 = vmatprep.mubr.bf16.mxu0 %v1330
        %1666 = vmatmul.mubr.bf16.gmra.mrb[0].mxu0 %v1329
        %v1667 = vpop.f32.mrb[0].mxu0
        %v1668 = vadd.f32 0.0, %v1667
        %v1669 = vpop.f32.mrb[0].mxu0
        %v1670 = vpop.f32.mrb[0].mxu0
        %v1671 = vadd.f32 0.0, %v1670
        %v1672 = vpop.f32.mrb[0].mxu0
        %1673 = vmatprep.mubr.bf16.mxu0 %v1333
        %1674 = vmatmul.mubr.bf16.gmra.mrb[0].mxu0 %v1332
        %v1675 = vpop.f32.mrb[0].mxu0
        %v1676 = vadd.f32 0.0, %v1675
        %v1677 = vpop.f32.mrb[0].mxu0
        %v1678 = vpop.f32.mrb[0].mxu0
        %v1679 = vadd.f32 0.0, %v1678
        %v1680 = vpop.f32.mrb[0].mxu0
        %1681 = vmatprep.mubr.bf16.mxu0 %v1336
        %1682 = vmatmul.mubr.bf16.gmra.mrb[0].mxu0 %v1335
        %v1683 = vpop.f32.mrb[0].mxu0
        %v1684 = vadd.f32 0.0, %v1683
        %v1685 = vpop.f32.mrb[0].mxu0
        %v1686 = vpop.f32.mrb[0].mxu0
        %v1687 = vadd.f32 0.0, %v1686
        %v1688 = vpop.f32.mrb[0].mxu0
        %1689 = vmatprep.mubr.bf16.mxu0 %v1339
        %1690 = vmatmul.mubr.bf16.gmra.mrb[0].mxu0 %v1338
        %v1691 = vpop.f32.mrb[0].mxu0
        %v1692 = vadd.f32 0.0, %v1691
        %v1693 = vpop.f32.mrb[0].mxu0
        %v1694 = vpop.f32.mrb[0].mxu0
        %v1695 = vadd.f32 0.0, %v1694
        %v1696 = vpop.f32.mrb[0].mxu0
        %1697 = vmatprep.mubr.bf16.mxu0 %v1342
        %1698 = vmatmul.mubr.bf16.gmra.mrb[0].mxu0 %v1341
        %v1699 = vpop.f32.mrb[0].mxu0
        %v1700 = vadd.f32 0.0, %v1699
        %v1701 = vpop.f32.mrb[0].mxu0
        %v1702 = vpop.f32.mrb[0].mxu0
        %v1703 = vadd.f32 0.0, %v1702
        %v1704 = vpop.f32.mrb[0].mxu0
        %1705 = vmatprep.mubr.bf16.mxu0 %v1345
        %1706 = vmatmul.mubr.bf16.gmra.mrb[0].mxu0 %v1344
        %v1707 = vpop.f32.mrb[0].mxu0
        %v1708 = vadd.f32 0.0, %v1707
        %v1709 = vpop.f32.mrb[0].mxu0
        %v1710 = vpop.f32.mrb[0].mxu0
        %v1711 = vadd.f32 0.0, %v1710
        %v1712 = vpop.f32.mrb[0].mxu0
        %1713 = vmatprep.mubr.bf16.mxu0 %v1348
        %1714 = vmatmul.mubr.bf16.gmra.mrb[0].mxu0 %v1347
        %v1715 = vpop.f32.mrb[0].mxu0
        %v1716 = vadd.f32 0.0, %v1715
        %v1717 = vpop.f32.mrb[0].mxu0
        %v1718 = vpop.f32.mrb[0].mxu0
        %v1719 = vadd.f32 0.0, %v1718
        %v1720 = vpop.f32.mrb[0].mxu0
        %1721 = vmatprep.mubr.bf16.mxu0 %v1351
        %1722 = vmatmul.mubr.bf16.gmra.mrb[0].mxu0 %v1350
        %v1723 = vpop.f32.mrb[0].mxu0
        %v1724 = vadd.f32 0.0, %v1723
        %v1725 = vpop.f32.mrb[0].mxu0
        %v1726 = vpop.f32.mrb[0].mxu0
        %v1727 = vadd.f32 0.0, %v1726
        %v1728 = vpop.f32.mrb[0].mxu0
        %1729 = vmatprep.mubr.bf16.mxu0 %v1354
        %1730 = vmatmul.mubr.bf16.gmra.mrb[0].mxu0 %v1353
        %v1731 = vpop.f32.mrb[0].mxu0
        %v1732 = vadd.f32 0.0, %v1731
        %v1733 = vpop.f32.mrb[0].mxu0
        %v1734 = vpop.f32.mrb[0].mxu0
        %v1735 = vadd.f32 0.0, %v1734
        %v1736 = vpop.f32.mrb[0].mxu0
        %1737 = vmatprep.mubr.bf16.mxu0 %v1357
        %1738 = vmatmul.mubr.bf16.gmra.mrb[0].mxu0 %v1356
        %v1739 = vpop.f32.mrb[0].mxu0
        %v1740 = vadd.f32 0.0, %v1739
        %v1741 = vpop.f32.mrb[0].mxu0
        %v1742 = vpop.f32.mrb[0].mxu0
        %v1743 = vadd.f32 0.0, %v1742
        %v1744 = vpop.f32.mrb[0].mxu0
        %1745 = vmatprep.mubr.bf16.mxu0 %v1360
        %1746 = vmatmul.mubr.bf16.gmra.mrb[0].mxu0 %v1359
        %v1747 = vpop.f32.mrb[0].mxu0
        %v1748 = vadd.f32 0.0, %v1747
        %v1749 = vpop.f32.mrb[0].mxu0
        %v1750 = vpop.f32.mrb[0].mxu0
        %v1751 = vadd.f32 0.0, %v1750
        %v1752 = vpop.f32.mrb[0].mxu0
        %1753 = vmatprep.mubr.bf16.mxu0 %v1363
        %1754 = vmatmul.mubr.bf16.gmra.mrb[0].mxu0 %v1362
        %v1755 = vpop.f32.mrb[0].mxu0
        %v1756 = vadd.f32 0.0, %v1755
        %v1757 = vpop.f32.mrb[0].mxu0
        %v1758 = vpop.f32.mrb[0].mxu0
        %v1759 = vadd.f32 0.0, %v1758
        %v1760 = vpop.f32.mrb[0].mxu0
        %1761 = vmatprep.mubr.bf16.mxu0 %v1414
        %1762 = vmatmul.mubr.bf16.gmra.mrb[0].mxu0 %v1413
        %v1763 = vpop.f32.mrb[0].mxu0
        %v1764 = vadd.f32 0.0, %v1763
        %v1765 = vpop.f32.mrb[0].mxu0
        %v1766 = vpop.f32.mrb[0].mxu0
        %v1767 = vadd.f32 0.0, %v1766
        %v1768 = vpop.f32.mrb[0].mxu0
        %1769 = vdwg.mxu0
        %1770 = vmatprep.subr.bf16.mxu0 0
        %1771 = vmatpush1.bf16.msra.mxu0 %v1577
        %1772 = vmatprep.subr.bf16.mxu0 0
        %1773 = vmatpush1.bf16.msra.mxu0 %v1578
        %1774 = vmatprep.subr.bf16.mxu0 0
        %1775 = vmatpush1.bf16.msra.mxu0 %v1579
        %1776 = vmatprep.subr.bf16.mxu0 0
        %1777 = vmatpush1.bf16.msra.mxu0 %v1580
        %1778 = vmatprep.subr.bf16.mxu0 0
        %1779 = vmatpush1.bf16.msra.mxu0 %v1581
        %1780 = vmatprep.subr.bf16.mxu0 0
        %1781 = vmatpush1.bf16.msra.mxu0 %v1582
        %1782 = vmatprep.subr.bf16.mxu0 0
        %1783 = vmatpush1.bf16.msra.mxu0 %v1583
        %1784 = vmatprep.subr.bf16.mxu0 0
        %1785 = vmatpush1.bf16.msra.mxu0 %v1584
        %1786 = vmatprep.subr.bf16.mxu0 0
        %1787 = vmatpush1.bf16.msra.mxu0 0
        %1788 = vmatprep.subr.bf16.mxu0 0
        %1789 = vmatpush1.bf16.msra.mxu0 0
        %1790 = vmatprep.subr.bf16.mxu0 0
        %1791 = vmatpush1.bf16.msra.mxu0 0
        %1792 = vmatprep.subr.bf16.mxu0 0
        %1793 = vmatpush1.bf16.msra.mxu0 0
        %1794 = vmatprep.subr.bf16.mxu0 0
        %1795 = vmatpush1.bf16.msra.mxu0 0
        %1796 = vmatprep.subr.bf16.mxu0 0
        %1797 = vmatpush1.bf16.msra.mxu0 0
        %1798 = vmatprep.subr.bf16.mxu0 0
        %1799 = vmatpush1.bf16.msra.mxu0 0
        %1800 = vmatprep.subr.bf16.mxu0 0
        %1801 = vmatpush1.bf16.msra.mxu0 0
        %1802 = vmatprep.mubr.bf16.mxu0 0
        %1803 = vmatmul.mubr.bf16.gmra.mrb[0].mxu0 %v1322
        %v1804 = vpop.f32.mrb[0].mxu0
        %v1805 = vadd.f32 %v1644, %v1804
        %v1806 = vpop.f32.mrb[0].mxu0
        %v1807 = vpop.f32.mrb[0].mxu0
        %v1808 = vadd.f32 %v1647, %v1807
        %v1809 = vpop.f32.mrb[0].mxu0
        %1810 = vmatprep.mubr.bf16.mxu0 0
        %1811 = vmatmul.mubr.bf16.gmra.mrb[0].mxu0 %v1325
        %v1812 = vpop.f32.mrb[0].mxu0
        %v1813 = vadd.f32 %v1652, %v1812
        %v1814 = vpop.f32.mrb[0].mxu0
        %v1815 = vpop.f32.mrb[0].mxu0
        %v1816 = vadd.f32 %v1655, %v1815
        %v1817 = vpop.f32.mrb[0].mxu0
        %1818 = vmatprep.mubr.bf16.mxu0 0
        %1819 = vmatmul.mubr.bf16.gmra.mrb[0].mxu0 %v1328
        %v1820 = vpop.f32.mrb[0].mxu0
        %v1821 = vadd.f32 %v1660, %v1820
        %v1822 = vpop.f32.mrb[0].mxu0
        %v1823 = vpop.f32.mrb[0].mxu0
        %v1824 = vadd.f32 %v1663, %v1823
        %v1825 = vpop.f32.mrb[0].mxu0
        %1826 = vmatprep.mubr.bf16.mxu0 0
        %1827 = vmatmul.mubr.bf16.gmra.mrb[0].mxu0 %v1331
        %v1828 = vpop.f32.mrb[0].mxu0
        %v1829 = vadd.f32 %v1668, %v1828
        %v1830 = vpop.f32.mrb[0].mxu0
        %v1831 = vpop.f32.mrb[0].mxu0
        %v1832 = vadd.f32 %v1671, %v1831
        %v1833 = vpop.f32.mrb[0].mxu0
        %1834 = vmatprep.mubr.bf16.mxu0 0
        %1835 = vmatmul.mubr.bf16.gmra.mrb[0].mxu0 %v1334
        %v1836 = vpop.f32.mrb[0].mxu0
        %v1837 = vadd.f32 %v1676, %v1836
        %v1838 = vpop.f32.mrb[0].mxu0
        %v1839 = vpop.f32.mrb[0].mxu0
        %v1840 = vadd.f32 %v1679, %v1839
        %v1841 = vpop.f32.mrb[0].mxu0
        %1842 = vmatprep.mubr.bf16.mxu0 0
        %1843 = vmatmul.mubr.bf16.gmra.mrb[0].mxu0 %v1337
        %v1844 = vpop.f32.mrb[0].mxu0
        %v1845 = vadd.f32 %v1684, %v1844
        %v1846 = vpop.f32.mrb[0].mxu0
        %v1847 = vpop.f32.mrb[0].mxu0
        %v1848 = vadd.f32 %v1687, %v1847
        %v1849 = vpop.f32.mrb[0].mxu0
        %1850 = vmatprep.mubr.bf16.mxu0 0
        %1851 = vmatmul.mubr.bf16.gmra.mrb[0].mxu0 %v1340
        %v1852 = vpop.f32.mrb[0].mxu0
        %v1853 = vadd.f32 %v1692, %v1852
        %v1854 = vpop.f32.mrb[0].mxu0
        %v1855 = vpop.f32.mrb[0].mxu0
        %v1856 = vadd.f32 %v1695, %v1855
        %v1857 = vpop.f32.mrb[0].mxu0
        %1858 = vmatprep.mubr.bf16.mxu0 0
        %1859 = vmatmul.mubr.bf16.gmra.mrb[0].mxu0 %v1343
        %v1860 = vpop.f32.mrb[0].mxu0
        %v1861 = vadd.f32 %v1700, %v1860
        %v1862 = vpop.f32.mrb[0].mxu0
        %v1863 = vpop.f32.mrb[0].mxu0
        %v1864 = vadd.f32 %v1703, %v1863
        %v1865 = vpop.f32.mrb[0].mxu0
        %1866 = vmatprep.mubr.bf16.mxu0 0
        %1867 = vmatmul.mubr.bf16.gmra.mrb[0].mxu0 %v1346
        %v1868 = vpop.f32.mrb[0].mxu0
        %v1869 = vadd.f32 %v1708, %v1868
        %v1870 = vpop.f32.mrb[0].mxu0
        %v1871 = vpop.f32.mrb[0].mxu0
        %v1872 = vadd.f32 %v1711, %v1871
        %v1873 = vpop.f32.mrb[0].mxu0
        %1874 = vmatprep.mubr.bf16.mxu0 0
        %1875 = vmatmul.mubr.bf16.gmra.mrb[0].mxu0 %v1349
        %v1876 = vpop.f32.mrb[0].mxu0
        %v1877 = vadd.f32 %v1716, %v1876
        %v1878 = vpop.f32.mrb[0].mxu0
        %v1879 = vpop.f32.mrb[0].mxu0
        %v1880 = vadd.f32 %v1719, %v1879
        %v1881 = vpop.f32.mrb[0].mxu0
        %1882 = vmatprep.mubr.bf16.mxu0 0
        %1883 = vmatmul.mubr.bf16.gmra.mrb[0].mxu0 %v1352
        %v1884 = vpop.f32.mrb[0].mxu0
        %v1885 = vadd.f32 %v1724, %v1884
        %v1886 = vpop.f32.mrb[0].mxu0
        %v1887 = vpop.f32.mrb[0].mxu0
        %v1888 = vadd.f32 %v1727, %v1887
        %v1889 = vpop.f32.mrb[0].mxu0
        %1890 = vmatprep.mubr.bf16.mxu0 0
        %1891 = vmatmul.mubr.bf16.gmra.mrb[0].mxu0 %v1355
        %v1892 = vpop.f32.mrb[0].mxu0
        %v1893 = vadd.f32 %v1732, %v1892
        %v1894 = vpop.f32.mrb[0].mxu0
        %v1895 = vpop.f32.mrb[0].mxu0
        %v1896 = vadd.f32 %v1735, %v1895
        %v1897 = vpop.f32.mrb[0].mxu0
        %1898 = vmatprep.mubr.bf16.mxu0 0
        %1899 = vmatmul.mubr.bf16.gmra.mrb[0].mxu0 %v1358
        %v1900 = vpop.f32.mrb[0].mxu0
        %v1901 = vadd.f32 %v1740, %v1900
        %v1902 = vpop.f32.mrb[0].mxu0
        %v1903 = vpop.f32.mrb[0].mxu0
        %v1904 = vadd.f32 %v1743, %v1903
        %v1905 = vpop.f32.mrb[0].mxu0
        %1906 = vmatprep.mubr.bf16.mxu0 0
        %1907 = vmatmul.mubr.bf16.gmra.mrb[0].mxu0 %v1361
        %v1908 = vpop.f32.mrb[0].mxu0
        %v1909 = vadd.f32 %v1748, %v1908
        %v1910 = vpop.f32.mrb[0].mxu0
        %v1911 = vpop.f32.mrb[0].mxu0
        %v1912 = vadd.f32 %v1751, %v1911
        %v1913 = vpop.f32.mrb[0].mxu0
        %1914 = vmatprep.mubr.bf16.mxu0 0
        %1915 = vmatmul.mubr.bf16.gmra.mrb[0].mxu0 %v1364
        %v1916 = vpop.f32.mrb[0].mxu0
        %v1917 = vadd.f32 %v1756, %v1916
        %v1918 = vpop.f32.mrb[0].mxu0
        %v1919 = vpop.f32.mrb[0].mxu0
        %v1920 = vadd.f32 %v1759, %v1919
        %v1921 = vpop.f32.mrb[0].mxu0
        %1922 = vmatprep.mubr.bf16.mxu0 0
        %1923 = vmatmul.mubr.bf16.gmra.mrb[0].mxu0 %v1415
        %v1924 = vpop.f32.mrb[0].mxu0
        %v1925 = vadd.f32 %v1764, %v1924
        %v1926 = vpop.f32.mrb[0].mxu0
        %v1927 = vpop.f32.mrb[0].mxu0
        %v1928 = vadd.f32 %v1767, %v1927
        %v1929 = vpop.f32.mrb[0].mxu0
        %1930 = vdwg.mxu0
        %v1979 = vunpack.c.l.b16 %v1365
        %v1980 = vunpack.c.l.b16 %v1366
        %v1981 = vunpack.c.l.b16 %v1367
        %v1982 = vunpack.c.l.b16 %v1368
        %v1983 = vunpack.c.l.b16 %v1369
        %v1984 = vunpack.c.l.b16 %v1370
        %v1985 = vunpack.c.l.b16 %v1371
        %v1986 = vunpack.c.l.b16 %v1372
        %v1987 = vunpack.c.l.b16 %v1373
        %v1988 = vunpack.c.l.b16 %v1374
        %v1989 = vunpack.c.l.b16 %v1375
        %v1990 = vunpack.c.l.b16 %v1376
        %v1991 = vunpack.c.l.b16 %v1377
        %v1992 = vunpack.c.l.b16 %v1378
        %v1993 = vunpack.c.l.b16 %v1379
        %v1994 = vunpack.c.l.b16 %v1380
        %v1995 = vunpack.c.l.b16 %v1381
        %v1996 = vunpack.c.l.b16 %v1382
        %v1997 = vunpack.c.l.b16 %v1383
        %v1998 = vunpack.c.l.b16 %v1384
        %v1999 = vunpack.c.l.b16 %v1385
        %v2000 = vunpack.c.l.b16 %v1386
        %v2001 = vunpack.c.l.b16 %v1387
        %v2002 = vunpack.c.l.b16 %v1388
        %v2003 = vunpack.c.l.b16 %v1389
        %v2004 = vunpack.c.l.b16 %v1390
        %v2005 = vunpack.c.l.b16 %v1391
        %v2006 = vunpack.c.l.b16 %v1392
        %v2007 = vunpack.c.l.b16 %v1393
        %v2008 = vunpack.c.l.b16 %v1394
        %v2009 = vunpack.c.l.b16 %v1395
        %v2010 = vunpack.c.l.b16 %v1396
        %v2011 = vunpack.c.l.b16 %v1397
        %v2012 = vunpack.c.l.b16 %v1398
        %v2013 = vunpack.c.l.b16 %v1399
        %v2014 = vunpack.c.l.b16 %v1400
        %v2015 = vunpack.c.l.b16 %v1401
        %v2016 = vunpack.c.l.b16 %v1402
        %v2017 = vunpack.c.l.b16 %v1403
        %v2018 = vunpack.c.l.b16 %v1404
        %v2019 = vunpack.c.l.b16 %v1405
        %v2020 = vunpack.c.l.b16 %v1406
        %v2021 = vunpack.c.l.b16 %v1407
        %v2022 = vunpack.c.l.b16 %v1408
        %v2023 = vunpack.c.l.b16 %v1409
        %v2024 = vunpack.c.l.b16 %v1410
        %v2025 = vunpack.c.l.b16 %v1411
        %v2026 = vunpack.c.l.b16 %v1412
        %v2027 = vpack.c.b16 %v1980, %v1979
        %v2028 = vpack.c.b16 %v1982, %v1981
        %v2029 = vpack.c.b16 %v1984, %v1983
        %v2030 = vpack.c.b16 %v1986, %v1985
        %v2031 = vpack.c.b16 %v1988, %v1987
        %v2032 = vpack.c.b16 %v1990, %v1989
        %v2033 = vpack.c.b16 %v1992, %v1991
        %v2034 = vpack.c.b16 %v1994, %v1993
        %v2035 = vpack.c.b16 %v1996, %v1995
        %v2036 = vpack.c.b16 %v1998, %v1997
        %v2037 = vpack.c.b16 %v2000, %v1999
        %v2038 = vpack.c.b16 %v2002, %v2001
        %v2039 = vpack.c.b16 %v2004, %v2003
        %v2040 = vpack.c.b16 %v2006, %v2005
        %v2041 = vpack.c.b16 %v2008, %v2007
        %v2042 = vpack.c.b16 %v2010, %v2009
        %v2043 = vpack.c.b16 %v2012, %v2011
        %v2044 = vpack.c.b16 %v2014, %v2013
        %v2045 = vpack.c.b16 %v2016, %v2015
        %v2046 = vpack.c.b16 %v2018, %v2017
        %v2047 = vpack.c.b16 %v2020, %v2019
        %v2048 = vpack.c.b16 %v2022, %v2021
        %v2049 = vpack.c.b16 %v2024, %v2023
        %v2050 = vpack.c.b16 %v2026, %v2025
        %2075 = vmatprep.subr.bf16.mxu0 0
        %2076 = vmatpush1.bf16.msra.mxu0 %v2027
        %2077 = vmatprep.subr.bf16.mxu0 0
        %2078 = vmatpush1.bf16.msra.mxu0 %v2028
        %2079 = vmatprep.subr.bf16.mxu0 0
        %2080 = vmatpush1.bf16.msra.mxu0 %v2029
        %2081 = vmatprep.subr.bf16.mxu0 0
        %2082 = vmatpush1.bf16.msra.mxu0 %v2030
        %2083 = vmatprep.subr.bf16.mxu0 0
        %2084 = vmatpush1.bf16.msra.mxu0 %v2031
        %2085 = vmatprep.subr.bf16.mxu0 0
        %2086 = vmatpush1.bf16.msra.mxu0 %v2032
        %2087 = vmatprep.subr.bf16.mxu0 0
        %2088 = vmatpush1.bf16.msra.mxu0 %v2033
        %2089 = vmatprep.subr.bf16.mxu0 0
        %2090 = vmatpush1.bf16.msra.mxu0 %v2034
        %2091 = vmatprep.subr.bf16.mxu0 0
        %2092 = vmatpush1.bf16.msra.mxu0 %v2035
        %2093 = vmatprep.subr.bf16.mxu0 0
        %2094 = vmatpush1.bf16.msra.mxu0 %v2036
        %2095 = vmatprep.subr.bf16.mxu0 0
        %2096 = vmatpush1.bf16.msra.mxu0 %v2037
        %2097 = vmatprep.subr.bf16.mxu0 0
        %2098 = vmatpush1.bf16.msra.mxu0 %v2038
        %2099 = vmatprep.subr.bf16.mxu0 0
        %2100 = vmatpush1.bf16.msra.mxu0 %v2039
        %2101 = vmatprep.subr.bf16.mxu0 0
        %2102 = vmatpush1.bf16.msra.mxu0 %v2040
        %2103 = vmatprep.subr.bf16.mxu0 0
        %2104 = vmatpush1.bf16.msra.mxu0 %v2041
        %2105 = vmatprep.subr.bf16.mxu0 0
        %2106 = vmatpush1.bf16.msra.mxu0 %v2042
        %2107 = vmatprep.mubr.bf16.mxu0 %v1318
        %2108 = vmatmul.mubr.bf16.gmra.mrb[0].mxu0 %v1317
        %v2109 = vpop.f32.mrb[0].mxu0
        %v2110 = vadd.f32 %v1805, %v2109
        %v2111 = vpop.f32.mrb[0].mxu0
        %v2112 = vpop.f32.mrb[0].mxu0
        %v2113 = vadd.f32 %v1808, %v2112
        %v2114 = vpop.f32.mrb[0].mxu0
        %2115 = vmatprep.mubr.bf16.mxu0 %v1321
        %2116 = vmatmul.mubr.bf16.gmra.mrb[0].mxu0 %v1320
        %v2117 = vpop.f32.mrb[0].mxu0
        %v2118 = vadd.f32 %v1813, %v2117
        %v2119 = vpop.f32.mrb[0].mxu0
        %v2120 = vpop.f32.mrb[0].mxu0
        %v2121 = vadd.f32 %v1816, %v2120
        %v2122 = vpop.f32.mrb[0].mxu0
        %2123 = vmatprep.mubr.bf16.mxu0 %v1324
        %2124 = vmatmul.mubr.bf16.gmra.mrb[0].mxu0 %v1323
        %v2125 = vpop.f32.mrb[0].mxu0
        %v2126 = vadd.f32 %v1821, %v2125
        %v2127 = vpop.f32.mrb[0].mxu0
        %v2128 = vpop.f32.mrb[0].mxu0
        %v2129 = vadd.f32 %v1824, %v2128
        %v2130 = vpop.f32.mrb[0].mxu0
        %2131 = vmatprep.mubr.bf16.mxu0 %v1327
        %2132 = vmatmul.mubr.bf16.gmra.mrb[0].mxu0 %v1326
        %v2133 = vpop.f32.mrb[0].mxu0
        %v2134 = vadd.f32 %v1829, %v2133
        %v2135 = vpop.f32.mrb[0].mxu0
        %v2136 = vpop.f32.mrb[0].mxu0
        %v2137 = vadd.f32 %v1832, %v2136
        %v2138 = vpop.f32.mrb[0].mxu0
        %2139 = vmatprep.mubr.bf16.mxu0 %v1330
        %2140 = vmatmul.mubr.bf16.gmra.mrb[0].mxu0 %v1329
        %v2141 = vpop.f32.mrb[0].mxu0
        %v2142 = vadd.f32 %v1837, %v2141
        %v2143 = vpop.f32.mrb[0].mxu0
        %v2144 = vpop.f32.mrb[0].mxu0
        %v2145 = vadd.f32 %v1840, %v2144
        %v2146 = vpop.f32.mrb[0].mxu0
        %2147 = vmatprep.mubr.bf16.mxu0 %v1333
        %2148 = vmatmul.mubr.bf16.gmra.mrb[0].mxu0 %v1332
        %v2149 = vpop.f32.mrb[0].mxu0
        %v2150 = vadd.f32 %v1845, %v2149
        %v2151 = vpop.f32.mrb[0].mxu0
        %v2152 = vpop.f32.mrb[0].mxu0
        %v2153 = vadd.f32 %v1848, %v2152
        %v2154 = vpop.f32.mrb[0].mxu0
        %2155 = vmatprep.mubr.bf16.mxu0 %v1336
        %2156 = vmatmul.mubr.bf16.gmra.mrb[0].mxu0 %v1335
        %v2157 = vpop.f32.mrb[0].mxu0
        %v2158 = vadd.f32 %v1853, %v2157
        %v2159 = vpop.f32.mrb[0].mxu0
        %v2160 = vpop.f32.mrb[0].mxu0
        %v2161 = vadd.f32 %v1856, %v2160
        %v2162 = vpop.f32.mrb[0].mxu0
        %2163 = vmatprep.mubr.bf16.mxu0 %v1339
        %2164 = vmatmul.mubr.bf16.gmra.mrb[0].mxu0 %v1338
        %v2165 = vpop.f32.mrb[0].mxu0
        %v2166 = vadd.f32 %v1861, %v2165
        %v2167 = vpop.f32.mrb[0].mxu0
        %v2168 = vpop.f32.mrb[0].mxu0
        %v2169 = vadd.f32 %v1864, %v2168
        %v2170 = vpop.f32.mrb[0].mxu0
        %2171 = vmatprep.mubr.bf16.mxu0 %v1342
        %2172 = vmatmul.mubr.bf16.gmra.mrb[0].mxu0 %v1341
        %v2173 = vpop.f32.mrb[0].mxu0
        %v2174 = vadd.f32 %v1869, %v2173
        %v2175 = vpop.f32.mrb[0].mxu0
        %v2176 = vpop.f32.mrb[0].mxu0
        %v2177 = vadd.f32 %v1872, %v2176
        %v2178 = vpop.f32.mrb[0].mxu0
        %2179 = vmatprep.mubr.bf16.mxu0 %v1345
        %2180 = vmatmul.mubr.bf16.gmra.mrb[0].mxu0 %v1344
        %v2181 = vpop.f32.mrb[0].mxu0
        %v2182 = vadd.f32 %v1877, %v2181
        %v2183 = vpop.f32.mrb[0].mxu0
        %v2184 = vpop.f32.mrb[0].mxu0
        %v2185 = vadd.f32 %v1880, %v2184
        %v2186 = vpop.f32.mrb[0].mxu0
        %2187 = vmatprep.mubr.bf16.mxu0 %v1348
        %2188 = vmatmul.mubr.bf16.gmra.mrb[0].mxu0 %v1347
        %v2189 = vpop.f32.mrb[0].mxu0
        %v2190 = vadd.f32 %v1885, %v2189
        %v2191 = vpop.f32.mrb[0].mxu0
        %v2192 = vpop.f32.mrb[0].mxu0
        %v2193 = vadd.f32 %v1888, %v2192
        %v2194 = vpop.f32.mrb[0].mxu0
        %2195 = vmatprep.mubr.bf16.mxu0 %v1351
        %2196 = vmatmul.mubr.bf16.gmra.mrb[0].mxu0 %v1350
        %v2197 = vpop.f32.mrb[0].mxu0
        %v2198 = vadd.f32 %v1893, %v2197
        %v2199 = vpop.f32.mrb[0].mxu0
        %v2200 = vpop.f32.mrb[0].mxu0
        %v2201 = vadd.f32 %v1896, %v2200
        %v2202 = vpop.f32.mrb[0].mxu0
        %2203 = vmatprep.mubr.bf16.mxu0 %v1354
        %2204 = vmatmul.mubr.bf16.gmra.mrb[0].mxu0 %v1353
        %v2205 = vpop.f32.mrb[0].mxu0
        %v2206 = vadd.f32 %v1901, %v2205
        %v2207 = vpop.f32.mrb[0].mxu0
        %v2208 = vpop.f32.mrb[0].mxu0
        %v2209 = vadd.f32 %v1904, %v2208
        %v2210 = vpop.f32.mrb[0].mxu0
        %2211 = vmatprep.mubr.bf16.mxu0 %v1357
        %2212 = vmatmul.mubr.bf16.gmra.mrb[0].mxu0 %v1356
        %v2213 = vpop.f32.mrb[0].mxu0
        %v2214 = vadd.f32 %v1909, %v2213
        %v2215 = vpop.f32.mrb[0].mxu0
        %v2216 = vpop.f32.mrb[0].mxu0
        %v2217 = vadd.f32 %v1912, %v2216
        %v2218 = vpop.f32.mrb[0].mxu0
        %2219 = vmatprep.mubr.bf16.mxu0 %v1360
        %2220 = vmatmul.mubr.bf16.gmra.mrb[0].mxu0 %v1359
        %v2221 = vpop.f32.mrb[0].mxu0
        %v2222 = vadd.f32 %v1917, %v2221
        %v2223 = vpop.f32.mrb[0].mxu0
        %v2224 = vpop.f32.mrb[0].mxu0
        %v2225 = vadd.f32 %v1920, %v2224
        %v2226 = vpop.f32.mrb[0].mxu0
        %2227 = vmatprep.mubr.bf16.mxu0 %v1363
        %2228 = vmatmul.mubr.bf16.gmra.mrb[0].mxu0 %v1362
        %v2229 = vpop.f32.mrb[0].mxu0
        %v2230 = vadd.f32 %v1925, %v2229
        %v2231 = vpop.f32.mrb[0].mxu0
        %v2232 = vpop.f32.mrb[0].mxu0
        %v2233 = vadd.f32 %v1928, %v2232
        %v2234 = vpop.f32.mrb[0].mxu0
        %2235 = vdwg.mxu0
        %2236 = vmatprep.subr.bf16.mxu0 0
        %2237 = vmatpush1.bf16.msra.mxu0 %v2043
        %2238 = vmatprep.subr.bf16.mxu0 0
        %2239 = vmatpush1.bf16.msra.mxu0 %v2044
        %2240 = vmatprep.subr.bf16.mxu0 0
        %2241 = vmatpush1.bf16.msra.mxu0 %v2045
        %2242 = vmatprep.subr.bf16.mxu0 0
        %2243 = vmatpush1.bf16.msra.mxu0 %v2046
        %2244 = vmatprep.subr.bf16.mxu0 0
        %2245 = vmatpush1.bf16.msra.mxu0 %v2047
        %2246 = vmatprep.subr.bf16.mxu0 0
        %2247 = vmatpush1.bf16.msra.mxu0 %v2048
        %2248 = vmatprep.subr.bf16.mxu0 0
        %2249 = vmatpush1.bf16.msra.mxu0 %v2049
        %2250 = vmatprep.subr.bf16.mxu0 0
        %2251 = vmatpush1.bf16.msra.mxu0 %v2050
        %2252 = vmatprep.subr.bf16.mxu0 0
        %2253 = vmatpush1.bf16.msra.mxu0 0
        %2254 = vmatprep.subr.bf16.mxu0 0
        %2255 = vmatpush1.bf16.msra.mxu0 0
        %2256 = vmatprep.subr.bf16.mxu0 0
        %2257 = vmatpush1.bf16.msra.mxu0 0
        %2258 = vmatprep.subr.bf16.mxu0 0
        %2259 = vmatpush1.bf16.msra.mxu0 0
        %2260 = vmatprep.subr.bf16.mxu0 0
        %2261 = vmatpush1.bf16.msra.mxu0 0
        %2262 = vmatprep.subr.bf16.mxu0 0
        %2263 = vmatpush1.bf16.msra.mxu0 0
        %2264 = vmatprep.subr.bf16.mxu0 0
        %2265 = vmatpush1.bf16.msra.mxu0 0
        %2266 = vmatprep.subr.bf16.mxu0 0
        %2267 = vmatpush1.bf16.msra.mxu0 0
        %2268 = vmatprep.mubr.bf16.mxu0 0
        %2269 = vmatmul.mubr.bf16.gmra.mrb[0].mxu0 %v1319
        %v2270 = vpop.f32.mrb[0].mxu0
        %v2271 = vadd.f32 %v2110, %v2270
        %v2272 = vpop.f32.mrb[0].mxu0
        %v2273 = vpop.f32.mrb[0].mxu0
        %v2274 = vadd.f32 %v2113, %v2273
        %v2275 = vpop.f32.mrb[0].mxu0
        %2276 = vmatprep.mubr.bf16.mxu0 0
        %2277 = vmatmul.mubr.bf16.gmra.mrb[0].mxu0 %v1322
        %v2278 = vpop.f32.mrb[0].mxu0
        %v2279 = vadd.f32 %v2118, %v2278
        %v2280 = vpop.f32.mrb[0].mxu0
        %v2281 = vpop.f32.mrb[0].mxu0
        %v2282 = vadd.f32 %v2121, %v2281
        %v2283 = vpop.f32.mrb[0].mxu0
        %2284 = vmatprep.mubr.bf16.mxu0 0
        %2285 = vmatmul.mubr.bf16.gmra.mrb[0].mxu0 %v1325
        %v2286 = vpop.f32.mrb[0].mxu0
        %v2287 = vadd.f32 %v2126, %v2286
        %v2288 = vpop.f32.mrb[0].mxu0
        %v2289 = vpop.f32.mrb[0].mxu0
        %v2290 = vadd.f32 %v2129, %v2289
        %v2291 = vpop.f32.mrb[0].mxu0
        %2292 = vmatprep.mubr.bf16.mxu0 0
        %2293 = vmatmul.mubr.bf16.gmra.mrb[0].mxu0 %v1328
        %v2294 = vpop.f32.mrb[0].mxu0
        %v2295 = vadd.f32 %v2134, %v2294
        %v2296 = vpop.f32.mrb[0].mxu0
        %v2297 = vpop.f32.mrb[0].mxu0
        %v2298 = vadd.f32 %v2137, %v2297
        %v2299 = vpop.f32.mrb[0].mxu0
        %2300 = vmatprep.mubr.bf16.mxu0 0
        %2301 = vmatmul.mubr.bf16.gmra.mrb[0].mxu0 %v1331
        %v2302 = vpop.f32.mrb[0].mxu0
        %v2303 = vadd.f32 %v2142, %v2302
        %v2304 = vpop.f32.mrb[0].mxu0
        %v2305 = vpop.f32.mrb[0].mxu0
        %v2306 = vadd.f32 %v2145, %v2305
        %v2307 = vpop.f32.mrb[0].mxu0
        %2308 = vmatprep.mubr.bf16.mxu0 0
        %2309 = vmatmul.mubr.bf16.gmra.mrb[0].mxu0 %v1334
        %v2310 = vpop.f32.mrb[0].mxu0
        %v2311 = vadd.f32 %v2150, %v2310
        %v2312 = vpop.f32.mrb[0].mxu0
        %v2313 = vpop.f32.mrb[0].mxu0
        %v2314 = vadd.f32 %v2153, %v2313
        %v2315 = vpop.f32.mrb[0].mxu0
        %2316 = vmatprep.mubr.bf16.mxu0 0
        %2317 = vmatmul.mubr.bf16.gmra.mrb[0].mxu0 %v1337
        %v2318 = vpop.f32.mrb[0].mxu0
        %v2319 = vadd.f32 %v2158, %v2318
        %v2320 = vpop.f32.mrb[0].mxu0
        %v2321 = vpop.f32.mrb[0].mxu0
        %v2322 = vadd.f32 %v2161, %v2321
        %v2323 = vpop.f32.mrb[0].mxu0
        %2324 = vmatprep.mubr.bf16.mxu0 0
        %2325 = vmatmul.mubr.bf16.gmra.mrb[0].mxu0 %v1340
        %v2326 = vpop.f32.mrb[0].mxu0
        %v2327 = vadd.f32 %v2166, %v2326
        %v2328 = vpop.f32.mrb[0].mxu0
        %v2329 = vpop.f32.mrb[0].mxu0
        %v2330 = vadd.f32 %v2169, %v2329
        %v2331 = vpop.f32.mrb[0].mxu0
        %2332 = vmatprep.mubr.bf16.mxu0 0
        %2333 = vmatmul.mubr.bf16.gmra.mrb[0].mxu0 %v1343
        %v2334 = vpop.f32.mrb[0].mxu0
        %v2335 = vadd.f32 %v2174, %v2334
        %v2336 = vpop.f32.mrb[0].mxu0
        %v2337 = vpop.f32.mrb[0].mxu0
        %v2338 = vadd.f32 %v2177, %v2337
        %v2339 = vpop.f32.mrb[0].mxu0
        %2340 = vmatprep.mubr.bf16.mxu0 0
        %2341 = vmatmul.mubr.bf16.gmra.mrb[0].mxu0 %v1346
        %v2342 = vpop.f32.mrb[0].mxu0
        %v2343 = vadd.f32 %v2182, %v2342
        %v2344 = vpop.f32.mrb[0].mxu0
        %v2345 = vpop.f32.mrb[0].mxu0
        %v2346 = vadd.f32 %v2185, %v2345
        %v2347 = vpop.f32.mrb[0].mxu0
        %2348 = vmatprep.mubr.bf16.mxu0 0
        %2349 = vmatmul.mubr.bf16.gmra.mrb[0].mxu0 %v1349
        %v2350 = vpop.f32.mrb[0].mxu0
        %v2351 = vadd.f32 %v2190, %v2350
        %v2352 = vpop.f32.mrb[0].mxu0
        %v2353 = vpop.f32.mrb[0].mxu0
        %v2354 = vadd.f32 %v2193, %v2353
        %v2355 = vpop.f32.mrb[0].mxu0
        %2356 = vmatprep.mubr.bf16.mxu0 0
        %2357 = vmatmul.mubr.bf16.gmra.mrb[0].mxu0 %v1352
        %v2358 = vpop.f32.mrb[0].mxu0
        %v2359 = vadd.f32 %v2198, %v2358
        %v2360 = vpop.f32.mrb[0].mxu0
        %v2361 = vpop.f32.mrb[0].mxu0
        %v2362 = vadd.f32 %v2201, %v2361
        %v2363 = vpop.f32.mrb[0].mxu0
        %2364 = vmatprep.mubr.bf16.mxu0 0
        %2365 = vmatmul.mubr.bf16.gmra.mrb[0].mxu0 %v1355
        %v2366 = vpop.f32.mrb[0].mxu0
        %v2367 = vadd.f32 %v2206, %v2366
        %v2368 = vpop.f32.mrb[0].mxu0
        %v2369 = vpop.f32.mrb[0].mxu0
        %v2370 = vadd.f32 %v2209, %v2369
        %v2371 = vpop.f32.mrb[0].mxu0
        %2372 = vmatprep.mubr.bf16.mxu0 0
        %2373 = vmatmul.mubr.bf16.gmra.mrb[0].mxu0 %v1358
        %v2374 = vpop.f32.mrb[0].mxu0
        %v2375 = vadd.f32 %v2214, %v2374
        %v2376 = vpop.f32.mrb[0].mxu0
        %v2377 = vpop.f32.mrb[0].mxu0
        %v2378 = vadd.f32 %v2217, %v2377
        %v2379 = vpop.f32.mrb[0].mxu0
        %2380 = vmatprep.mubr.bf16.mxu0 0
        %2381 = vmatmul.mubr.bf16.gmra.mrb[0].mxu0 %v1361
        %v2382 = vpop.f32.mrb[0].mxu0
        %v2383 = vadd.f32 %v2222, %v2382
        %v2384 = vpop.f32.mrb[0].mxu0
        %v2385 = vpop.f32.mrb[0].mxu0
        %v2386 = vadd.f32 %v2225, %v2385
        %v2387 = vpop.f32.mrb[0].mxu0
        %2388 = vmatprep.mubr.bf16.mxu0 0
        %2389 = vmatmul.mubr.bf16.gmra.mrb[0].mxu0 %v1364
        %v2390 = vpop.f32.mrb[0].mxu0
        %v2391 = vadd.f32 %v2230, %v2390
        %v2392 = vpop.f32.mrb[0].mxu0
        %v2393 = vpop.f32.mrb[0].mxu0
        %v2394 = vadd.f32 %v2233, %v2393
        %v2395 = vpop.f32.mrb[0].mxu0
        %2396 = vdwg.mxu0
        %v2397 = vld [vmem:[#allocation2 + $0x30] sm:$0xff]
        %v2398 = vld [vmem:[#allocation2 + $0x38] sm:$0xff]
        %v2399 = vld [vmem:[#allocation2 + $0x40] sm:$0xff]
        %v2400 = vld [vmem:[#allocation2 + $0x48] sm:$0xff]
        %v2401 = vld [vmem:[#allocation2 + $0x50] sm:$0xff]
        %v2402 = vld [vmem:[#allocation2 + $0x58] sm:$0xff]
        %v2403 = vld [vmem:[#allocation2 + $0x60] sm:$0xff]
        %v2404 = vld [vmem:[#allocation2 + $0x68] sm:$0xff]
        %v2405 = vld [vmem:[#allocation2 + $0x70] sm:$0xff]
        %v2406 = vld [vmem:[#allocation2 + $0x78] sm:$0xff]
        %v2407 = vld [vmem:[#allocation2 + $0x80] sm:$0xff]
        %v2408 = vld [vmem:[#allocation2 + $0x88] sm:$0xff]
        %v2409 = vld [vmem:[#allocation2 + $0x90] sm:$0xff]
        %v2410 = vld [vmem:[#allocation2 + $0x98] sm:$0xff]
        %v2411 = vld [vmem:[#allocation2 + $0xa0] sm:$0xff]
        %v2412 = vld [vmem:[#allocation2 + $0xa8] sm:$0xff]
        %v2413 = vld [vmem:[#allocation2 + $0xb0] sm:$0xff]
        %v2414 = vld [vmem:[#allocation2 + $0xb8] sm:$0xff]
        %v2415 = vld [vmem:[#allocation2 + $0xc0] sm:$0xff]
        %v2416 = vld [vmem:[#allocation2 + $0xc8] sm:$0xff]
        %v2417 = vld [vmem:[#allocation2 + $0xd0] sm:$0xff]
        %v2418 = vld [vmem:[#allocation2 + $0xd8] sm:$0xff]
        %v2419 = vld [vmem:[#allocation2 + $0xe0] sm:$0xff]
        %v2420 = vld [vmem:[#allocation2 + $0xe8] sm:$0xff]
        %v2421 = vld [vmem:[#allocation2 + $0xf0] sm:$0xff]
        %v2422 = vld [vmem:[#allocation2 + $0xf8] sm:$0xff]
        %v2423 = vld [vmem:[#allocation2 + $0x100] sm:$0xff]
        %v2424 = vld [vmem:[#allocation2 + $0x108] sm:$0xff]
        %v2425 = vld [vmem:[#allocation2 + $0x110] sm:$0xff]
        %v2426 = vld [vmem:[#allocation2 + $0x118] sm:$0xff]
        %v2427 = vld [vmem:[#allocation2 + $0x120] sm:$0xff]
        %v2428 = vld [vmem:[#allocation2 + $0x128] sm:$0xff]
        %v2429 = vld [vmem:[#allocation2 + $0x130] sm:$0xff]
        %v2430 = vld [vmem:[#allocation2 + $0x138] sm:$0xff]
        %v2431 = vld [vmem:[#allocation2 + $0x140] sm:$0xff]
        %v2432 = vld [vmem:[#allocation2 + $0x148] sm:$0xff]
        %v2433 = vld [vmem:[#allocation2 + $0x150] sm:$0xff]
        %v2434 = vld [vmem:[#allocation2 + $0x158] sm:$0xff]
        %v2435 = vld [vmem:[#allocation2 + $0x160] sm:$0xff]
        %v2436 = vld [vmem:[#allocation2 + $0x168] sm:$0xff]
        %v2437 = vld [vmem:[#allocation2 + $0x170] sm:$0xff]
        %v2438 = vld [vmem:[#allocation2 + $0x178] sm:$0xff]
        %v2439 = vld [vmem:[#allocation2 + $0x180] sm:$0xff]
        %v2440 = vld [vmem:[#allocation2 + $0x188] sm:$0xff]
        %v2441 = vld [vmem:[#allocation2 + $0x190] sm:$0xff]
        %v2442 = vld [vmem:[#allocation2 + $0x198] sm:$0xff]
        %v2443 = vld [vmem:[#allocation2 + $0x1a0] sm:$0xff]
        %v2444 = vld [vmem:[#allocation2 + $0x1a8] sm:$0xff]
        %s2445 = scalar_lea.vmem [#allocation7], 384
        %v2446 = vld [vmem:[%s2445] sm:$0xf]
        %v2447 = vld [vmem:[%s2445 + $0x4] sm:$0xf]
        %v2448 = vld [vmem:[%s2445 + $0x8] sm:$0xf]
        %v2449 = vld [vmem:[%s2445 + $0xc] sm:$0xf]
        %v2450 = vld [vmem:[%s2445 + $0x10] sm:$0xf]
        %v2451 = vld [vmem:[%s2445 + $0x14] sm:$0xf]
        %v2452 = vld [vmem:[%s2445 + $0x18] sm:$0xf]
        %v2453 = vld [vmem:[%s2445 + $0x1c] sm:$0xf]
        %v2454 = vld [vmem:[%s2445 + $0x20] sm:$0xf]
        %v2455 = vld [vmem:[%s2445 + $0x24] sm:$0xf]
        %v2456 = vld [vmem:[%s2445 + $0x28] sm:$0xf]
        %v2457 = vld [vmem:[%s2445 + $0x2c] sm:$0xf]
        %v2458 = vld [vmem:[%s2445 + $0x30] sm:$0xf]
        %v2459 = vld [vmem:[%s2445 + $0x34] sm:$0xf]
        %v2460 = vld [vmem:[%s2445 + $0x38] sm:$0xf]
        %v2461 = vld [vmem:[%s2445 + $0x3c] sm:$0xf]
        %v2462 = vld [vmem:[%s2445 + $0x40] sm:$0xf]
        %v2463 = vld [vmem:[%s2445 + $0x44] sm:$0xf]
        %v2464 = vld [vmem:[%s2445 + $0x48] sm:$0xf]
        %v2465 = vld [vmem:[%s2445 + $0x4c] sm:$0xf]
        %v2466 = vld [vmem:[%s2445 + $0x50] sm:$0xf]
        %v2467 = vld [vmem:[%s2445 + $0x54] sm:$0xf]
        %v2468 = vld [vmem:[%s2445 + $0x58] sm:$0xf]
        %v2469 = vld [vmem:[%s2445 + $0x5c] sm:$0xf]
        %v2470 = vld [vmem:[%s2445 + $0x60] sm:$0xf]
        %v2471 = vld [vmem:[%s2445 + $0x64] sm:$0xf]
        %v2472 = vld [vmem:[%s2445 + $0x68] sm:$0xf]
        %v2473 = vld [vmem:[%s2445 + $0x6c] sm:$0xf]
        %v2474 = vld [vmem:[%s2445 + $0x70] sm:$0xf]
        %v2475 = vld [vmem:[%s2445 + $0x74] sm:$0xf]
        %v2476 = vld [vmem:[%s2445 + $0x78] sm:$0xf]
        %v2477 = vld [vmem:[%s2445 + $0x7c] sm:$0xf]
        %v2478 = vld [vmem:[%s2445 + $0x80] sm:$0xf]
        %v2479 = vld [vmem:[%s2445 + $0x84] sm:$0xf]
        %v2480 = vld [vmem:[%s2445 + $0x88] sm:$0xf]
        %v2481 = vld [vmem:[%s2445 + $0x8c] sm:$0xf]
        %v2482 = vld [vmem:[%s2445 + $0x90] sm:$0xf]
        %v2483 = vld [vmem:[%s2445 + $0x94] sm:$0xf]
        %v2484 = vld [vmem:[%s2445 + $0x98] sm:$0xf]
        %v2485 = vld [vmem:[%s2445 + $0x9c] sm:$0xf]
        %v2486 = vld [vmem:[%s2445 + $0xa0] sm:$0xf]
        %v2487 = vld [vmem:[%s2445 + $0xa4] sm:$0xf]
        %v2488 = vld [vmem:[%s2445 + $0xa8] sm:$0xf]
        %v2489 = vld [vmem:[%s2445 + $0xac] sm:$0xf]
        %v2490 = vld [vmem:[%s2445 + $0xb0] sm:$0xf]
        %v2491 = vld [vmem:[%s2445 + $0xb4] sm:$0xf]
        %v2492 = vld [vmem:[%s2445 + $0xb8] sm:$0xf]
        %v2493 = vld [vmem:[%s2445 + $0xbc] sm:$0xf]
        %v2542 = vunpack.c.l.b16 %v2446
        %v2543 = vunpack.c.l.b16 %v2447
        %v2544 = vunpack.c.l.b16 %v2448
        %v2545 = vunpack.c.l.b16 %v2449
        %v2546 = vunpack.c.l.b16 %v2450
        %v2547 = vunpack.c.l.b16 %v2451
        %v2548 = vunpack.c.l.b16 %v2452
        %v2549 = vunpack.c.l.b16 %v2453
        %v2550 = vunpack.c.l.b16 %v2454
        %v2551 = vunpack.c.l.b16 %v2455
        %v2552 = vunpack.c.l.b16 %v2456
        %v2553 = vunpack.c.l.b16 %v2457
        %v2554 = vunpack.c.l.b16 %v2458
        %v2555 = vunpack.c.l.b16 %v2459
        %v2556 = vunpack.c.l.b16 %v2460
        %v2557 = vunpack.c.l.b16 %v2461
        %v2558 = vunpack.c.l.b16 %v2462
        %v2559 = vunpack.c.l.b16 %v2463
        %v2560 = vunpack.c.l.b16 %v2464
        %v2561 = vunpack.c.l.b16 %v2465
        %v2562 = vunpack.c.l.b16 %v2466
        %v2563 = vunpack.c.l.b16 %v2467
        %v2564 = vunpack.c.l.b16 %v2468
        %v2565 = vunpack.c.l.b16 %v2469
        %v2566 = vunpack.c.l.b16 %v2470
        %v2567 = vunpack.c.l.b16 %v2471
        %v2568 = vunpack.c.l.b16 %v2472
        %v2569 = vunpack.c.l.b16 %v2473
        %v2570 = vunpack.c.l.b16 %v2474
        %v2571 = vunpack.c.l.b16 %v2475
        %v2572 = vunpack.c.l.b16 %v2476
        %v2573 = vunpack.c.l.b16 %v2477
        %v2574 = vunpack.c.l.b16 %v2478
        %v2575 = vunpack.c.l.b16 %v2479
        %v2576 = vunpack.c.l.b16 %v2480
        %v2577 = vunpack.c.l.b16 %v2481
        %v2578 = vunpack.c.l.b16 %v2482
        %v2579 = vunpack.c.l.b16 %v2483
        %v2580 = vunpack.c.l.b16 %v2484
        %v2581 = vunpack.c.l.b16 %v2485
        %v2582 = vunpack.c.l.b16 %v2486
        %v2583 = vunpack.c.l.b16 %v2487
        %v2584 = vunpack.c.l.b16 %v2488
        %v2585 = vunpack.c.l.b16 %v2489
        %v2586 = vunpack.c.l.b16 %v2490
        %v2587 = vunpack.c.l.b16 %v2491
        %v2588 = vunpack.c.l.b16 %v2492
        %v2589 = vunpack.c.l.b16 %v2493
        %v2590 = vpack.c.b16 %v2543, %v2542
        %v2591 = vpack.c.b16 %v2545, %v2544
        %v2592 = vpack.c.b16 %v2547, %v2546
        %v2593 = vpack.c.b16 %v2549, %v2548
        %v2594 = vpack.c.b16 %v2551, %v2550
        %v2595 = vpack.c.b16 %v2553, %v2552
        %v2596 = vpack.c.b16 %v2555, %v2554
        %v2597 = vpack.c.b16 %v2557, %v2556
        %v2598 = vpack.c.b16 %v2559, %v2558
        %v2599 = vpack.c.b16 %v2561, %v2560
        %v2600 = vpack.c.b16 %v2563, %v2562
        %v2601 = vpack.c.b16 %v2565, %v2564
        %v2602 = vpack.c.b16 %v2567, %v2566
        %v2603 = vpack.c.b16 %v2569, %v2568
        %v2604 = vpack.c.b16 %v2571, %v2570
        %v2605 = vpack.c.b16 %v2573, %v2572
        %v2606 = vpack.c.b16 %v2575, %v2574
        %v2607 = vpack.c.b16 %v2577, %v2576
        %v2608 = vpack.c.b16 %v2579, %v2578
        %v2609 = vpack.c.b16 %v2581, %v2580
        %v2610 = vpack.c.b16 %v2583, %v2582
        %v2611 = vpack.c.b16 %v2585, %v2584
        %v2612 = vpack.c.b16 %v2587, %v2586
        %v2613 = vpack.c.b16 %v2589, %v2588
        %2638 = vmatprep.subr.bf16.mxu0 0
        %2639 = vmatpush1.bf16.msra.mxu0 %v2590
        %2640 = vmatprep.subr.bf16.mxu0 0
        %2641 = vmatpush1.bf16.msra.mxu0 %v2591
        %2642 = vmatprep.subr.bf16.mxu0 0
        %2643 = vmatpush1.bf16.msra.mxu0 %v2592
        %2644 = vmatprep.subr.bf16.mxu0 0
        %2645 = vmatpush1.bf16.msra.mxu0 %v2593
        %2646 = vmatprep.subr.bf16.mxu0 0
        %2647 = vmatpush1.bf16.msra.mxu0 %v2594
        %2648 = vmatprep.subr.bf16.mxu0 0
        %2649 = vmatpush1.bf16.msra.mxu0 %v2595
        %2650 = vmatprep.subr.bf16.mxu0 0
        %2651 = vmatpush1.bf16.msra.mxu0 %v2596
        %2652 = vmatprep.subr.bf16.mxu0 0
        %2653 = vmatpush1.bf16.msra.mxu0 %v2597
        %2654 = vmatprep.subr.bf16.mxu0 0
        %2655 = vmatpush1.bf16.msra.mxu0 %v2598
        %2656 = vmatprep.subr.bf16.mxu0 0
        %2657 = vmatpush1.bf16.msra.mxu0 %v2599
        %2658 = vmatprep.subr.bf16.mxu0 0
        %2659 = vmatpush1.bf16.msra.mxu0 %v2600
        %2660 = vmatprep.subr.bf16.mxu0 0
        %2661 = vmatpush1.bf16.msra.mxu0 %v2601
        %2662 = vmatprep.subr.bf16.mxu0 0
        %2663 = vmatpush1.bf16.msra.mxu0 %v2602
        %2664 = vmatprep.subr.bf16.mxu0 0
        %2665 = vmatpush1.bf16.msra.mxu0 %v2603
        %2666 = vmatprep.subr.bf16.mxu0 0
        %2667 = vmatpush1.bf16.msra.mxu0 %v2604
        %2668 = vmatprep.subr.bf16.mxu0 0
        %2669 = vmatpush1.bf16.msra.mxu0 %v2605
        %2670 = vmatprep.mubr.bf16.mxu0 %v2398
        %2671 = vmatmul.mubr.bf16.gmra.mrb[0].mxu0 %v2397
        %v2672 = vpop.f32.mrb[0].mxu0
        %v2673 = vadd.f32 0.0, %v2672
        %v2674 = vpop.f32.mrb[0].mxu0
        %v2675 = vpop.f32.mrb[0].mxu0
        %v2676 = vadd.f32 0.0, %v2675
        %v2677 = vpop.f32.mrb[0].mxu0
        %2678 = vmatprep.mubr.bf16.mxu0 %v2401
        %2679 = vmatmul.mubr.bf16.gmra.mrb[0].mxu0 %v2400
        %v2680 = vpop.f32.mrb[0].mxu0
        %v2681 = vadd.f32 0.0, %v2680
        %v2682 = vpop.f32.mrb[0].mxu0
        %v2683 = vpop.f32.mrb[0].mxu0
        %v2684 = vadd.f32 0.0, %v2683
        %v2685 = vpop.f32.mrb[0].mxu0
        %2686 = vmatprep.mubr.bf16.mxu0 %v2404
        %2687 = vmatmul.mubr.bf16.gmra.mrb[0].mxu0 %v2403
        %v2688 = vpop.f32.mrb[0].mxu0
        %v2689 = vadd.f32 0.0, %v2688
        %v2690 = vpop.f32.mrb[0].mxu0
        %v2691 = vpop.f32.mrb[0].mxu0
        %v2692 = vadd.f32 0.0, %v2691
        %v2693 = vpop.f32.mrb[0].mxu0
        %2694 = vmatprep.mubr.bf16.mxu0 %v2407
        %2695 = vmatmul.mubr.bf16.gmra.mrb[0].mxu0 %v2406
        %v2696 = vpop.f32.mrb[0].mxu0
        %v2697 = vadd.f32 0.0, %v2696
        %v2698 = vpop.f32.mrb[0].mxu0
        %v2699 = vpop.f32.mrb[0].mxu0
        %v2700 = vadd.f32 0.0, %v2699
        %v2701 = vpop.f32.mrb[0].mxu0
        %2702 = vmatprep.mubr.bf16.mxu0 %v2410
        %2703 = vmatmul.mubr.bf16.gmra.mrb[0].mxu0 %v2409
        %v2704 = vpop.f32.mrb[0].mxu0
        %v2705 = vadd.f32 0.0, %v2704
        %v2706 = vpop.f32.mrb[0].mxu0
        %v2707 = vpop.f32.mrb[0].mxu0
        %v2708 = vadd.f32 0.0, %v2707
        %v2709 = vpop.f32.mrb[0].mxu0
        %2710 = vmatprep.mubr.bf16.mxu0 %v2413
        %2711 = vmatmul.mubr.bf16.gmra.mrb[0].mxu0 %v2412
        %v2712 = vpop.f32.mrb[0].mxu0
        %v2713 = vadd.f32 0.0, %v2712
        %v2714 = vpop.f32.mrb[0].mxu0
        %v2715 = vpop.f32.mrb[0].mxu0
        %v2716 = vadd.f32 0.0, %v2715
        %v2717 = vpop.f32.mrb[0].mxu0
        %2718 = vmatprep.mubr.bf16.mxu0 %v2416
        %2719 = vmatmul.mubr.bf16.gmra.mrb[0].mxu0 %v2415
        %v2720 = vpop.f32.mrb[0].mxu0
        %v2721 = vadd.f32 0.0, %v2720
        %v2722 = vpop.f32.mrb[0].mxu0
        %v2723 = vpop.f32.mrb[0].mxu0
        %v2724 = vadd.f32 0.0, %v2723
        %v2725 = vpop.f32.mrb[0].mxu0
        %2726 = vmatprep.mubr.bf16.mxu0 %v2419
        %2727 = vmatmul.mubr.bf16.gmra.mrb[0].mxu0 %v2418
        %v2728 = vpop.f32.mrb[0].mxu0
        %v2729 = vadd.f32 0.0, %v2728
        %v2730 = vpop.f32.mrb[0].mxu0
        %v2731 = vpop.f32.mrb[0].mxu0
        %v2732 = vadd.f32 0.0, %v2731
        %v2733 = vpop.f32.mrb[0].mxu0
        %2734 = vmatprep.mubr.bf16.mxu0 %v2422
        %2735 = vmatmul.mubr.bf16.gmra.mrb[0].mxu0 %v2421
        %v2736 = vpop.f32.mrb[0].mxu0
        %v2737 = vadd.f32 0.0, %v2736
        %v2738 = vpop.f32.mrb[0].mxu0
        %v2739 = vpop.f32.mrb[0].mxu0
        %v2740 = vadd.f32 0.0, %v2739
        %v2741 = vpop.f32.mrb[0].mxu0
        %2742 = vmatprep.mubr.bf16.mxu0 %v2425
        %2743 = vmatmul.mubr.bf16.gmra.mrb[0].mxu0 %v2424
        %v2744 = vpop.f32.mrb[0].mxu0
        %v2745 = vadd.f32 0.0, %v2744
        %v2746 = vpop.f32.mrb[0].mxu0
        %v2747 = vpop.f32.mrb[0].mxu0
        %v2748 = vadd.f32 0.0, %v2747
        %v2749 = vpop.f32.mrb[0].mxu0
        %2750 = vmatprep.mubr.bf16.mxu0 %v2428
        %2751 = vmatmul.mubr.bf16.gmra.mrb[0].mxu0 %v2427
        %v2752 = vpop.f32.mrb[0].mxu0
        %v2753 = vadd.f32 0.0, %v2752
        %v2754 = vpop.f32.mrb[0].mxu0
        %v2755 = vpop.f32.mrb[0].mxu0
        %v2756 = vadd.f32 0.0, %v2755
        %v2757 = vpop.f32.mrb[0].mxu0
        %2758 = vmatprep.mubr.bf16.mxu0 %v2431
        %2759 = vmatmul.mubr.bf16.gmra.mrb[0].mxu0 %v2430
        %v2760 = vpop.f32.mrb[0].mxu0
        %v2761 = vadd.f32 0.0, %v2760
        %v2762 = vpop.f32.mrb[0].mxu0
        %v2763 = vpop.f32.mrb[0].mxu0
        %v2764 = vadd.f32 0.0, %v2763
        %v2765 = vpop.f32.mrb[0].mxu0
        %2766 = vmatprep.mubr.bf16.mxu0 %v2434
        %2767 = vmatmul.mubr.bf16.gmra.mrb[0].mxu0 %v2433
        %v2768 = vpop.f32.mrb[0].mxu0
        %v2769 = vadd.f32 0.0, %v2768
        %v2770 = vpop.f32.mrb[0].mxu0
        %v2771 = vpop.f32.mrb[0].mxu0
        %v2772 = vadd.f32 0.0, %v2771
        %v2773 = vpop.f32.mrb[0].mxu0
        %2774 = vmatprep.mubr.bf16.mxu0 %v2437
        %2775 = vmatmul.mubr.bf16.gmra.mrb[0].mxu0 %v2436
        %v2776 = vpop.f32.mrb[0].mxu0
        %v2777 = vadd.f32 0.0, %v2776
        %v2778 = vpop.f32.mrb[0].mxu0
        %v2779 = vpop.f32.mrb[0].mxu0
        %v2780 = vadd.f32 0.0, %v2779
        %v2781 = vpop.f32.mrb[0].mxu0
        %2782 = vmatprep.mubr.bf16.mxu0 %v2440
        %2783 = vmatmul.mubr.bf16.gmra.mrb[0].mxu0 %v2439
        %v2784 = vpop.f32.mrb[0].mxu0
        %v2785 = vadd.f32 0.0, %v2784
        %v2786 = vpop.f32.mrb[0].mxu0
        %v2787 = vpop.f32.mrb[0].mxu0
        %v2788 = vadd.f32 0.0, %v2787
        %v2789 = vpop.f32.mrb[0].mxu0
        %2790 = vmatprep.mubr.bf16.mxu0 %v2443
        %2791 = vmatmul.mubr.bf16.gmra.mrb[0].mxu0 %v2442
        %v2792 = vpop.f32.mrb[0].mxu0
        %v2793 = vadd.f32 0.0, %v2792
        %v2794 = vpop.f32.mrb[0].mxu0
        %v2795 = vpop.f32.mrb[0].mxu0
        %v2796 = vadd.f32 0.0, %v2795
        %v2797 = vpop.f32.mrb[0].mxu0
        %2798 = vdwg.mxu0
        %2799 = vmatprep.subr.bf16.mxu0 0
        %2800 = vmatpush1.bf16.msra.mxu0 %v2606
        %2801 = vmatprep.subr.bf16.mxu0 0
        %2802 = vmatpush1.bf16.msra.mxu0 %v2607
        %2803 = vmatprep.subr.bf16.mxu0 0
        %2804 = vmatpush1.bf16.msra.mxu0 %v2608
        %2805 = vmatprep.subr.bf16.mxu0 0
        %2806 = vmatpush1.bf16.msra.mxu0 %v2609
        %2807 = vmatprep.subr.bf16.mxu0 0
        %2808 = vmatpush1.bf16.msra.mxu0 %v2610
        %2809 = vmatprep.subr.bf16.mxu0 0
        %2810 = vmatpush1.bf16.msra.mxu0 %v2611
        %2811 = vmatprep.subr.bf16.mxu0 0
        %2812 = vmatpush1.bf16.msra.mxu0 %v2612
        %2813 = vmatprep.subr.bf16.mxu0 0
        %2814 = vmatpush1.bf16.msra.mxu0 %v2613
        %2815 = vmatprep.subr.bf16.mxu0 0
        %2816 = vmatpush1.bf16.msra.mxu0 0
        %2817 = vmatprep.subr.bf16.mxu0 0
        %2818 = vmatpush1.bf16.msra.mxu0 0
        %2819 = vmatprep.subr.bf16.mxu0 0
        %2820 = vmatpush1.bf16.msra.mxu0 0
        %2821 = vmatprep.subr.bf16.mxu0 0
        %2822 = vmatpush1.bf16.msra.mxu0 0
        %2823 = vmatprep.subr.bf16.mxu0 0
        %2824 = vmatpush1.bf16.msra.mxu0 0
        %2825 = vmatprep.subr.bf16.mxu0 0
        %2826 = vmatpush1.bf16.msra.mxu0 0
        %2827 = vmatprep.subr.bf16.mxu0 0
        %2828 = vmatpush1.bf16.msra.mxu0 0
        %2829 = vmatprep.subr.bf16.mxu0 0
        %2830 = vmatpush1.bf16.msra.mxu0 0
        %2831 = vmatprep.mubr.bf16.mxu0 0
        %2832 = vmatmul.mubr.bf16.gmra.mrb[0].mxu0 %v2399
        %v2833 = vpop.f32.mrb[0].mxu0
        %v2834 = vadd.f32 %v2673, %v2833
        %v2835 = vpop.f32.mrb[0].mxu0
        %v2836 = vpop.f32.mrb[0].mxu0
        %v2837 = vadd.f32 %v2676, %v2836
        %v2838 = vpop.f32.mrb[0].mxu0
        %2839 = vmatprep.mubr.bf16.mxu0 0
        %2840 = vmatmul.mubr.bf16.gmra.mrb[0].mxu0 %v2402
        %v2841 = vpop.f32.mrb[0].mxu0
        %v2842 = vadd.f32 %v2681, %v2841
        %v2843 = vpop.f32.mrb[0].mxu0
        %v2844 = vpop.f32.mrb[0].mxu0
        %v2845 = vadd.f32 %v2684, %v2844
        %v2846 = vpop.f32.mrb[0].mxu0
        %2847 = vmatprep.mubr.bf16.mxu0 0
        %2848 = vmatmul.mubr.bf16.gmra.mrb[0].mxu0 %v2405
        %v2849 = vpop.f32.mrb[0].mxu0
        %v2850 = vadd.f32 %v2689, %v2849
        %v2851 = vpop.f32.mrb[0].mxu0
        %v2852 = vpop.f32.mrb[0].mxu0
        %v2853 = vadd.f32 %v2692, %v2852
        %v2854 = vpop.f32.mrb[0].mxu0
        %2855 = vmatprep.mubr.bf16.mxu0 0
        %2856 = vmatmul.mubr.bf16.gmra.mrb[0].mxu0 %v2408
        %v2857 = vpop.f32.mrb[0].mxu0
        %v2858 = vadd.f32 %v2697, %v2857
        %v2859 = vpop.f32.mrb[0].mxu0
        %v2860 = vpop.f32.mrb[0].mxu0
        %v2861 = vadd.f32 %v2700, %v2860
        %v2862 = vpop.f32.mrb[0].mxu0
        %2863 = vmatprep.mubr.bf16.mxu0 0
        %2864 = vmatmul.mubr.bf16.gmra.mrb[0].mxu0 %v2411
        %v2865 = vpop.f32.mrb[0].mxu0
        %v2866 = vadd.f32 %v2705, %v2865
        %v2867 = vpop.f32.mrb[0].mxu0
        %v2868 = vpop.f32.mrb[0].mxu0
        %v2869 = vadd.f32 %v2708, %v2868
        %v2870 = vpop.f32.mrb[0].mxu0
        %2871 = vmatprep.mubr.bf16.mxu0 0
        %2872 = vmatmul.mubr.bf16.gmra.mrb[0].mxu0 %v2414
        %v2873 = vpop.f32.mrb[0].mxu0
        %v2874 = vadd.f32 %v2713, %v2873
        %v2875 = vpop.f32.mrb[0].mxu0
        %v2876 = vpop.f32.mrb[0].mxu0
        %v2877 = vadd.f32 %v2716, %v2876
        %v2878 = vpop.f32.mrb[0].mxu0
        %2879 = vmatprep.mubr.bf16.mxu0 0
        %2880 = vmatmul.mubr.bf16.gmra.mrb[0].mxu0 %v2417
        %v2881 = vpop.f32.mrb[0].mxu0
        %v2882 = vadd.f32 %v2721, %v2881
        %v2883 = vpop.f32.mrb[0].mxu0
        %v2884 = vpop.f32.mrb[0].mxu0
        %v2885 = vadd.f32 %v2724, %v2884
        %v2886 = vpop.f32.mrb[0].mxu0
        %2887 = vmatprep.mubr.bf16.mxu0 0
        %2888 = vmatmul.mubr.bf16.gmra.mrb[0].mxu0 %v2420
        %v2889 = vpop.f32.mrb[0].mxu0
        %v2890 = vadd.f32 %v2729, %v2889
        %v2891 = vpop.f32.mrb[0].mxu0
        %v2892 = vpop.f32.mrb[0].mxu0
        %v2893 = vadd.f32 %v2732, %v2892
        %v2894 = vpop.f32.mrb[0].mxu0
        %2895 = vmatprep.mubr.bf16.mxu0 0
        %2896 = vmatmul.mubr.bf16.gmra.mrb[0].mxu0 %v2423
        %v2897 = vpop.f32.mrb[0].mxu0
        %v2898 = vadd.f32 %v2737, %v2897
        %v2899 = vpop.f32.mrb[0].mxu0
        %v2900 = vpop.f32.mrb[0].mxu0
        %v2901 = vadd.f32 %v2740, %v2900
        %v2902 = vpop.f32.mrb[0].mxu0
        %2903 = vmatprep.mubr.bf16.mxu0 0
        %2904 = vmatmul.mubr.bf16.gmra.mrb[0].mxu0 %v2426
        %v2905 = vpop.f32.mrb[0].mxu0
        %v2906 = vadd.f32 %v2745, %v2905
        %v2907 = vpop.f32.mrb[0].mxu0
        %v2908 = vpop.f32.mrb[0].mxu0
        %v2909 = vadd.f32 %v2748, %v2908
        %v2910 = vpop.f32.mrb[0].mxu0
        %2911 = vmatprep.mubr.bf16.mxu0 0
        %2912 = vmatmul.mubr.bf16.gmra.mrb[0].mxu0 %v2429
        %v2913 = vpop.f32.mrb[0].mxu0
        %v2914 = vadd.f32 %v2753, %v2913
        %v2915 = vpop.f32.mrb[0].mxu0
        %v2916 = vpop.f32.mrb[0].mxu0
        %v2917 = vadd.f32 %v2756, %v2916
        %v2918 = vpop.f32.mrb[0].mxu0
        %2919 = vmatprep.mubr.bf16.mxu0 0
        %2920 = vmatmul.mubr.bf16.gmra.mrb[0].mxu0 %v2432
        %v2921 = vpop.f32.mrb[0].mxu0
        %v2922 = vadd.f32 %v2761, %v2921
        %v2923 = vpop.f32.mrb[0].mxu0
        %v2924 = vpop.f32.mrb[0].mxu0
        %v2925 = vadd.f32 %v2764, %v2924
        %v2926 = vpop.f32.mrb[0].mxu0
        %2927 = vmatprep.mubr.bf16.mxu0 0
        %2928 = vmatmul.mubr.bf16.gmra.mrb[0].mxu0 %v2435
        %v2929 = vpop.f32.mrb[0].mxu0
        %v2930 = vadd.f32 %v2769, %v2929
        %v2931 = vpop.f32.mrb[0].mxu0
        %v2932 = vpop.f32.mrb[0].mxu0
        %v2933 = vadd.f32 %v2772, %v2932
        %v2934 = vpop.f32.mrb[0].mxu0
        %2935 = vmatprep.mubr.bf16.mxu0 0
        %2936 = vmatmul.mubr.bf16.gmra.mrb[0].mxu0 %v2438
        %v2937 = vpop.f32.mrb[0].mxu0
        %v2938 = vadd.f32 %v2777, %v2937
        %v2939 = vpop.f32.mrb[0].mxu0
        %v2940 = vpop.f32.mrb[0].mxu0
        %v2941 = vadd.f32 %v2780, %v2940
        %v2942 = vpop.f32.mrb[0].mxu0
        %2943 = vmatprep.mubr.bf16.mxu0 0
        %2944 = vmatmul.mubr.bf16.gmra.mrb[0].mxu0 %v2441
        %v2945 = vpop.f32.mrb[0].mxu0
        %v2946 = vadd.f32 %v2785, %v2945
        %v2947 = vpop.f32.mrb[0].mxu0
        %v2948 = vpop.f32.mrb[0].mxu0
        %v2949 = vadd.f32 %v2788, %v2948
        %v2950 = vpop.f32.mrb[0].mxu0
        %2951 = vmatprep.mubr.bf16.mxu0 0
        %2952 = vmatmul.mubr.bf16.gmra.mrb[0].mxu0 %v2444
        %v2953 = vpop.f32.mrb[0].mxu0
        %v2954 = vadd.f32 %v2793, %v2953
        %v2955 = vpop.f32.mrb[0].mxu0
        %v2956 = vpop.f32.mrb[0].mxu0
        %v2957 = vadd.f32 %v2796, %v2956
        %v2958 = vpop.f32.mrb[0].mxu0
        %2959 = vdwg.mxu0
        %v2960 = vadd.f32 %v2271, %v2834
        %v2961 = vadd.f32 %v2274, %v2837
        %v2962 = vadd.f32 %v2279, %v2842
        %v2963 = vadd.f32 %v2282, %v2845
        %v2964 = vadd.f32 %v2287, %v2850
        %v2965 = vadd.f32 %v2290, %v2853
        %v2966 = vadd.f32 %v2295, %v2858
        %v2967 = vadd.f32 %v2298, %v2861
        %v2968 = vadd.f32 %v2303, %v2866
        %v2969 = vadd.f32 %v2306, %v2869
        %v2970 = vadd.f32 %v2311, %v2874
        %v2971 = vadd.f32 %v2314, %v2877
        %v2972 = vadd.f32 %v2319, %v2882
        %v2973 = vadd.f32 %v2322, %v2885
        %v2974 = vadd.f32 %v2327, %v2890
        %v2975 = vadd.f32 %v2330, %v2893
        %v2976 = vadd.f32 %v2335, %v2898
        %v2977 = vadd.f32 %v2338, %v2901
        %v2978 = vadd.f32 %v2343, %v2906
        %v2979 = vadd.f32 %v2346, %v2909
        %v2980 = vadd.f32 %v2351, %v2914
        %v2981 = vadd.f32 %v2354, %v2917
        %v2982 = vadd.f32 %v2359, %v2922
        %v2983 = vadd.f32 %v2362, %v2925
        %v2984 = vadd.f32 %v2367, %v2930
        %v2985 = vadd.f32 %v2370, %v2933
        %v2986 = vadd.f32 %v2375, %v2938
        %v2987 = vadd.f32 %v2378, %v2941
        %v2988 = vadd.f32 %v2383, %v2946
        %v2989 = vadd.f32 %v2386, %v2949
        %v2990 = vadd.f32 %v2391, %v2954
        %v2991 = vadd.f32 %v2394, %v2957
        %v2993 = vlaneseq
        %v2994 = vshrl.u32 %v2993, 7
        %v2995 = vsub.s32 0, %v2994
        %v2996 = vrot.slane %v1316, %v2995
        %v2998 = vadd.f32 %v2960, %v2996
        %v2999 = vadd.f32 %v2961, %v2996
        %v3000 = vadd.f32 %v2962, %v2996
        %v3001 = vadd.f32 %v2963, %v2996
        %v3002 = vadd.f32 %v2964, %v2996
        %v3003 = vadd.f32 %v2965, %v2996
        %v3004 = vadd.f32 %v2966, %v2996
        %v3005 = vadd.f32 %v2967, %v2996
        %v3006 = vadd.f32 %v2968, %v2996
        %v3007 = vadd.f32 %v2969, %v2996
        %v3008 = vadd.f32 %v2970, %v2996
        %v3009 = vadd.f32 %v2971, %v2996
        %v3010 = vadd.f32 %v2972, %v2996
        %v3011 = vadd.f32 %v2973, %v2996
        %v3012 = vadd.f32 %v2974, %v2996
        %v3013 = vadd.f32 %v2975, %v2996
        %v3014 = vadd.f32 %v2976, %v2996
        %v3015 = vadd.f32 %v2977, %v2996
        %v3016 = vadd.f32 %v2978, %v2996
        %v3017 = vadd.f32 %v2979, %v2996
        %v3018 = vadd.f32 %v2980, %v2996
        %v3019 = vadd.f32 %v2981, %v2996
        %v3020 = vadd.f32 %v2982, %v2996
        %v3021 = vadd.f32 %v2983, %v2996
        %v3022 = vadd.f32 %v2984, %v2996
        %v3023 = vadd.f32 %v2985, %v2996
        %v3024 = vadd.f32 %v2986, %v2996
        %v3025 = vadd.f32 %v2987, %v2996
        %v3026 = vadd.f32 %v2988, %v2996
        %v3027 = vadd.f32 %v2989, %v2996
        %v3028 = vadd.f32 %v2990, %v2996
        %v3029 = vadd.f32 %v2991, %v2996
        %v3030 = vmax.f32 %v2998, 0.0
        %v3031 = vmax.f32 %v2999, 0.0
        %v3032 = vmax.f32 %v3000, 0.0
        %v3033 = vmax.f32 %v3001, 0.0
        %v3034 = vmax.f32 %v3002, 0.0
        %v3035 = vmax.f32 %v3003, 0.0
        %v3036 = vmax.f32 %v3004, 0.0
        %v3037 = vmax.f32 %v3005, 0.0
        %v3038 = vmax.f32 %v3006, 0.0
        %v3039 = vmax.f32 %v3007, 0.0
        %v3040 = vmax.f32 %v3008, 0.0
        %v3041 = vmax.f32 %v3009, 0.0
        %v3042 = vmax.f32 %v3010, 0.0
        %v3043 = vmax.f32 %v3011, 0.0
        %v3044 = vmax.f32 %v3012, 0.0
        %v3045 = vmax.f32 %v3013, 0.0
        %v3046 = vmax.f32 %v3014, 0.0
        %v3047 = vmax.f32 %v3015, 0.0
        %v3048 = vmax.f32 %v3016, 0.0
        %v3049 = vmax.f32 %v3017, 0.0
        %v3050 = vmax.f32 %v3018, 0.0
        %v3051 = vmax.f32 %v3019, 0.0
        %v3052 = vmax.f32 %v3020, 0.0
        %v3053 = vmax.f32 %v3021, 0.0
        %v3054 = vmax.f32 %v3022, 0.0
        %v3055 = vmax.f32 %v3023, 0.0
        %v3056 = vmax.f32 %v3024, 0.0
        %v3057 = vmax.f32 %v3025, 0.0
        %v3058 = vmax.f32 %v3026, 0.0
        %v3059 = vmax.f32 %v3027, 0.0
        %v3060 = vmax.f32 %v3028, 0.0
        %v3061 = vmax.f32 %v3029, 0.0
        %3062 = vst [vmem:[#allocation3] sm:$0xff] 0
        %3063 = vst [vmem:[#allocation3 + $0x8] sm:$0xff] 0
        %3064 = vst [vmem:[#allocation3 + $0x10] sm:$0xff] 0
        %3065 = vst [vmem:[#allocation3 + $0x198] sm:$0xff] 0
        %3066 = vst [vmem:[#allocation3 + $0x1a0] sm:$0xff] 0
        %3067 = vst [vmem:[#allocation3 + $0x1a8] sm:$0xff] 0
        %v3068 = vrot.slane %v3030, 7
        %v3069 = vrot.slane %v3031, 7
        %v3070 = vrot.slane %v3032, 7
        %v3071 = vrot.slane %v3033, 7
        %v3072 = vrot.slane %v3034, 7
        %v3073 = vrot.slane %v3035, 7
        %v3074 = vrot.slane %v3036, 7
        %v3075 = vrot.slane %v3037, 7
        %v3076 = vrot.slane %v3038, 7
        %v3077 = vrot.slane %v3039, 7
        %v3078 = vrot.slane %v3040, 7
        %v3079 = vrot.slane %v3041, 7
        %v3080 = vrot.slane %v3042, 7
        %v3081 = vrot.slane %v3043, 7
        %v3082 = vrot.slane %v3044, 7
        %v3083 = vrot.slane %v3045, 7
        %v3084 = vrot.slane %v3046, 7
        %v3085 = vrot.slane %v3047, 7
        %v3086 = vrot.slane %v3048, 7
        %v3087 = vrot.slane %v3049, 7
        %v3088 = vrot.slane %v3050, 7
        %v3089 = vrot.slane %v3051, 7
        %v3090 = vrot.slane %v3052, 7
        %v3091 = vrot.slane %v3053, 7
        %v3092 = vrot.slane %v3054, 7
        %v3093 = vrot.slane %v3055, 7
        %v3094 = vrot.slane %v3056, 7
        %v3095 = vrot.slane %v3057, 7
        %v3096 = vrot.slane %v3058, 7
        %v3097 = vrot.slane %v3059, 7
        %v3098 = vrot.slane %v3060, 7
        %v3099 = vrot.slane %v3061, 7
        %v3100 = vsel %vm930, %v3098, %v3099
        %v3101 = vsel %vm930, %v3097, %v3098
        %v3102 = vsel %vm930, %v3096, %v3097
        %v3103 = vsel %vm930, %v3095, %v3096
        %v3104 = vsel %vm930, %v3094, %v3095
        %v3105 = vsel %vm930, %v3093, %v3094
        %v3106 = vsel %vm930, %v3092, %v3093
        %v3107 = vsel %vm930, %v3091, %v3092
        %v3108 = vsel %vm930, %v3090, %v3091
        %v3109 = vsel %vm930, %v3089, %v3090
        %v3110 = vsel %vm930, %v3088, %v3089
        %v3111 = vsel %vm930, %v3087, %v3088
        %v3112 = vsel %vm930, %v3086, %v3087
        %v3113 = vsel %vm930, %v3085, %v3086
        %v3114 = vsel %vm930, %v3084, %v3085
        %v3115 = vsel %vm930, %v3083, %v3084
        %v3116 = vsel %vm930, %v3082, %v3083
        %v3117 = vsel %vm930, %v3081, %v3082
        %v3118 = vsel %vm930, %v3080, %v3081
        %v3119 = vsel %vm930, %v3079, %v3080
        %v3120 = vsel %vm930, %v3078, %v3079
        %v3121 = vsel %vm930, %v3077, %v3078
        %v3122 = vsel %vm930, %v3076, %v3077
        %v3123 = vsel %vm930, %v3075, %v3076
        %v3124 = vsel %vm930, %v3074, %v3075
        %v3125 = vsel %vm930, %v3073, %v3074
        %v3126 = vsel %vm930, %v3072, %v3073
        %v3127 = vsel %vm930, %v3071, %v3072
        %v3128 = vsel %vm930, %v3070, %v3071
        %v3129 = vsel %vm930, %v3069, %v3070
        %v3130 = vsel %vm930, %v3068, %v3069
        %v3131 = vsel %vm930, %v3099, %v3068
        %v3132 = vsel %vm995, %v3131, 0.0
        %v3133 = vsel %vm996, %v3130, 0.0
        %v3134 = vsel %vm997, %v3129, 0.0
        %v3135 = vsel %vm998, %v3128, 0.0
        %v3136 = vsel %vm999, %v3127, 0.0
        %v3137 = vsel %vm1000, %v3126, 0.0
        %v3138 = vsel %vm1001, %v3125, 0.0
        %v3139 = vsel %vm1002, %v3124, 0.0
        %v3140 = vsel %vm1003, %v3123, 0.0
        %v3141 = vsel %vm1004, %v3122, 0.0
        %v3142 = vsel %vm1005, %v3121, 0.0
        %v3143 = vsel %vm1006, %v3120, 0.0
        %v3144 = vsel %vm1007, %v3119, 0.0
        %v3145 = vsel %vm1008, %v3118, 0.0
        %v3146 = vsel %vm1009, %v3117, 0.0
        %v3147 = vsel %vm1010, %v3116, 0.0
        %v3148 = vsel %vm1011, %v3115, 0.0
        %v3149 = vsel %vm1012, %v3114, 0.0
        %v3150 = vsel %vm1013, %v3113, 0.0
        %v3151 = vsel %vm1014, %v3112, 0.0
        %v3152 = vsel %vm1015, %v3111, 0.0
        %v3153 = vsel %vm1016, %v3110, 0.0
        %v3154 = vsel %vm1017, %v3109, 0.0
        %v3155 = vsel %vm1018, %v3108, 0.0
        %v3156 = vsel %vm1019, %v3107, 0.0
        %v3157 = vsel %vm1020, %v3106, 0.0
        %v3158 = vsel %vm1021, %v3105, 0.0
        %v3159 = vsel %vm1022, %v3104, 0.0
        %v3160 = vsel %vm1023, %v3103, 0.0
        %v3161 = vsel %vm1024, %v3102, 0.0
        %v3162 = vsel %vm1025, %v3101, 0.0
        %v3163 = vsel %vm1026, %v3100, 0.0
        %v3164 = vrot.slane %v3030, 1
        %v3165 = vrot.slane %v3031, 1
        %v3166 = vrot.slane %v3032, 1
        %v3167 = vrot.slane %v3033, 1
        %v3168 = vrot.slane %v3034, 1
        %v3169 = vrot.slane %v3035, 1
        %v3170 = vrot.slane %v3036, 1
        %v3171 = vrot.slane %v3037, 1
        %v3172 = vrot.slane %v3038, 1
        %v3173 = vrot.slane %v3039, 1
        %v3174 = vrot.slane %v3040, 1
        %v3175 = vrot.slane %v3041, 1
        %v3176 = vrot.slane %v3042, 1
        %v3177 = vrot.slane %v3043, 1
        %v3178 = vrot.slane %v3044, 1
        %v3179 = vrot.slane %v3045, 1
        %v3180 = vrot.slane %v3046, 1
        %v3181 = vrot.slane %v3047, 1
        %v3182 = vrot.slane %v3048, 1
        %v3183 = vrot.slane %v3049, 1
        %v3184 = vrot.slane %v3050, 1
        %v3185 = vrot.slane %v3051, 1
        %v3186 = vrot.slane %v3052, 1
        %v3187 = vrot.slane %v3053, 1
        %v3188 = vrot.slane %v3054, 1
        %v3189 = vrot.slane %v3055, 1
        %v3190 = vrot.slane %v3056, 1
        %v3191 = vrot.slane %v3057, 1
        %v3192 = vrot.slane %v3058, 1
        %v3193 = vrot.slane %v3059, 1
        %v3194 = vrot.slane %v3060, 1
        %v3195 = vrot.slane %v3061, 1
        %v3196 = vsel %vm1091, %v3194, %v3195
        %v3197 = vsel %vm1091, %v3193, %v3194
        %v3198 = vsel %vm1091, %v3192, %v3193
        %v3199 = vsel %vm1091, %v3191, %v3192
        %v3200 = vsel %vm1091, %v3190, %v3191
        %v3201 = vsel %vm1091, %v3189, %v3190
        %v3202 = vsel %vm1091, %v3188, %v3189
        %v3203 = vsel %vm1091, %v3187, %v3188
        %v3204 = vsel %vm1091, %v3186, %v3187
        %v3205 = vsel %vm1091, %v3185, %v3186
        %v3206 = vsel %vm1091, %v3184, %v3185
        %v3207 = vsel %vm1091, %v3183, %v3184
        %v3208 = vsel %vm1091, %v3182, %v3183
        %v3209 = vsel %vm1091, %v3181, %v3182
        %v3210 = vsel %vm1091, %v3180, %v3181
        %v3211 = vsel %vm1091, %v3179, %v3180
        %v3212 = vsel %vm1091, %v3178, %v3179
        %v3213 = vsel %vm1091, %v3177, %v3178
        %v3214 = vsel %vm1091, %v3176, %v3177
        %v3215 = vsel %vm1091, %v3175, %v3176
        %v3216 = vsel %vm1091, %v3174, %v3175
        %v3217 = vsel %vm1091, %v3173, %v3174
        %v3218 = vsel %vm1091, %v3172, %v3173
        %v3219 = vsel %vm1091, %v3171, %v3172
        %v3220 = vsel %vm1091, %v3170, %v3171
        %v3221 = vsel %vm1091, %v3169, %v3170
        %v3222 = vsel %vm1091, %v3168, %v3169
        %v3223 = vsel %vm1091, %v3167, %v3168
        %v3224 = vsel %vm1091, %v3166, %v3167
        %v3225 = vsel %vm1091, %v3165, %v3166
        %v3226 = vsel %vm1091, %v3164, %v3165
        %v3227 = vsel %vm1091, %v3195, %v3164
        %v3228 = vsel %vm1156, %v3226, 0.0
        %v3229 = vsel %vm1157, %v3225, 0.0
        %v3230 = vsel %vm1158, %v3224, 0.0
        %v3231 = vsel %vm1159, %v3223, 0.0
        %v3232 = vsel %vm1160, %v3222, 0.0
        %v3233 = vsel %vm1161, %v3221, 0.0
        %v3234 = vsel %vm1162, %v3220, 0.0
        %v3235 = vsel %vm1163, %v3219, 0.0
        %v3236 = vsel %vm1164, %v3218, 0.0
        %v3237 = vsel %vm1165, %v3217, 0.0
        %v3238 = vsel %vm1166, %v3216, 0.0
        %v3239 = vsel %vm1167, %v3215, 0.0
        %v3240 = vsel %vm1168, %v3214, 0.0
        %v3241 = vsel %vm1169, %v3213, 0.0
        %v3242 = vsel %vm1170, %v3212, 0.0
        %v3243 = vsel %vm1171, %v3211, 0.0
        %v3244 = vsel %vm1172, %v3210, 0.0
        %v3245 = vsel %vm1173, %v3209, 0.0
        %v3246 = vsel %vm1174, %v3208, 0.0
        %v3247 = vsel %vm1175, %v3207, 0.0
        %v3248 = vsel %vm1176, %v3206, 0.0
        %v3249 = vsel %vm1177, %v3205, 0.0
        %v3250 = vsel %vm1178, %v3204, 0.0
        %v3251 = vsel %vm1179, %v3203, 0.0
        %v3252 = vsel %vm1180, %v3202, 0.0
        %v3253 = vsel %vm1181, %v3201, 0.0
        %v3254 = vsel %vm1182, %v3200, 0.0
        %v3255 = vsel %vm1183, %v3199, 0.0
        %v3256 = vsel %vm1184, %v3198, 0.0
        %v3257 = vsel %vm1185, %v3197, 0.0
        %v3258 = vsel %vm1186, %v3196, 0.0
        %v3259 = vsel %vm1187, %v3227, 0.0
        %v3260 = vpack.c.bf16 %v3133, %v3132
        %v3261 = vpack.c.bf16 %v3135, %v3134
        %v3262 = vpack.c.bf16 %v3137, %v3136
        %v3263 = vpack.c.bf16 %v3139, %v3138
        %v3264 = vpack.c.bf16 %v3141, %v3140
        %v3265 = vpack.c.bf16 %v3143, %v3142
        %v3266 = vpack.c.bf16 %v3145, %v3144
        %v3267 = vpack.c.bf16 %v3147, %v3146
        %v3268 = vpack.c.bf16 %v3149, %v3148
        %v3269 = vpack.c.bf16 %v3151, %v3150
        %v3270 = vpack.c.bf16 %v3153, %v3152
        %v3271 = vpack.c.bf16 %v3155, %v3154
        %v3272 = vpack.c.bf16 %v3157, %v3156
        %v3273 = vpack.c.bf16 %v3159, %v3158
        %v3274 = vpack.c.bf16 %v3161, %v3160
        %v3275 = vpack.c.bf16 %v3163, %v3162
        %3276 = vst [vmem:[#allocation3 + $0x18] sm:$0xff] %v3260
        %3277 = vst [vmem:[#allocation3 + $0x30] sm:$0xff] %v3261
        %3278 = vst [vmem:[#allocation3 + $0x48] sm:$0xff] %v3262
        %3279 = vst [vmem:[#allocation3 + $0x60] sm:$0xff] %v3263
        %3280 = vst [vmem:[#allocation3 + $0x78] sm:$0xff] %v3264
        %3281 = vst [vmem:[#allocation3 + $0x90] sm:$0xff] %v3265
        %3282 = vst [vmem:[#allocation3 + $0xa8] sm:$0xff] %v3266
        %3283 = vst [vmem:[#allocation3 + $0xc0] sm:$0xff] %v3267
        %3284 = vst [vmem:[#allocation3 + $0xd8] sm:$0xff] %v3268
        %3285 = vst [vmem:[#allocation3 + $0xf0] sm:$0xff] %v3269
        %3286 = vst [vmem:[#allocation3 + $0x108] sm:$0xff] %v3270
        %3287 = vst [vmem:[#allocation3 + $0x120] sm:$0xff] %v3271
        %3288 = vst [vmem:[#allocation3 + $0x138] sm:$0xff] %v3272
        %3289 = vst [vmem:[#allocation3 + $0x150] sm:$0xff] %v3273
        %3290 = vst [vmem:[#allocation3 + $0x168] sm:$0xff] %v3274
        %3291 = vst [vmem:[#allocation3 + $0x180] sm:$0xff] %v3275
        %v3292 = vpack.c.bf16 %v3031, %v3030
        %v3293 = vpack.c.bf16 %v3033, %v3032
        %v3294 = vpack.c.bf16 %v3035, %v3034
        %v3295 = vpack.c.bf16 %v3037, %v3036
        %v3296 = vpack.c.bf16 %v3039, %v3038
        %v3297 = vpack.c.bf16 %v3041, %v3040
        %v3298 = vpack.c.bf16 %v3043, %v3042
        %v3299 = vpack.c.bf16 %v3045, %v3044
        %v3300 = vpack.c.bf16 %v3047, %v3046
        %v3301 = vpack.c.bf16 %v3049, %v3048
        %v3302 = vpack.c.bf16 %v3051, %v3050
        %v3303 = vpack.c.bf16 %v3053, %v3052
        %v3304 = vpack.c.bf16 %v3055, %v3054
        %v3305 = vpack.c.bf16 %v3057, %v3056
        %v3306 = vpack.c.bf16 %v3059, %v3058
        %v3307 = vpack.c.bf16 %v3061, %v3060
        %3308 = vst [vmem:[#allocation3 + $0x20] sm:$0xff] %v3292
        %3309 = vst [vmem:[#allocation3 + $0x38] sm:$0xff] %v3293
        %3310 = vst [vmem:[#allocation3 + $0x50] sm:$0xff] %v3294
        %3311 = vst [vmem:[#allocation3 + $0x68] sm:$0xff] %v3295
        %3312 = vst [vmem:[#allocation3 + $0x80] sm:$0xff] %v3296
        %3313 = vst [vmem:[#allocation3 + $0x98] sm:$0xff] %v3297
        %3314 = vst [vmem:[#allocation3 + $0xb0] sm:$0xff] %v3298
        %3315 = vst [vmem:[#allocation3 + $0xc8] sm:$0xff] %v3299
        %3316 = vst [vmem:[#allocation3 + $0xe0] sm:$0xff] %v3300
        %3317 = vst [vmem:[#allocation3 + $0xf8] sm:$0xff] %v3301
        %3318 = vst [vmem:[#allocation3 + $0x110] sm:$0xff] %v3302
        %3319 = vst [vmem:[#allocation3 + $0x128] sm:$0xff] %v3303
        %3320 = vst [vmem:[#allocation3 + $0x140] sm:$0xff] %v3304
        %3321 = vst [vmem:[#allocation3 + $0x158] sm:$0xff] %v3305
        %3322 = vst [vmem:[#allocation3 + $0x170] sm:$0xff] %v3306
        %3323 = vst [vmem:[#allocation3 + $0x188] sm:$0xff] %v3307
        %v3324 = vpack.c.bf16 %v3229, %v3228
        %v3325 = vpack.c.bf16 %v3231, %v3230
        %v3326 = vpack.c.bf16 %v3233, %v3232
        %v3327 = vpack.c.bf16 %v3235, %v3234
        %v3328 = vpack.c.bf16 %v3237, %v3236
        %v3329 = vpack.c.bf16 %v3239, %v3238
        %v3330 = vpack.c.bf16 %v3241, %v3240
        %v3331 = vpack.c.bf16 %v3243, %v3242
        %v3332 = vpack.c.bf16 %v3245, %v3244
        %v3333 = vpack.c.bf16 %v3247, %v3246
        %v3334 = vpack.c.bf16 %v3249, %v3248
        %v3335 = vpack.c.bf16 %v3251, %v3250
        %v3336 = vpack.c.bf16 %v3253, %v3252
        %v3337 = vpack.c.bf16 %v3255, %v3254
        %v3338 = vpack.c.bf16 %v3257, %v3256
        %v3339 = vpack.c.bf16 %v3259, %v3258
        %3340 = vst [vmem:[#allocation3 + $0x28] sm:$0xff] %v3324
        %3341 = vst [vmem:[#allocation3 + $0x40] sm:$0xff] %v3325
        %3342 = vst [vmem:[#allocation3 + $0x58] sm:$0xff] %v3326
        %3343 = vst [vmem:[#allocation3 + $0x70] sm:$0xff] %v3327
        %3344 = vst [vmem:[#allocation3 + $0x88] sm:$0xff] %v3328
        %3345 = vst [vmem:[#allocation3 + $0xa0] sm:$0xff] %v3329
        %3346 = vst [vmem:[#allocation3 + $0xb8] sm:$0xff] %v3330
        %3347 = vst [vmem:[#allocation3 + $0xd0] sm:$0xff] %v3331
        %3348 = vst [vmem:[#allocation3 + $0xe8] sm:$0xff] %v3332
        %3349 = vst [vmem:[#allocation3 + $0x100] sm:$0xff] %v3333
        %3350 = vst [vmem:[#allocation3 + $0x118] sm:$0xff] %v3334
        %3351 = vst [vmem:[#allocation3 + $0x130] sm:$0xff] %v3335
        %3352 = vst [vmem:[#allocation3 + $0x148] sm:$0xff] %v3336
        %3353 = vst [vmem:[#allocation3 + $0x160] sm:$0xff] %v3337
        %3354 = vst [vmem:[#allocation3 + $0x178] sm:$0xff] %v3338
        %3355 = vst [vmem:[#allocation3 + $0x190] sm:$0xff] %v3339
        %v3356 = vld [vmem:[#allocation12] sm:$0x1]
        %v3357 = vld [vmem:[#allocation3] sm:$0xff]
        %v3358 = vld [vmem:[#allocation3 + $0x8] sm:$0xff]
        %v3359 = vld [vmem:[#allocation3 + $0x10] sm:$0xff]
        %v3360 = vld [vmem:[#allocation3 + $0x18] sm:$0xff]
        %v3361 = vld [vmem:[#allocation3 + $0x20] sm:$0xff]
        %v3362 = vld [vmem:[#allocation3 + $0x28] sm:$0xff]
        %v3363 = vld [vmem:[#allocation3 + $0x30] sm:$0xff]
        %v3364 = vld [vmem:[#allocation3 + $0x38] sm:$0xff]
        %v3365 = vld [vmem:[#allocation3 + $0x40] sm:$0xff]
        %v3366 = vld [vmem:[#allocation3 + $0x48] sm:$0xff]
        %v3367 = vld [vmem:[#allocation3 + $0x50] sm:$0xff]
        %v3368 = vld [vmem:[#allocation3 + $0x58] sm:$0xff]
        %v3369 = vld [vmem:[#allocation3 + $0x60] sm:$0xff]
        %v3370 = vld [vmem:[#allocation3 + $0x68] sm:$0xff]
        %v3371 = vld [vmem:[#allocation3 + $0x70] sm:$0xff]
        %v3372 = vld [vmem:[#allocation3 + $0x78] sm:$0xff]
        %v3373 = vld [vmem:[#allocation3 + $0x80] sm:$0xff]
        %v3374 = vld [vmem:[#allocation3 + $0x88] sm:$0xff]
        %v3375 = vld [vmem:[#allocation3 + $0x90] sm:$0xff]
        %v3376 = vld [vmem:[#allocation3 + $0x98] sm:$0xff]
        %v3377 = vld [vmem:[#allocation3 + $0xa0] sm:$0xff]
        %v3378 = vld [vmem:[#allocation3 + $0xa8] sm:$0xff]
        %v3379 = vld [vmem:[#allocation3 + $0xb0] sm:$0xff]
        %v3380 = vld [vmem:[#allocation3 + $0xb8] sm:$0xff]
        %v3381 = vld [vmem:[#allocation3 + $0xc0] sm:$0xff]
        %v3382 = vld [vmem:[#allocation3 + $0xc8] sm:$0xff]
        %v3383 = vld [vmem:[#allocation3 + $0xd0] sm:$0xff]
        %v3384 = vld [vmem:[#allocation3 + $0xd8] sm:$0xff]
        %v3385 = vld [vmem:[#allocation3 + $0xe0] sm:$0xff]
        %v3386 = vld [vmem:[#allocation3 + $0xe8] sm:$0xff]
        %v3387 = vld [vmem:[#allocation3 + $0xf0] sm:$0xff]
        %v3388 = vld [vmem:[#allocation3 + $0xf8] sm:$0xff]
        %v3389 = vld [vmem:[#allocation3 + $0x100] sm:$0xff]
        %v3390 = vld [vmem:[#allocation3 + $0x108] sm:$0xff]
        %v3391 = vld [vmem:[#allocation3 + $0x110] sm:$0xff]
        %v3392 = vld [vmem:[#allocation3 + $0x118] sm:$0xff]
        %v3393 = vld [vmem:[#allocation3 + $0x120] sm:$0xff]
        %v3394 = vld [vmem:[#allocation3 + $0x128] sm:$0xff]
        %v3395 = vld [vmem:[#allocation3 + $0x130] sm:$0xff]
        %v3396 = vld [vmem:[#allocation3 + $0x138] sm:$0xff]
        %v3397 = vld [vmem:[#allocation3 + $0x140] sm:$0xff]
        %v3398 = vld [vmem:[#allocation3 + $0x148] sm:$0xff]
        %v3399 = vld [vmem:[#allocation3 + $0x150] sm:$0xff]
        %v3400 = vld [vmem:[#allocation3 + $0x158] sm:$0xff]
        %v3401 = vld [vmem:[#allocation3 + $0x160] sm:$0xff]
        %v3402 = vld [vmem:[#allocation3 + $0x168] sm:$0xff]
        %v3403 = vld [vmem:[#allocation3 + $0x170] sm:$0xff]
        %v3404 = vld [vmem:[#allocation3 + $0x178] sm:$0xff]
        %v3405 = vld [vmem:[#allocation10] sm:$0xf]
        %v3406 = vld [vmem:[#allocation10 + $0x4] sm:$0xf]
        %v3407 = vld [vmem:[#allocation10 + $0x8] sm:$0xf]
        %v3408 = vld [vmem:[#allocation10 + $0xc] sm:$0xf]
        %v3409 = vld [vmem:[#allocation10 + $0x10] sm:$0xf]
        %v3410 = vld [vmem:[#allocation10 + $0x14] sm:$0xf]
        %v3411 = vld [vmem:[#allocation10 + $0x18] sm:$0xf]
        %v3412 = vld [vmem:[#allocation10 + $0x1c] sm:$0xf]
        %v3413 = vld [vmem:[#allocation10 + $0x20] sm:$0xf]
        %v3414 = vld [vmem:[#allocation10 + $0x24] sm:$0xf]
        %v3415 = vld [vmem:[#allocation10 + $0x28] sm:$0xf]
        %v3416 = vld [vmem:[#allocation10 + $0x2c] sm:$0xf]
        %v3417 = vld [vmem:[#allocation10 + $0x30] sm:$0xf]
        %v3418 = vld [vmem:[#allocation10 + $0x34] sm:$0xf]
        %v3419 = vld [vmem:[#allocation10 + $0x38] sm:$0xf]
        %v3420 = vld [vmem:[#allocation10 + $0x3c] sm:$0xf]
        %v3421 = vld [vmem:[#allocation10 + $0x40] sm:$0xf]
        %v3422 = vld [vmem:[#allocation10 + $0x44] sm:$0xf]
        %v3423 = vld [vmem:[#allocation10 + $0x48] sm:$0xf]
        %v3424 = vld [vmem:[#allocation10 + $0x4c] sm:$0xf]
        %v3425 = vld [vmem:[#allocation10 + $0x50] sm:$0xf]
        %v3426 = vld [vmem:[#allocation10 + $0x54] sm:$0xf]
        %v3427 = vld [vmem:[#allocation10 + $0x58] sm:$0xf]
        %v3428 = vld [vmem:[#allocation10 + $0x5c] sm:$0xf]
        %v3429 = vld [vmem:[#allocation10 + $0x60] sm:$0xf]
        %v3430 = vld [vmem:[#allocation10 + $0x64] sm:$0xf]
        %v3431 = vld [vmem:[#allocation10 + $0x68] sm:$0xf]
        %v3432 = vld [vmem:[#allocation10 + $0x6c] sm:$0xf]
        %v3433 = vld [vmem:[#allocation10 + $0x70] sm:$0xf]
        %v3434 = vld [vmem:[#allocation10 + $0x74] sm:$0xf]
        %v3435 = vld [vmem:[#allocation10 + $0x78] sm:$0xf]
        %v3436 = vld [vmem:[#allocation10 + $0x7c] sm:$0xf]
        %v3437 = vld [vmem:[#allocation10 + $0x80] sm:$0xf]
        %v3438 = vld [vmem:[#allocation10 + $0x84] sm:$0xf]
        %v3439 = vld [vmem:[#allocation10 + $0x88] sm:$0xf]
        %v3440 = vld [vmem:[#allocation10 + $0x8c] sm:$0xf]
        %v3441 = vld [vmem:[#allocation10 + $0x90] sm:$0xf]
        %v3442 = vld [vmem:[#allocation10 + $0x94] sm:$0xf]
        %v3443 = vld [vmem:[#allocation10 + $0x98] sm:$0xf]
        %v3444 = vld [vmem:[#allocation10 + $0x9c] sm:$0xf]
        %v3445 = vld [vmem:[#allocation10 + $0xa0] sm:$0xf]
        %v3446 = vld [vmem:[#allocation10 + $0xa4] sm:$0xf]
        %v3447 = vld [vmem:[#allocation10 + $0xa8] sm:$0xf]
        %v3448 = vld [vmem:[#allocation10 + $0xac] sm:$0xf]
        %v3449 = vld [vmem:[#allocation10 + $0xb0] sm:$0xf]
        %v3450 = vld [vmem:[#allocation10 + $0xb4] sm:$0xf]
        %v3451 = vld [vmem:[#allocation10 + $0xb8] sm:$0xf]
        %v3452 = vld [vmem:[#allocation10 + $0xbc] sm:$0xf]
        %v3453 = vld [vmem:[#allocation3 + $0x180] sm:$0xff]
        %v3454 = vld [vmem:[#allocation3 + $0x188] sm:$0xff]
        %v3455 = vld [vmem:[#allocation3 + $0x190] sm:$0xff]
        %s3456 = scalar_lea.vmem [#allocation10], 192
        %v3457 = vld [vmem:[%s3456] sm:$0xf]
        %v3458 = vld [vmem:[%s3456 + $0x4] sm:$0xf]
        %v3459 = vld [vmem:[%s3456 + $0x8] sm:$0xf]
        %v3460 = vld [vmem:[%s3456 + $0xc] sm:$0xf]
        %v3461 = vld [vmem:[%s3456 + $0x10] sm:$0xf]
        %v3462 = vld [vmem:[%s3456 + $0x14] sm:$0xf]
        %v3463 = vld [vmem:[%s3456 + $0x18] sm:$0xf]
        %v3464 = vld [vmem:[%s3456 + $0x1c] sm:$0xf]
        %v3465 = vld [vmem:[%s3456 + $0x20] sm:$0xf]
        %v3466 = vld [vmem:[%s3456 + $0x24] sm:$0xf]
        %v3467 = vld [vmem:[%s3456 + $0x28] sm:$0xf]
        %v3468 = vld [vmem:[%s3456 + $0x2c] sm:$0xf]
        %v3469 = vld [vmem:[%s3456 + $0x30] sm:$0xf]
        %v3470 = vld [vmem:[%s3456 + $0x34] sm:$0xf]
        %v3471 = vld [vmem:[%s3456 + $0x38] sm:$0xf]
        %v3472 = vld [vmem:[%s3456 + $0x3c] sm:$0xf]
        %v3473 = vld [vmem:[%s3456 + $0x40] sm:$0xf]
        %v3474 = vld [vmem:[%s3456 + $0x44] sm:$0xf]
        %v3475 = vld [vmem:[%s3456 + $0x48] sm:$0xf]
        %v3476 = vld [vmem:[%s3456 + $0x4c] sm:$0xf]
        %v3477 = vld [vmem:[%s3456 + $0x50] sm:$0xf]
        %v3478 = vld [vmem:[%s3456 + $0x54] sm:$0xf]
        %v3479 = vld [vmem:[%s3456 + $0x58] sm:$0xf]
        %v3480 = vld [vmem:[%s3456 + $0x5c] sm:$0xf]
        %v3481 = vld [vmem:[%s3456 + $0x60] sm:$0xf]
        %v3482 = vld [vmem:[%s3456 + $0x64] sm:$0xf]
        %v3483 = vld [vmem:[%s3456 + $0x68] sm:$0xf]
        %v3484 = vld [vmem:[%s3456 + $0x6c] sm:$0xf]
        %v3485 = vld [vmem:[%s3456 + $0x70] sm:$0xf]
        %v3486 = vld [vmem:[%s3456 + $0x74] sm:$0xf]
        %v3487 = vld [vmem:[%s3456 + $0x78] sm:$0xf]
        %v3488 = vld [vmem:[%s3456 + $0x7c] sm:$0xf]
        %v3489 = vld [vmem:[%s3456 + $0x80] sm:$0xf]
        %v3490 = vld [vmem:[%s3456 + $0x84] sm:$0xf]
        %v3491 = vld [vmem:[%s3456 + $0x88] sm:$0xf]
        %v3492 = vld [vmem:[%s3456 + $0x8c] sm:$0xf]
        %v3493 = vld [vmem:[%s3456 + $0x90] sm:$0xf]
        %v3494 = vld [vmem:[%s3456 + $0x94] sm:$0xf]
        %v3495 = vld [vmem:[%s3456 + $0x98] sm:$0xf]
        %v3496 = vld [vmem:[%s3456 + $0x9c] sm:$0xf]
        %v3497 = vld [vmem:[%s3456 + $0xa0] sm:$0xf]
        %v3498 = vld [vmem:[%s3456 + $0xa4] sm:$0xf]
        %v3499 = vld [vmem:[%s3456 + $0xa8] sm:$0xf]
        %v3500 = vld [vmem:[%s3456 + $0xac] sm:$0xf]
        %v3501 = vld [vmem:[%s3456 + $0xb0] sm:$0xf]
        %v3502 = vld [vmem:[%s3456 + $0xb4] sm:$0xf]
        %v3503 = vld [vmem:[%s3456 + $0xb8] sm:$0xf]
        %v3504 = vld [vmem:[%s3456 + $0xbc] sm:$0xf]
        %v3553 = vunpack.c.l.b16 %v3457
        %v3554 = vunpack.c.l.b16 %v3458
        %v3555 = vunpack.c.l.b16 %v3459
        %v3556 = vunpack.c.l.b16 %v3460
        %v3557 = vunpack.c.l.b16 %v3461
        %v3558 = vunpack.c.l.b16 %v3462
        %v3559 = vunpack.c.l.b16 %v3463
        %v3560 = vunpack.c.l.b16 %v3464
        %v3561 = vunpack.c.l.b16 %v3465
        %v3562 = vunpack.c.l.b16 %v3466
        %v3563 = vunpack.c.l.b16 %v3467
        %v3564 = vunpack.c.l.b16 %v3468
        %v3565 = vunpack.c.l.b16 %v3469
        %v3566 = vunpack.c.l.b16 %v3470
        %v3567 = vunpack.c.l.b16 %v3471
        %v3568 = vunpack.c.l.b16 %v3472
        %v3569 = vunpack.c.l.b16 %v3473
        %v3570 = vunpack.c.l.b16 %v3474
        %v3571 = vunpack.c.l.b16 %v3475
        %v3572 = vunpack.c.l.b16 %v3476
        %v3573 = vunpack.c.l.b16 %v3477
        %v3574 = vunpack.c.l.b16 %v3478
        %v3575 = vunpack.c.l.b16 %v3479
        %v3576 = vunpack.c.l.b16 %v3480
        %v3577 = vunpack.c.l.b16 %v3481
        %v3578 = vunpack.c.l.b16 %v3482
        %v3579 = vunpack.c.l.b16 %v3483
        %v3580 = vunpack.c.l.b16 %v3484
        %v3581 = vunpack.c.l.b16 %v3485
        %v3582 = vunpack.c.l.b16 %v3486
        %v3583 = vunpack.c.l.b16 %v3487
        %v3584 = vunpack.c.l.b16 %v3488
        %v3585 = vunpack.c.l.b16 %v3489
        %v3586 = vunpack.c.l.b16 %v3490
        %v3587 = vunpack.c.l.b16 %v3491
        %v3588 = vunpack.c.l.b16 %v3492
        %v3589 = vunpack.c.l.b16 %v3493
        %v3590 = vunpack.c.l.b16 %v3494
        %v3591 = vunpack.c.l.b16 %v3495
        %v3592 = vunpack.c.l.b16 %v3496
        %v3593 = vunpack.c.l.b16 %v3497
        %v3594 = vunpack.c.l.b16 %v3498
        %v3595 = vunpack.c.l.b16 %v3499
        %v3596 = vunpack.c.l.b16 %v3500
        %v3597 = vunpack.c.l.b16 %v3501
        %v3598 = vunpack.c.l.b16 %v3502
        %v3599 = vunpack.c.l.b16 %v3503
        %v3600 = vunpack.c.l.b16 %v3504
        %v3601 = vpack.c.b16 %v3554, %v3553
        %v3602 = vpack.c.b16 %v3556, %v3555
        %v3603 = vpack.c.b16 %v3558, %v3557
        %v3604 = vpack.c.b16 %v3560, %v3559
        %v3605 = vpack.c.b16 %v3562, %v3561
        %v3606 = vpack.c.b16 %v3564, %v3563
        %v3607 = vpack.c.b16 %v3566, %v3565
        %v3608 = vpack.c.b16 %v3568, %v3567
        %v3609 = vpack.c.b16 %v3570, %v3569
        %v3610 = vpack.c.b16 %v3572, %v3571
        %v3611 = vpack.c.b16 %v3574, %v3573
        %v3612 = vpack.c.b16 %v3576, %v3575
        %v3613 = vpack.c.b16 %v3578, %v3577
        %v3614 = vpack.c.b16 %v3580, %v3579
        %v3615 = vpack.c.b16 %v3582, %v3581
        %v3616 = vpack.c.b16 %v3584, %v3583
        %v3617 = vpack.c.b16 %v3586, %v3585
        %v3618 = vpack.c.b16 %v3588, %v3587
        %v3619 = vpack.c.b16 %v3590, %v3589
        %v3620 = vpack.c.b16 %v3592, %v3591
        %v3621 = vpack.c.b16 %v3594, %v3593
        %v3622 = vpack.c.b16 %v3596, %v3595
        %v3623 = vpack.c.b16 %v3598, %v3597
        %v3624 = vpack.c.b16 %v3600, %v3599
        %3649 = vmatprep.subr.bf16.mxu0 0
        %3650 = vmatpush1.bf16.msra.mxu0 %v3601
        %3651 = vmatprep.subr.bf16.mxu0 0
        %3652 = vmatpush1.bf16.msra.mxu0 %v3602
        %3653 = vmatprep.subr.bf16.mxu0 0
        %3654 = vmatpush1.bf16.msra.mxu0 %v3603
        %3655 = vmatprep.subr.bf16.mxu0 0
        %3656 = vmatpush1.bf16.msra.mxu0 %v3604
        %3657 = vmatprep.subr.bf16.mxu0 0
        %3658 = vmatpush1.bf16.msra.mxu0 %v3605
        %3659 = vmatprep.subr.bf16.mxu0 0
        %3660 = vmatpush1.bf16.msra.mxu0 %v3606
        %3661 = vmatprep.subr.bf16.mxu0 0
        %3662 = vmatpush1.bf16.msra.mxu0 %v3607
        %3663 = vmatprep.subr.bf16.mxu0 0
        %3664 = vmatpush1.bf16.msra.mxu0 %v3608
        %3665 = vmatprep.subr.bf16.mxu0 0
        %3666 = vmatpush1.bf16.msra.mxu0 %v3609
        %3667 = vmatprep.subr.bf16.mxu0 0
        %3668 = vmatpush1.bf16.msra.mxu0 %v3610
        %3669 = vmatprep.subr.bf16.mxu0 0
        %3670 = vmatpush1.bf16.msra.mxu0 %v3611
        %3671 = vmatprep.subr.bf16.mxu0 0
        %3672 = vmatpush1.bf16.msra.mxu0 %v3612
        %3673 = vmatprep.subr.bf16.mxu0 0
        %3674 = vmatpush1.bf16.msra.mxu0 %v3613
        %3675 = vmatprep.subr.bf16.mxu0 0
        %3676 = vmatpush1.bf16.msra.mxu0 %v3614
        %3677 = vmatprep.subr.bf16.mxu0 0
        %3678 = vmatpush1.bf16.msra.mxu0 %v3615
        %3679 = vmatprep.subr.bf16.mxu0 0
        %3680 = vmatpush1.bf16.msra.mxu0 %v3616
        %3681 = vmatprep.mubr.bf16.mxu0 %v3361
        %3682 = vmatmul.mubr.bf16.gmra.mrb[0].mxu0 %v3360
        %v3683 = vpop.f32.mrb[0].mxu0
        %v3684 = vadd.f32 0.0, %v3683
        %v3685 = vpop.f32.mrb[0].mxu0
        %v3686 = vpop.f32.mrb[0].mxu0
        %v3687 = vadd.f32 0.0, %v3686
        %v3688 = vpop.f32.mrb[0].mxu0
        %3689 = vmatprep.mubr.bf16.mxu0 %v3364
        %3690 = vmatmul.mubr.bf16.gmra.mrb[0].mxu0 %v3363
        %v3691 = vpop.f32.mrb[0].mxu0
        %v3692 = vadd.f32 0.0, %v3691
        %v3693 = vpop.f32.mrb[0].mxu0
        %v3694 = vpop.f32.mrb[0].mxu0
        %v3695 = vadd.f32 0.0, %v3694
        %v3696 = vpop.f32.mrb[0].mxu0
        %3697 = vmatprep.mubr.bf16.mxu0 %v3367
        %3698 = vmatmul.mubr.bf16.gmra.mrb[0].mxu0 %v3366
        %v3699 = vpop.f32.mrb[0].mxu0
        %v3700 = vadd.f32 0.0, %v3699
        %v3701 = vpop.f32.mrb[0].mxu0
        %v3702 = vpop.f32.mrb[0].mxu0
        %v3703 = vadd.f32 0.0, %v3702
        %v3704 = vpop.f32.mrb[0].mxu0
        %3705 = vmatprep.mubr.bf16.mxu0 %v3370
        %3706 = vmatmul.mubr.bf16.gmra.mrb[0].mxu0 %v3369
        %v3707 = vpop.f32.mrb[0].mxu0
        %v3708 = vadd.f32 0.0, %v3707
        %v3709 = vpop.f32.mrb[0].mxu0
        %v3710 = vpop.f32.mrb[0].mxu0
        %v3711 = vadd.f32 0.0, %v3710
        %v3712 = vpop.f32.mrb[0].mxu0
        %3713 = vmatprep.mubr.bf16.mxu0 %v3373
        %3714 = vmatmul.mubr.bf16.gmra.mrb[0].mxu0 %v3372
        %v3715 = vpop.f32.mrb[0].mxu0
        %v3716 = vadd.f32 0.0, %v3715
        %v3717 = vpop.f32.mrb[0].mxu0
        %v3718 = vpop.f32.mrb[0].mxu0
        %v3719 = vadd.f32 0.0, %v3718
        %v3720 = vpop.f32.mrb[0].mxu0
        %3721 = vmatprep.mubr.bf16.mxu0 %v3376
        %3722 = vmatmul.mubr.bf16.gmra.mrb[0].mxu0 %v3375
        %v3723 = vpop.f32.mrb[0].mxu0
        %v3724 = vadd.f32 0.0, %v3723
        %v3725 = vpop.f32.mrb[0].mxu0
        %v3726 = vpop.f32.mrb[0].mxu0
        %v3727 = vadd.f32 0.0, %v3726
        %v3728 = vpop.f32.mrb[0].mxu0
        %3729 = vmatprep.mubr.bf16.mxu0 %v3379
        %3730 = vmatmul.mubr.bf16.gmra.mrb[0].mxu0 %v3378
        %v3731 = vpop.f32.mrb[0].mxu0
        %v3732 = vadd.f32 0.0, %v3731
        %v3733 = vpop.f32.mrb[0].mxu0
        %v3734 = vpop.f32.mrb[0].mxu0
        %v3735 = vadd.f32 0.0, %v3734
        %v3736 = vpop.f32.mrb[0].mxu0
        %3737 = vmatprep.mubr.bf16.mxu0 %v3382
        %3738 = vmatmul.mubr.bf16.gmra.mrb[0].mxu0 %v3381
        %v3739 = vpop.f32.mrb[0].mxu0
        %v3740 = vadd.f32 0.0, %v3739
        %v3741 = vpop.f32.mrb[0].mxu0
        %v3742 = vpop.f32.mrb[0].mxu0
        %v3743 = vadd.f32 0.0, %v3742
        %v3744 = vpop.f32.mrb[0].mxu0
        %3745 = vmatprep.mubr.bf16.mxu0 %v3385
        %3746 = vmatmul.mubr.bf16.gmra.mrb[0].mxu0 %v3384
        %v3747 = vpop.f32.mrb[0].mxu0
        %v3748 = vadd.f32 0.0, %v3747
        %v3749 = vpop.f32.mrb[0].mxu0
        %v3750 = vpop.f32.mrb[0].mxu0
        %v3751 = vadd.f32 0.0, %v3750
        %v3752 = vpop.f32.mrb[0].mxu0
        %3753 = vmatprep.mubr.bf16.mxu0 %v3388
        %3754 = vmatmul.mubr.bf16.gmra.mrb[0].mxu0 %v3387
        %v3755 = vpop.f32.mrb[0].mxu0
        %v3756 = vadd.f32 0.0, %v3755
        %v3757 = vpop.f32.mrb[0].mxu0
        %v3758 = vpop.f32.mrb[0].mxu0
        %v3759 = vadd.f32 0.0, %v3758
        %v3760 = vpop.f32.mrb[0].mxu0
        %3761 = vmatprep.mubr.bf16.mxu0 %v3391
        %3762 = vmatmul.mubr.bf16.gmra.mrb[0].mxu0 %v3390
        %v3763 = vpop.f32.mrb[0].mxu0
        %v3764 = vadd.f32 0.0, %v3763
        %v3765 = vpop.f32.mrb[0].mxu0
        %v3766 = vpop.f32.mrb[0].mxu0
        %v3767 = vadd.f32 0.0, %v3766
        %v3768 = vpop.f32.mrb[0].mxu0
        %3769 = vmatprep.mubr.bf16.mxu0 %v3394
        %3770 = vmatmul.mubr.bf16.gmra.mrb[0].mxu0 %v3393
        %v3771 = vpop.f32.mrb[0].mxu0
        %v3772 = vadd.f32 0.0, %v3771
        %v3773 = vpop.f32.mrb[0].mxu0
        %v3774 = vpop.f32.mrb[0].mxu0
        %v3775 = vadd.f32 0.0, %v3774
        %v3776 = vpop.f32.mrb[0].mxu0
        %3777 = vmatprep.mubr.bf16.mxu0 %v3397
        %3778 = vmatmul.mubr.bf16.gmra.mrb[0].mxu0 %v3396
        %v3779 = vpop.f32.mrb[0].mxu0
        %v3780 = vadd.f32 0.0, %v3779
        %v3781 = vpop.f32.mrb[0].mxu0
        %v3782 = vpop.f32.mrb[0].mxu0
        %v3783 = vadd.f32 0.0, %v3782
        %v3784 = vpop.f32.mrb[0].mxu0
        %3785 = vmatprep.mubr.bf16.mxu0 %v3400
        %3786 = vmatmul.mubr.bf16.gmra.mrb[0].mxu0 %v3399
        %v3787 = vpop.f32.mrb[0].mxu0
        %v3788 = vadd.f32 0.0, %v3787
        %v3789 = vpop.f32.mrb[0].mxu0
        %v3790 = vpop.f32.mrb[0].mxu0
        %v3791 = vadd.f32 0.0, %v3790
        %v3792 = vpop.f32.mrb[0].mxu0
        %3793 = vmatprep.mubr.bf16.mxu0 %v3403
        %3794 = vmatmul.mubr.bf16.gmra.mrb[0].mxu0 %v3402
        %v3795 = vpop.f32.mrb[0].mxu0
        %v3796 = vadd.f32 0.0, %v3795
        %v3797 = vpop.f32.mrb[0].mxu0
        %v3798 = vpop.f32.mrb[0].mxu0
        %v3799 = vadd.f32 0.0, %v3798
        %v3800 = vpop.f32.mrb[0].mxu0
        %3801 = vmatprep.mubr.bf16.mxu0 %v3454
        %3802 = vmatmul.mubr.bf16.gmra.mrb[0].mxu0 %v3453
        %v3803 = vpop.f32.mrb[0].mxu0
        %v3804 = vadd.f32 0.0, %v3803
        %v3805 = vpop.f32.mrb[0].mxu0
        %v3806 = vpop.f32.mrb[0].mxu0
        %v3807 = vadd.f32 0.0, %v3806
        %v3808 = vpop.f32.mrb[0].mxu0
        %3809 = vdwg.mxu0
        %3810 = vmatprep.subr.bf16.mxu0 0
        %3811 = vmatpush1.bf16.msra.mxu0 %v3617
        %3812 = vmatprep.subr.bf16.mxu0 0
        %3813 = vmatpush1.bf16.msra.mxu0 %v3618
        %3814 = vmatprep.subr.bf16.mxu0 0
        %3815 = vmatpush1.bf16.msra.mxu0 %v3619
        %3816 = vmatprep.subr.bf16.mxu0 0
        %3817 = vmatpush1.bf16.msra.mxu0 %v3620
        %3818 = vmatprep.subr.bf16.mxu0 0
        %3819 = vmatpush1.bf16.msra.mxu0 %v3621
        %3820 = vmatprep.subr.bf16.mxu0 0
        %3821 = vmatpush1.bf16.msra.mxu0 %v3622
        %3822 = vmatprep.subr.bf16.mxu0 0
        %3823 = vmatpush1.bf16.msra.mxu0 %v3623
        %3824 = vmatprep.subr.bf16.mxu0 0
        %3825 = vmatpush1.bf16.msra.mxu0 %v3624
        %3826 = vmatprep.subr.bf16.mxu0 0
        %3827 = vmatpush1.bf16.msra.mxu0 0
        %3828 = vmatprep.subr.bf16.mxu0 0
        %3829 = vmatpush1.bf16.msra.mxu0 0
        %3830 = vmatprep.subr.bf16.mxu0 0
        %3831 = vmatpush1.bf16.msra.mxu0 0
        %3832 = vmatprep.subr.bf16.mxu0 0
        %3833 = vmatpush1.bf16.msra.mxu0 0
        %3834 = vmatprep.subr.bf16.mxu0 0
        %3835 = vmatpush1.bf16.msra.mxu0 0
        %3836 = vmatprep.subr.bf16.mxu0 0
        %3837 = vmatpush1.bf16.msra.mxu0 0
        %3838 = vmatprep.subr.bf16.mxu0 0
        %3839 = vmatpush1.bf16.msra.mxu0 0
        %3840 = vmatprep.subr.bf16.mxu0 0
        %3841 = vmatpush1.bf16.msra.mxu0 0
        %3842 = vmatprep.mubr.bf16.mxu0 0
        %3843 = vmatmul.mubr.bf16.gmra.mrb[0].mxu0 %v3362
        %v3844 = vpop.f32.mrb[0].mxu0
        %v3845 = vadd.f32 %v3684, %v3844
        %v3846 = vpop.f32.mrb[0].mxu0
        %v3847 = vpop.f32.mrb[0].mxu0
        %v3848 = vadd.f32 %v3687, %v3847
        %v3849 = vpop.f32.mrb[0].mxu0
        %3850 = vmatprep.mubr.bf16.mxu0 0
        %3851 = vmatmul.mubr.bf16.gmra.mrb[0].mxu0 %v3365
        %v3852 = vpop.f32.mrb[0].mxu0
        %v3853 = vadd.f32 %v3692, %v3852
        %v3854 = vpop.f32.mrb[0].mxu0
        %v3855 = vpop.f32.mrb[0].mxu0
        %v3856 = vadd.f32 %v3695, %v3855
        %v3857 = vpop.f32.mrb[0].mxu0
        %3858 = vmatprep.mubr.bf16.mxu0 0
        %3859 = vmatmul.mubr.bf16.gmra.mrb[0].mxu0 %v3368
        %v3860 = vpop.f32.mrb[0].mxu0
        %v3861 = vadd.f32 %v3700, %v3860
        %v3862 = vpop.f32.mrb[0].mxu0
        %v3863 = vpop.f32.mrb[0].mxu0
        %v3864 = vadd.f32 %v3703, %v3863
        %v3865 = vpop.f32.mrb[0].mxu0
        %3866 = vmatprep.mubr.bf16.mxu0 0
        %3867 = vmatmul.mubr.bf16.gmra.mrb[0].mxu0 %v3371
        %v3868 = vpop.f32.mrb[0].mxu0
        %v3869 = vadd.f32 %v3708, %v3868
        %v3870 = vpop.f32.mrb[0].mxu0
        %v3871 = vpop.f32.mrb[0].mxu0
        %v3872 = vadd.f32 %v3711, %v3871
        %v3873 = vpop.f32.mrb[0].mxu0
        %3874 = vmatprep.mubr.bf16.mxu0 0
        %3875 = vmatmul.mubr.bf16.gmra.mrb[0].mxu0 %v3374
        %v3876 = vpop.f32.mrb[0].mxu0
        %v3877 = vadd.f32 %v3716, %v3876
        %v3878 = vpop.f32.mrb[0].mxu0
        %v3879 = vpop.f32.mrb[0].mxu0
        %v3880 = vadd.f32 %v3719, %v3879
        %v3881 = vpop.f32.mrb[0].mxu0
        %3882 = vmatprep.mubr.bf16.mxu0 0
        %3883 = vmatmul.mubr.bf16.gmra.mrb[0].mxu0 %v3377
        %v3884 = vpop.f32.mrb[0].mxu0
        %v3885 = vadd.f32 %v3724, %v3884
        %v3886 = vpop.f32.mrb[0].mxu0
        %v3887 = vpop.f32.mrb[0].mxu0
        %v3888 = vadd.f32 %v3727, %v3887
        %v3889 = vpop.f32.mrb[0].mxu0
        %3890 = vmatprep.mubr.bf16.mxu0 0
        %3891 = vmatmul.mubr.bf16.gmra.mrb[0].mxu0 %v3380
        %v3892 = vpop.f32.mrb[0].mxu0
        %v3893 = vadd.f32 %v3732, %v3892
        %v3894 = vpop.f32.mrb[0].mxu0
        %v3895 = vpop.f32.mrb[0].mxu0
        %v3896 = vadd.f32 %v3735, %v3895
        %v3897 = vpop.f32.mrb[0].mxu0
        %3898 = vmatprep.mubr.bf16.mxu0 0
        %3899 = vmatmul.mubr.bf16.gmra.mrb[0].mxu0 %v3383
        %v3900 = vpop.f32.mrb[0].mxu0
        %v3901 = vadd.f32 %v3740, %v3900
        %v3902 = vpop.f32.mrb[0].mxu0
        %v3903 = vpop.f32.mrb[0].mxu0
        %v3904 = vadd.f32 %v3743, %v3903
        %v3905 = vpop.f32.mrb[0].mxu0
        %3906 = vmatprep.mubr.bf16.mxu0 0
        %3907 = vmatmul.mubr.bf16.gmra.mrb[0].mxu0 %v3386
        %v3908 = vpop.f32.mrb[0].mxu0
        %v3909 = vadd.f32 %v3748, %v3908
        %v3910 = vpop.f32.mrb[0].mxu0
        %v3911 = vpop.f32.mrb[0].mxu0
        %v3912 = vadd.f32 %v3751, %v3911
        %v3913 = vpop.f32.mrb[0].mxu0
        %3914 = vmatprep.mubr.bf16.mxu0 0
        %3915 = vmatmul.mubr.bf16.gmra.mrb[0].mxu0 %v3389
        %v3916 = vpop.f32.mrb[0].mxu0
        %v3917 = vadd.f32 %v3756, %v3916
        %v3918 = vpop.f32.mrb[0].mxu0
        %v3919 = vpop.f32.mrb[0].mxu0
        %v3920 = vadd.f32 %v3759, %v3919
        %v3921 = vpop.f32.mrb[0].mxu0
        %3922 = vmatprep.mubr.bf16.mxu0 0
        %3923 = vmatmul.mubr.bf16.gmra.mrb[0].mxu0 %v3392
        %v3924 = vpop.f32.mrb[0].mxu0
        %v3925 = vadd.f32 %v3764, %v3924
        %v3926 = vpop.f32.mrb[0].mxu0
        %v3927 = vpop.f32.mrb[0].mxu0
        %v3928 = vadd.f32 %v3767, %v3927
        %v3929 = vpop.f32.mrb[0].mxu0
        %3930 = vmatprep.mubr.bf16.mxu0 0
        %3931 = vmatmul.mubr.bf16.gmra.mrb[0].mxu0 %v3395
        %v3932 = vpop.f32.mrb[0].mxu0
        %v3933 = vadd.f32 %v3772, %v3932
        %v3934 = vpop.f32.mrb[0].mxu0
        %v3935 = vpop.f32.mrb[0].mxu0
        %v3936 = vadd.f32 %v3775, %v3935
        %v3937 = vpop.f32.mrb[0].mxu0
        %3938 = vmatprep.mubr.bf16.mxu0 0
        %3939 = vmatmul.mubr.bf16.gmra.mrb[0].mxu0 %v3398
        %v3940 = vpop.f32.mrb[0].mxu0
        %v3941 = vadd.f32 %v3780, %v3940
        %v3942 = vpop.f32.mrb[0].mxu0
        %v3943 = vpop.f32.mrb[0].mxu0
        %v3944 = vadd.f32 %v3783, %v3943
        %v3945 = vpop.f32.mrb[0].mxu0
        %3946 = vmatprep.mubr.bf16.mxu0 0
        %3947 = vmatmul.mubr.bf16.gmra.mrb[0].mxu0 %v3401
        %v3948 = vpop.f32.mrb[0].mxu0
        %v3949 = vadd.f32 %v3788, %v3948
        %v3950 = vpop.f32.mrb[0].mxu0
        %v3951 = vpop.f32.mrb[0].mxu0
        %v3952 = vadd.f32 %v3791, %v3951
        %v3953 = vpop.f32.mrb[0].mxu0
        %3954 = vmatprep.mubr.bf16.mxu0 0
        %3955 = vmatmul.mubr.bf16.gmra.mrb[0].mxu0 %v3404
        %v3956 = vpop.f32.mrb[0].mxu0
        %v3957 = vadd.f32 %v3796, %v3956
        %v3958 = vpop.f32.mrb[0].mxu0
        %v3959 = vpop.f32.mrb[0].mxu0
        %v3960 = vadd.f32 %v3799, %v3959
        %v3961 = vpop.f32.mrb[0].mxu0
        %3962 = vmatprep.mubr.bf16.mxu0 0
        %3963 = vmatmul.mubr.bf16.gmra.mrb[0].mxu0 %v3455
        %v3964 = vpop.f32.mrb[0].mxu0
        %v3965 = vadd.f32 %v3804, %v3964
        %v3966 = vpop.f32.mrb[0].mxu0
        %v3967 = vpop.f32.mrb[0].mxu0
        %v3968 = vadd.f32 %v3807, %v3967
        %v3969 = vpop.f32.mrb[0].mxu0
        %3970 = vdwg.mxu0
        %v4019 = vunpack.c.l.b16 %v3405
        %v4020 = vunpack.c.l.b16 %v3406
        %v4021 = vunpack.c.l.b16 %v3407
        %v4022 = vunpack.c.l.b16 %v3408
        %v4023 = vunpack.c.l.b16 %v3409
        %v4024 = vunpack.c.l.b16 %v3410
        %v4025 = vunpack.c.l.b16 %v3411
        %v4026 = vunpack.c.l.b16 %v3412
        %v4027 = vunpack.c.l.b16 %v3413
        %v4028 = vunpack.c.l.b16 %v3414
        %v4029 = vunpack.c.l.b16 %v3415
        %v4030 = vunpack.c.l.b16 %v3416
        %v4031 = vunpack.c.l.b16 %v3417
        %v4032 = vunpack.c.l.b16 %v3418
        %v4033 = vunpack.c.l.b16 %v3419
        %v4034 = vunpack.c.l.b16 %v3420
        %v4035 = vunpack.c.l.b16 %v3421
        %v4036 = vunpack.c.l.b16 %v3422
        %v4037 = vunpack.c.l.b16 %v3423
        %v4038 = vunpack.c.l.b16 %v3424
        %v4039 = vunpack.c.l.b16 %v3425
        %v4040 = vunpack.c.l.b16 %v3426
        %v4041 = vunpack.c.l.b16 %v3427
        %v4042 = vunpack.c.l.b16 %v3428
        %v4043 = vunpack.c.l.b16 %v3429
        %v4044 = vunpack.c.l.b16 %v3430
        %v4045 = vunpack.c.l.b16 %v3431
        %v4046 = vunpack.c.l.b16 %v3432
        %v4047 = vunpack.c.l.b16 %v3433
        %v4048 = vunpack.c.l.b16 %v3434
        %v4049 = vunpack.c.l.b16 %v3435
        %v4050 = vunpack.c.l.b16 %v3436
        %v4051 = vunpack.c.l.b16 %v3437
        %v4052 = vunpack.c.l.b16 %v3438
        %v4053 = vunpack.c.l.b16 %v3439
        %v4054 = vunpack.c.l.b16 %v3440
        %v4055 = vunpack.c.l.b16 %v3441
        %v4056 = vunpack.c.l.b16 %v3442
        %v4057 = vunpack.c.l.b16 %v3443
        %v4058 = vunpack.c.l.b16 %v3444
        %v4059 = vunpack.c.l.b16 %v3445
        %v4060 = vunpack.c.l.b16 %v3446
        %v4061 = vunpack.c.l.b16 %v3447
        %v4062 = vunpack.c.l.b16 %v3448
        %v4063 = vunpack.c.l.b16 %v3449
        %v4064 = vunpack.c.l.b16 %v3450
        %v4065 = vunpack.c.l.b16 %v3451
        %v4066 = vunpack.c.l.b16 %v3452
        %v4067 = vpack.c.b16 %v4020, %v4019
        %v4068 = vpack.c.b16 %v4022, %v4021
        %v4069 = vpack.c.b16 %v4024, %v4023
        %v4070 = vpack.c.b16 %v4026, %v4025
        %v4071 = vpack.c.b16 %v4028, %v4027
        %v4072 = vpack.c.b16 %v4030, %v4029
        %v4073 = vpack.c.b16 %v4032, %v4031
        %v4074 = vpack.c.b16 %v4034, %v4033
        %v4075 = vpack.c.b16 %v4036, %v4035
        %v4076 = vpack.c.b16 %v4038, %v4037
        %v4077 = vpack.c.b16 %v4040, %v4039
        %v4078 = vpack.c.b16 %v4042, %v4041
        %v4079 = vpack.c.b16 %v4044, %v4043
        %v4080 = vpack.c.b16 %v4046, %v4045
        %v4081 = vpack.c.b16 %v4048, %v4047
        %v4082 = vpack.c.b16 %v4050, %v4049
        %v4083 = vpack.c.b16 %v4052, %v4051
        %v4084 = vpack.c.b16 %v4054, %v4053
        %v4085 = vpack.c.b16 %v4056, %v4055
        %v4086 = vpack.c.b16 %v4058, %v4057
        %v4087 = vpack.c.b16 %v4060, %v4059
        %v4088 = vpack.c.b16 %v4062, %v4061
        %v4089 = vpack.c.b16 %v4064, %v4063
        %v4090 = vpack.c.b16 %v4066, %v4065
        %4115 = vmatprep.subr.bf16.mxu0 0
        %4116 = vmatpush1.bf16.msra.mxu0 %v4067
        %4117 = vmatprep.subr.bf16.mxu0 0
        %4118 = vmatpush1.bf16.msra.mxu0 %v4068
        %4119 = vmatprep.subr.bf16.mxu0 0
        %4120 = vmatpush1.bf16.msra.mxu0 %v4069
        %4121 = vmatprep.subr.bf16.mxu0 0
        %4122 = vmatpush1.bf16.msra.mxu0 %v4070
        %4123 = vmatprep.subr.bf16.mxu0 0
        %4124 = vmatpush1.bf16.msra.mxu0 %v4071
        %4125 = vmatprep.subr.bf16.mxu0 0
        %4126 = vmatpush1.bf16.msra.mxu0 %v4072
        %4127 = vmatprep.subr.bf16.mxu0 0
        %4128 = vmatpush1.bf16.msra.mxu0 %v4073
        %4129 = vmatprep.subr.bf16.mxu0 0
        %4130 = vmatpush1.bf16.msra.mxu0 %v4074
        %4131 = vmatprep.subr.bf16.mxu0 0
        %4132 = vmatpush1.bf16.msra.mxu0 %v4075
        %4133 = vmatprep.subr.bf16.mxu0 0
        %4134 = vmatpush1.bf16.msra.mxu0 %v4076
        %4135 = vmatprep.subr.bf16.mxu0 0
        %4136 = vmatpush1.bf16.msra.mxu0 %v4077
        %4137 = vmatprep.subr.bf16.mxu0 0
        %4138 = vmatpush1.bf16.msra.mxu0 %v4078
        %4139 = vmatprep.subr.bf16.mxu0 0
        %4140 = vmatpush1.bf16.msra.mxu0 %v4079
        %4141 = vmatprep.subr.bf16.mxu0 0
        %4142 = vmatpush1.bf16.msra.mxu0 %v4080
        %4143 = vmatprep.subr.bf16.mxu0 0
        %4144 = vmatpush1.bf16.msra.mxu0 %v4081
        %4145 = vmatprep.subr.bf16.mxu0 0
        %4146 = vmatpush1.bf16.msra.mxu0 %v4082
        %4147 = vmatprep.mubr.bf16.mxu0 %v3358
        %4148 = vmatmul.mubr.bf16.gmra.mrb[0].mxu0 %v3357
        %v4149 = vpop.f32.mrb[0].mxu0
        %v4150 = vadd.f32 %v3845, %v4149
        %v4151 = vpop.f32.mrb[0].mxu0
        %v4152 = vpop.f32.mrb[0].mxu0
        %v4153 = vadd.f32 %v3848, %v4152
        %v4154 = vpop.f32.mrb[0].mxu0
        %4155 = vmatprep.mubr.bf16.mxu0 %v3361
        %4156 = vmatmul.mubr.bf16.gmra.mrb[0].mxu0 %v3360
        %v4157 = vpop.f32.mrb[0].mxu0
        %v4158 = vadd.f32 %v3853, %v4157
        %v4159 = vpop.f32.mrb[0].mxu0
        %v4160 = vpop.f32.mrb[0].mxu0
        %v4161 = vadd.f32 %v3856, %v4160
        %v4162 = vpop.f32.mrb[0].mxu0
        %4163 = vmatprep.mubr.bf16.mxu0 %v3364
        %4164 = vmatmul.mubr.bf16.gmra.mrb[0].mxu0 %v3363
        %v4165 = vpop.f32.mrb[0].mxu0
        %v4166 = vadd.f32 %v3861, %v4165
        %v4167 = vpop.f32.mrb[0].mxu0
        %v4168 = vpop.f32.mrb[0].mxu0
        %v4169 = vadd.f32 %v3864, %v4168
        %v4170 = vpop.f32.mrb[0].mxu0
        %4171 = vmatprep.mubr.bf16.mxu0 %v3367
        %4172 = vmatmul.mubr.bf16.gmra.mrb[0].mxu0 %v3366
        %v4173 = vpop.f32.mrb[0].mxu0
        %v4174 = vadd.f32 %v3869, %v4173
        %v4175 = vpop.f32.mrb[0].mxu0
        %v4176 = vpop.f32.mrb[0].mxu0
        %v4177 = vadd.f32 %v3872, %v4176
        %v4178 = vpop.f32.mrb[0].mxu0
        %4179 = vmatprep.mubr.bf16.mxu0 %v3370
        %4180 = vmatmul.mubr.bf16.gmra.mrb[0].mxu0 %v3369
        %v4181 = vpop.f32.mrb[0].mxu0
        %v4182 = vadd.f32 %v3877, %v4181
        %v4183 = vpop.f32.mrb[0].mxu0
        %v4184 = vpop.f32.mrb[0].mxu0
        %v4185 = vadd.f32 %v3880, %v4184
        %v4186 = vpop.f32.mrb[0].mxu0
        %4187 = vmatprep.mubr.bf16.mxu0 %v3373
        %4188 = vmatmul.mubr.bf16.gmra.mrb[0].mxu0 %v3372
        %v4189 = vpop.f32.mrb[0].mxu0
        %v4190 = vadd.f32 %v3885, %v4189
        %v4191 = vpop.f32.mrb[0].mxu0
        %v4192 = vpop.f32.mrb[0].mxu0
        %v4193 = vadd.f32 %v3888, %v4192
        %v4194 = vpop.f32.mrb[0].mxu0
        %4195 = vmatprep.mubr.bf16.mxu0 %v3376
        %4196 = vmatmul.mubr.bf16.gmra.mrb[0].mxu0 %v3375
        %v4197 = vpop.f32.mrb[0].mxu0
        %v4198 = vadd.f32 %v3893, %v4197
        %v4199 = vpop.f32.mrb[0].mxu0
        %v4200 = vpop.f32.mrb[0].mxu0
        %v4201 = vadd.f32 %v3896, %v4200
        %v4202 = vpop.f32.mrb[0].mxu0
        %4203 = vmatprep.mubr.bf16.mxu0 %v3379
        %4204 = vmatmul.mubr.bf16.gmra.mrb[0].mxu0 %v3378
        %v4205 = vpop.f32.mrb[0].mxu0
        %v4206 = vadd.f32 %v3901, %v4205
        %v4207 = vpop.f32.mrb[0].mxu0
        %v4208 = vpop.f32.mrb[0].mxu0
        %v4209 = vadd.f32 %v3904, %v4208
        %v4210 = vpop.f32.mrb[0].mxu0
        %4211 = vmatprep.mubr.bf16.mxu0 %v3382
        %4212 = vmatmul.mubr.bf16.gmra.mrb[0].mxu0 %v3381
        %v4213 = vpop.f32.mrb[0].mxu0
        %v4214 = vadd.f32 %v3909, %v4213
        %v4215 = vpop.f32.mrb[0].mxu0
        %v4216 = vpop.f32.mrb[0].mxu0
        %v4217 = vadd.f32 %v3912, %v4216
        %v4218 = vpop.f32.mrb[0].mxu0
        %4219 = vmatprep.mubr.bf16.mxu0 %v3385
        %4220 = vmatmul.mubr.bf16.gmra.mrb[0].mxu0 %v3384
        %v4221 = vpop.f32.mrb[0].mxu0
        %v4222 = vadd.f32 %v3917, %v4221
        %v4223 = vpop.f32.mrb[0].mxu0
        %v4224 = vpop.f32.mrb[0].mxu0
        %v4225 = vadd.f32 %v3920, %v4224
        %v4226 = vpop.f32.mrb[0].mxu0
        %4227 = vmatprep.mubr.bf16.mxu0 %v3388
        %4228 = vmatmul.mubr.bf16.gmra.mrb[0].mxu0 %v3387
        %v4229 = vpop.f32.mrb[0].mxu0
        %v4230 = vadd.f32 %v3925, %v4229
        %v4231 = vpop.f32.mrb[0].mxu0
        %v4232 = vpop.f32.mrb[0].mxu0
        %v4233 = vadd.f32 %v3928, %v4232
        %v4234 = vpop.f32.mrb[0].mxu0
        %4235 = vmatprep.mubr.bf16.mxu0 %v3391
        %4236 = vmatmul.mubr.bf16.gmra.mrb[0].mxu0 %v3390
        %v4237 = vpop.f32.mrb[0].mxu0
        %v4238 = vadd.f32 %v3933, %v4237
        %v4239 = vpop.f32.mrb[0].mxu0
        %v4240 = vpop.f32.mrb[0].mxu0
        %v4241 = vadd.f32 %v3936, %v4240
        %v4242 = vpop.f32.mrb[0].mxu0
        %4243 = vmatprep.mubr.bf16.mxu0 %v3394
        %4244 = vmatmul.mubr.bf16.gmra.mrb[0].mxu0 %v3393
        %v4245 = vpop.f32.mrb[0].mxu0
        %v4246 = vadd.f32 %v3941, %v4245
        %v4247 = vpop.f32.mrb[0].mxu0
        %v4248 = vpop.f32.mrb[0].mxu0
        %v4249 = vadd.f32 %v3944, %v4248
        %v4250 = vpop.f32.mrb[0].mxu0
        %4251 = vmatprep.mubr.bf16.mxu0 %v3397
        %4252 = vmatmul.mubr.bf16.gmra.mrb[0].mxu0 %v3396
        %v4253 = vpop.f32.mrb[0].mxu0
        %v4254 = vadd.f32 %v3949, %v4253
        %v4255 = vpop.f32.mrb[0].mxu0
        %v4256 = vpop.f32.mrb[0].mxu0
        %v4257 = vadd.f32 %v3952, %v4256
        %v4258 = vpop.f32.mrb[0].mxu0
        %4259 = vmatprep.mubr.bf16.mxu0 %v3400
        %4260 = vmatmul.mubr.bf16.gmra.mrb[0].mxu0 %v3399
        %v4261 = vpop.f32.mrb[0].mxu0
        %v4262 = vadd.f32 %v3957, %v4261
        %v4263 = vpop.f32.mrb[0].mxu0
        %v4264 = vpop.f32.mrb[0].mxu0
        %v4265 = vadd.f32 %v3960, %v4264
        %v4266 = vpop.f32.mrb[0].mxu0
        %4267 = vmatprep.mubr.bf16.mxu0 %v3403
        %4268 = vmatmul.mubr.bf16.gmra.mrb[0].mxu0 %v3402
        %v4269 = vpop.f32.mrb[0].mxu0
        %v4270 = vadd.f32 %v3965, %v4269
        %v4271 = vpop.f32.mrb[0].mxu0
        %v4272 = vpop.f32.mrb[0].mxu0
        %v4273 = vadd.f32 %v3968, %v4272
        %v4274 = vpop.f32.mrb[0].mxu0
        %4275 = vdwg.mxu0
        %4276 = vmatprep.subr.bf16.mxu0 0
        %4277 = vmatpush1.bf16.msra.mxu0 %v4083
        %4278 = vmatprep.subr.bf16.mxu0 0
        %4279 = vmatpush1.bf16.msra.mxu0 %v4084
        %4280 = vmatprep.subr.bf16.mxu0 0
        %4281 = vmatpush1.bf16.msra.mxu0 %v4085
        %4282 = vmatprep.subr.bf16.mxu0 0
        %4283 = vmatpush1.bf16.msra.mxu0 %v4086
        %4284 = vmatprep.subr.bf16.mxu0 0
        %4285 = vmatpush1.bf16.msra.mxu0 %v4087
        %4286 = vmatprep.subr.bf16.mxu0 0
        %4287 = vmatpush1.bf16.msra.mxu0 %v4088
        %4288 = vmatprep.subr.bf16.mxu0 0
        %4289 = vmatpush1.bf16.msra.mxu0 %v4089
        %4290 = vmatprep.subr.bf16.mxu0 0
        %4291 = vmatpush1.bf16.msra.mxu0 %v4090
        %4292 = vmatprep.subr.bf16.mxu0 0
        %4293 = vmatpush1.bf16.msra.mxu0 0
        %4294 = vmatprep.subr.bf16.mxu0 0
        %4295 = vmatpush1.bf16.msra.mxu0 0
        %4296 = vmatprep.subr.bf16.mxu0 0
        %4297 = vmatpush1.bf16.msra.mxu0 0
        %4298 = vmatprep.subr.bf16.mxu0 0
        %4299 = vmatpush1.bf16.msra.mxu0 0
        %4300 = vmatprep.subr.bf16.mxu0 0
        %4301 = vmatpush1.bf16.msra.mxu0 0
        %4302 = vmatprep.subr.bf16.mxu0 0
        %4303 = vmatpush1.bf16.msra.mxu0 0
        %4304 = vmatprep.subr.bf16.mxu0 0
        %4305 = vmatpush1.bf16.msra.mxu0 0
        %4306 = vmatprep.subr.bf16.mxu0 0
        %4307 = vmatpush1.bf16.msra.mxu0 0
        %4308 = vmatprep.mubr.bf16.mxu0 0
        %4309 = vmatmul.mubr.bf16.gmra.mrb[0].mxu0 %v3359
        %v4310 = vpop.f32.mrb[0].mxu0
        %v4311 = vadd.f32 %v4150, %v4310
        %v4312 = vpop.f32.mrb[0].mxu0
        %v4313 = vpop.f32.mrb[0].mxu0
        %v4314 = vadd.f32 %v4153, %v4313
        %v4315 = vpop.f32.mrb[0].mxu0
        %4316 = vmatprep.mubr.bf16.mxu0 0
        %4317 = vmatmul.mubr.bf16.gmra.mrb[0].mxu0 %v3362
        %v4318 = vpop.f32.mrb[0].mxu0
        %v4319 = vadd.f32 %v4158, %v4318
        %v4320 = vpop.f32.mrb[0].mxu0
        %v4321 = vpop.f32.mrb[0].mxu0
        %v4322 = vadd.f32 %v4161, %v4321
        %v4323 = vpop.f32.mrb[0].mxu0
        %4324 = vmatprep.mubr.bf16.mxu0 0
        %4325 = vmatmul.mubr.bf16.gmra.mrb[0].mxu0 %v3365
        %v4326 = vpop.f32.mrb[0].mxu0
        %v4327 = vadd.f32 %v4166, %v4326
        %v4328 = vpop.f32.mrb[0].mxu0
        %v4329 = vpop.f32.mrb[0].mxu0
        %v4330 = vadd.f32 %v4169, %v4329
        %v4331 = vpop.f32.mrb[0].mxu0
        %4332 = vmatprep.mubr.bf16.mxu0 0
        %4333 = vmatmul.mubr.bf16.gmra.mrb[0].mxu0 %v3368
        %v4334 = vpop.f32.mrb[0].mxu0
        %v4335 = vadd.f32 %v4174, %v4334
        %v4336 = vpop.f32.mrb[0].mxu0
        %v4337 = vpop.f32.mrb[0].mxu0
        %v4338 = vadd.f32 %v4177, %v4337
        %v4339 = vpop.f32.mrb[0].mxu0
        %4340 = vmatprep.mubr.bf16.mxu0 0
        %4341 = vmatmul.mubr.bf16.gmra.mrb[0].mxu0 %v3371
        %v4342 = vpop.f32.mrb[0].mxu0
        %v4343 = vadd.f32 %v4182, %v4342
        %v4344 = vpop.f32.mrb[0].mxu0
        %v4345 = vpop.f32.mrb[0].mxu0
        %v4346 = vadd.f32 %v4185, %v4345
        %v4347 = vpop.f32.mrb[0].mxu0
        %4348 = vmatprep.mubr.bf16.mxu0 0
        %4349 = vmatmul.mubr.bf16.gmra.mrb[0].mxu0 %v3374
        %v4350 = vpop.f32.mrb[0].mxu0
        %v4351 = vadd.f32 %v4190, %v4350
        %v4352 = vpop.f32.mrb[0].mxu0
        %v4353 = vpop.f32.mrb[0].mxu0
        %v4354 = vadd.f32 %v4193, %v4353
        %v4355 = vpop.f32.mrb[0].mxu0
        %4356 = vmatprep.mubr.bf16.mxu0 0
        %4357 = vmatmul.mubr.bf16.gmra.mrb[0].mxu0 %v3377
        %v4358 = vpop.f32.mrb[0].mxu0
        %v4359 = vadd.f32 %v4198, %v4358
        %v4360 = vpop.f32.mrb[0].mxu0
        %v4361 = vpop.f32.mrb[0].mxu0
        %v4362 = vadd.f32 %v4201, %v4361
        %v4363 = vpop.f32.mrb[0].mxu0
        %4364 = vmatprep.mubr.bf16.mxu0 0
        %4365 = vmatmul.mubr.bf16.gmra.mrb[0].mxu0 %v3380
        %v4366 = vpop.f32.mrb[0].mxu0
        %v4367 = vadd.f32 %v4206, %v4366
        %v4368 = vpop.f32.mrb[0].mxu0
        %v4369 = vpop.f32.mrb[0].mxu0
        %v4370 = vadd.f32 %v4209, %v4369
        %v4371 = vpop.f32.mrb[0].mxu0
        %4372 = vmatprep.mubr.bf16.mxu0 0
        %4373 = vmatmul.mubr.bf16.gmra.mrb[0].mxu0 %v3383
        %v4374 = vpop.f32.mrb[0].mxu0
        %v4375 = vadd.f32 %v4214, %v4374
        %v4376 = vpop.f32.mrb[0].mxu0
        %v4377 = vpop.f32.mrb[0].mxu0
        %v4378 = vadd.f32 %v4217, %v4377
        %v4379 = vpop.f32.mrb[0].mxu0
        %4380 = vmatprep.mubr.bf16.mxu0 0
        %4381 = vmatmul.mubr.bf16.gmra.mrb[0].mxu0 %v3386
        %v4382 = vpop.f32.mrb[0].mxu0
        %v4383 = vadd.f32 %v4222, %v4382
        %v4384 = vpop.f32.mrb[0].mxu0
        %v4385 = vpop.f32.mrb[0].mxu0
        %v4386 = vadd.f32 %v4225, %v4385
        %v4387 = vpop.f32.mrb[0].mxu0
        %4388 = vmatprep.mubr.bf16.mxu0 0
        %4389 = vmatmul.mubr.bf16.gmra.mrb[0].mxu0 %v3389
        %v4390 = vpop.f32.mrb[0].mxu0
        %v4391 = vadd.f32 %v4230, %v4390
        %v4392 = vpop.f32.mrb[0].mxu0
        %v4393 = vpop.f32.mrb[0].mxu0
        %v4394 = vadd.f32 %v4233, %v4393
        %v4395 = vpop.f32.mrb[0].mxu0
        %4396 = vmatprep.mubr.bf16.mxu0 0
        %4397 = vmatmul.mubr.bf16.gmra.mrb[0].mxu0 %v3392
        %v4398 = vpop.f32.mrb[0].mxu0
        %v4399 = vadd.f32 %v4238, %v4398
        %v4400 = vpop.f32.mrb[0].mxu0
        %v4401 = vpop.f32.mrb[0].mxu0
        %v4402 = vadd.f32 %v4241, %v4401
        %v4403 = vpop.f32.mrb[0].mxu0
        %4404 = vmatprep.mubr.bf16.mxu0 0
        %4405 = vmatmul.mubr.bf16.gmra.mrb[0].mxu0 %v3395
        %v4406 = vpop.f32.mrb[0].mxu0
        %v4407 = vadd.f32 %v4246, %v4406
        %v4408 = vpop.f32.mrb[0].mxu0
        %v4409 = vpop.f32.mrb[0].mxu0
        %v4410 = vadd.f32 %v4249, %v4409
        %v4411 = vpop.f32.mrb[0].mxu0
        %4412 = vmatprep.mubr.bf16.mxu0 0
        %4413 = vmatmul.mubr.bf16.gmra.mrb[0].mxu0 %v3398
        %v4414 = vpop.f32.mrb[0].mxu0
        %v4415 = vadd.f32 %v4254, %v4414
        %v4416 = vpop.f32.mrb[0].mxu0
        %v4417 = vpop.f32.mrb[0].mxu0
        %v4418 = vadd.f32 %v4257, %v4417
        %v4419 = vpop.f32.mrb[0].mxu0
        %4420 = vmatprep.mubr.bf16.mxu0 0
        %4421 = vmatmul.mubr.bf16.gmra.mrb[0].mxu0 %v3401
        %v4422 = vpop.f32.mrb[0].mxu0
        %v4423 = vadd.f32 %v4262, %v4422
        %v4424 = vpop.f32.mrb[0].mxu0
        %v4425 = vpop.f32.mrb[0].mxu0
        %v4426 = vadd.f32 %v4265, %v4425
        %v4427 = vpop.f32.mrb[0].mxu0
        %4428 = vmatprep.mubr.bf16.mxu0 0
        %4429 = vmatmul.mubr.bf16.gmra.mrb[0].mxu0 %v3404
        %v4430 = vpop.f32.mrb[0].mxu0
        %v4431 = vadd.f32 %v4270, %v4430
        %v4432 = vpop.f32.mrb[0].mxu0
        %v4433 = vpop.f32.mrb[0].mxu0
        %v4434 = vadd.f32 %v4273, %v4433
        %v4435 = vpop.f32.mrb[0].mxu0
        %4436 = vdwg.mxu0
        %v4437 = vld [vmem:[#allocation3 + $0x30] sm:$0xff]
        %v4438 = vld [vmem:[#allocation3 + $0x38] sm:$0xff]
        %v4439 = vld [vmem:[#allocation3 + $0x40] sm:$0xff]
        %v4440 = vld [vmem:[#allocation3 + $0x48] sm:$0xff]
        %v4441 = vld [vmem:[#allocation3 + $0x50] sm:$0xff]
        %v4442 = vld [vmem:[#allocation3 + $0x58] sm:$0xff]
        %v4443 = vld [vmem:[#allocation3 + $0x60] sm:$0xff]
        %v4444 = vld [vmem:[#allocation3 + $0x68] sm:$0xff]
        %v4445 = vld [vmem:[#allocation3 + $0x70] sm:$0xff]
        %v4446 = vld [vmem:[#allocation3 + $0x78] sm:$0xff]
        %v4447 = vld [vmem:[#allocation3 + $0x80] sm:$0xff]
        %v4448 = vld [vmem:[#allocation3 + $0x88] sm:$0xff]
        %v4449 = vld [vmem:[#allocation3 + $0x90] sm:$0xff]
        %v4450 = vld [vmem:[#allocation3 + $0x98] sm:$0xff]
        %v4451 = vld [vmem:[#allocation3 + $0xa0] sm:$0xff]
        %v4452 = vld [vmem:[#allocation3 + $0xa8] sm:$0xff]
        %v4453 = vld [vmem:[#allocation3 + $0xb0] sm:$0xff]
        %v4454 = vld [vmem:[#allocation3 + $0xb8] sm:$0xff]
        %v4455 = vld [vmem:[#allocation3 + $0xc0] sm:$0xff]
        %v4456 = vld [vmem:[#allocation3 + $0xc8] sm:$0xff]
        %v4457 = vld [vmem:[#allocation3 + $0xd0] sm:$0xff]
        %v4458 = vld [vmem:[#allocation3 + $0xd8] sm:$0xff]
        %v4459 = vld [vmem:[#allocation3 + $0xe0] sm:$0xff]
        %v4460 = vld [vmem:[#allocation3 + $0xe8] sm:$0xff]
        %v4461 = vld [vmem:[#allocation3 + $0xf0] sm:$0xff]
        %v4462 = vld [vmem:[#allocation3 + $0xf8] sm:$0xff]
        %v4463 = vld [vmem:[#allocation3 + $0x100] sm:$0xff]
        %v4464 = vld [vmem:[#allocation3 + $0x108] sm:$0xff]
        %v4465 = vld [vmem:[#allocation3 + $0x110] sm:$0xff]
        %v4466 = vld [vmem:[#allocation3 + $0x118] sm:$0xff]
        %v4467 = vld [vmem:[#allocation3 + $0x120] sm:$0xff]
        %v4468 = vld [vmem:[#allocation3 + $0x128] sm:$0xff]
        %v4469 = vld [vmem:[#allocation3 + $0x130] sm:$0xff]
        %v4470 = vld [vmem:[#allocation3 + $0x138] sm:$0xff]
        %v4471 = vld [vmem:[#allocation3 + $0x140] sm:$0xff]
        %v4472 = vld [vmem:[#allocation3 + $0x148] sm:$0xff]
        %v4473 = vld [vmem:[#allocation3 + $0x150] sm:$0xff]
        %v4474 = vld [vmem:[#allocation3 + $0x158] sm:$0xff]
        %v4475 = vld [vmem:[#allocation3 + $0x160] sm:$0xff]
        %v4476 = vld [vmem:[#allocation3 + $0x168] sm:$0xff]
        %v4477 = vld [vmem:[#allocation3 + $0x170] sm:$0xff]
        %v4478 = vld [vmem:[#allocation3 + $0x178] sm:$0xff]
        %v4479 = vld [vmem:[#allocation3 + $0x180] sm:$0xff]
        %v4480 = vld [vmem:[#allocation3 + $0x188] sm:$0xff]
        %v4481 = vld [vmem:[#allocation3 + $0x190] sm:$0xff]
        %v4482 = vld [vmem:[#allocation3 + $0x198] sm:$0xff]
        %v4483 = vld [vmem:[#allocation3 + $0x1a0] sm:$0xff]
        %v4484 = vld [vmem:[#allocation3 + $0x1a8] sm:$0xff]
        %s4485 = scalar_lea.vmem [#allocation10], 384
        %v4486 = vld [vmem:[%s4485] sm:$0xf]
        %v4487 = vld [vmem:[%s4485 + $0x4] sm:$0xf]
        %v4488 = vld [vmem:[%s4485 + $0x8] sm:$0xf]
        %v4489 = vld [vmem:[%s4485 + $0xc] sm:$0xf]
        %v4490 = vld [vmem:[%s4485 + $0x10] sm:$0xf]
        %v4491 = vld [vmem:[%s4485 + $0x14] sm:$0xf]
        %v4492 = vld [vmem:[%s4485 + $0x18] sm:$0xf]
        %v4493 = vld [vmem:[%s4485 + $0x1c] sm:$0xf]
        %v4494 = vld [vmem:[%s4485 + $0x20] sm:$0xf]
        %v4495 = vld [vmem:[%s4485 + $0x24] sm:$0xf]
        %v4496 = vld [vmem:[%s4485 + $0x28] sm:$0xf]
        %v4497 = vld [vmem:[%s4485 + $0x2c] sm:$0xf]
        %v4498 = vld [vmem:[%s4485 + $0x30] sm:$0xf]
        %v4499 = vld [vmem:[%s4485 + $0x34] sm:$0xf]
        %v4500 = vld [vmem:[%s4485 + $0x38] sm:$0xf]
        %v4501 = vld [vmem:[%s4485 + $0x3c] sm:$0xf]
        %v4502 = vld [vmem:[%s4485 + $0x40] sm:$0xf]
        %v4503 = vld [vmem:[%s4485 + $0x44] sm:$0xf]
        %v4504 = vld [vmem:[%s4485 + $0x48] sm:$0xf]
        %v4505 = vld [vmem:[%s4485 + $0x4c] sm:$0xf]
        %v4506 = vld [vmem:[%s4485 + $0x50] sm:$0xf]
        %v4507 = vld [vmem:[%s4485 + $0x54] sm:$0xf]
        %v4508 = vld [vmem:[%s4485 + $0x58] sm:$0xf]
        %v4509 = vld [vmem:[%s4485 + $0x5c] sm:$0xf]
        %v4510 = vld [vmem:[%s4485 + $0x60] sm:$0xf]
        %v4511 = vld [vmem:[%s4485 + $0x64] sm:$0xf]
        %v4512 = vld [vmem:[%s4485 + $0x68] sm:$0xf]
        %v4513 = vld [vmem:[%s4485 + $0x6c] sm:$0xf]
        %v4514 = vld [vmem:[%s4485 + $0x70] sm:$0xf]
        %v4515 = vld [vmem:[%s4485 + $0x74] sm:$0xf]
        %v4516 = vld [vmem:[%s4485 + $0x78] sm:$0xf]
        %v4517 = vld [vmem:[%s4485 + $0x7c] sm:$0xf]
        %v4518 = vld [vmem:[%s4485 + $0x80] sm:$0xf]
        %v4519 = vld [vmem:[%s4485 + $0x84] sm:$0xf]
        %v4520 = vld [vmem:[%s4485 + $0x88] sm:$0xf]
        %v4521 = vld [vmem:[%s4485 + $0x8c] sm:$0xf]
        %v4522 = vld [vmem:[%s4485 + $0x90] sm:$0xf]
        %v4523 = vld [vmem:[%s4485 + $0x94] sm:$0xf]
        %v4524 = vld [vmem:[%s4485 + $0x98] sm:$0xf]
        %v4525 = vld [vmem:[%s4485 + $0x9c] sm:$0xf]
        %v4526 = vld [vmem:[%s4485 + $0xa0] sm:$0xf]
        %v4527 = vld [vmem:[%s4485 + $0xa4] sm:$0xf]
        %v4528 = vld [vmem:[%s4485 + $0xa8] sm:$0xf]
        %v4529 = vld [vmem:[%s4485 + $0xac] sm:$0xf]
        %v4530 = vld [vmem:[%s4485 + $0xb0] sm:$0xf]
        %v4531 = vld [vmem:[%s4485 + $0xb4] sm:$0xf]
        %v4532 = vld [vmem:[%s4485 + $0xb8] sm:$0xf]
        %v4533 = vld [vmem:[%s4485 + $0xbc] sm:$0xf]
        %v4582 = vunpack.c.l.b16 %v4486
        %v4583 = vunpack.c.l.b16 %v4487
        %v4584 = vunpack.c.l.b16 %v4488
        %v4585 = vunpack.c.l.b16 %v4489
        %v4586 = vunpack.c.l.b16 %v4490
        %v4587 = vunpack.c.l.b16 %v4491
        %v4588 = vunpack.c.l.b16 %v4492
        %v4589 = vunpack.c.l.b16 %v4493
        %v4590 = vunpack.c.l.b16 %v4494
        %v4591 = vunpack.c.l.b16 %v4495
        %v4592 = vunpack.c.l.b16 %v4496
        %v4593 = vunpack.c.l.b16 %v4497
        %v4594 = vunpack.c.l.b16 %v4498
        %v4595 = vunpack.c.l.b16 %v4499
        %v4596 = vunpack.c.l.b16 %v4500
        %v4597 = vunpack.c.l.b16 %v4501
        %v4598 = vunpack.c.l.b16 %v4502
        %v4599 = vunpack.c.l.b16 %v4503
        %v4600 = vunpack.c.l.b16 %v4504
        %v4601 = vunpack.c.l.b16 %v4505
        %v4602 = vunpack.c.l.b16 %v4506
        %v4603 = vunpack.c.l.b16 %v4507
        %v4604 = vunpack.c.l.b16 %v4508
        %v4605 = vunpack.c.l.b16 %v4509
        %v4606 = vunpack.c.l.b16 %v4510
        %v4607 = vunpack.c.l.b16 %v4511
        %v4608 = vunpack.c.l.b16 %v4512
        %v4609 = vunpack.c.l.b16 %v4513
        %v4610 = vunpack.c.l.b16 %v4514
        %v4611 = vunpack.c.l.b16 %v4515
        %v4612 = vunpack.c.l.b16 %v4516
        %v4613 = vunpack.c.l.b16 %v4517
        %v4614 = vunpack.c.l.b16 %v4518
        %v4615 = vunpack.c.l.b16 %v4519
        %v4616 = vunpack.c.l.b16 %v4520
        %v4617 = vunpack.c.l.b16 %v4521
        %v4618 = vunpack.c.l.b16 %v4522
        %v4619 = vunpack.c.l.b16 %v4523
        %v4620 = vunpack.c.l.b16 %v4524
        %v4621 = vunpack.c.l.b16 %v4525
        %v4622 = vunpack.c.l.b16 %v4526
        %v4623 = vunpack.c.l.b16 %v4527
        %v4624 = vunpack.c.l.b16 %v4528
        %v4625 = vunpack.c.l.b16 %v4529
        %v4626 = vunpack.c.l.b16 %v4530
        %v4627 = vunpack.c.l.b16 %v4531
        %v4628 = vunpack.c.l.b16 %v4532
        %v4629 = vunpack.c.l.b16 %v4533
        %v4630 = vpack.c.b16 %v4583, %v4582
        %v4631 = vpack.c.b16 %v4585, %v4584
        %v4632 = vpack.c.b16 %v4587, %v4586
        %v4633 = vpack.c.b16 %v4589, %v4588
        %v4634 = vpack.c.b16 %v4591, %v4590
        %v4635 = vpack.c.b16 %v4593, %v4592
        %v4636 = vpack.c.b16 %v4595, %v4594
        %v4637 = vpack.c.b16 %v4597, %v4596
        %v4638 = vpack.c.b16 %v4599, %v4598
        %v4639 = vpack.c.b16 %v4601, %v4600
        %v4640 = vpack.c.b16 %v4603, %v4602
        %v4641 = vpack.c.b16 %v4605, %v4604
        %v4642 = vpack.c.b16 %v4607, %v4606
        %v4643 = vpack.c.b16 %v4609, %v4608
        %v4644 = vpack.c.b16 %v4611, %v4610
        %v4645 = vpack.c.b16 %v4613, %v4612
        %v4646 = vpack.c.b16 %v4615, %v4614
        %v4647 = vpack.c.b16 %v4617, %v4616
        %v4648 = vpack.c.b16 %v4619, %v4618
        %v4649 = vpack.c.b16 %v4621, %v4620
        %v4650 = vpack.c.b16 %v4623, %v4622
        %v4651 = vpack.c.b16 %v4625, %v4624
        %v4652 = vpack.c.b16 %v4627, %v4626
        %v4653 = vpack.c.b16 %v4629, %v4628
        %4678 = vmatprep.subr.bf16.mxu0 0
        %4679 = vmatpush1.bf16.msra.mxu0 %v4630
        %4680 = vmatprep.subr.bf16.mxu0 0
        %4681 = vmatpush1.bf16.msra.mxu0 %v4631
        %4682 = vmatprep.subr.bf16.mxu0 0
        %4683 = vmatpush1.bf16.msra.mxu0 %v4632
        %4684 = vmatprep.subr.bf16.mxu0 0
        %4685 = vmatpush1.bf16.msra.mxu0 %v4633
        %4686 = vmatprep.subr.bf16.mxu0 0
        %4687 = vmatpush1.bf16.msra.mxu0 %v4634
        %4688 = vmatprep.subr.bf16.mxu0 0
        %4689 = vmatpush1.bf16.msra.mxu0 %v4635
        %4690 = vmatprep.subr.bf16.mxu0 0
        %4691 = vmatpush1.bf16.msra.mxu0 %v4636
        %4692 = vmatprep.subr.bf16.mxu0 0
        %4693 = vmatpush1.bf16.msra.mxu0 %v4637
        %4694 = vmatprep.subr.bf16.mxu0 0
        %4695 = vmatpush1.bf16.msra.mxu0 %v4638
        %4696 = vmatprep.subr.bf16.mxu0 0
        %4697 = vmatpush1.bf16.msra.mxu0 %v4639
        %4698 = vmatprep.subr.bf16.mxu0 0
        %4699 = vmatpush1.bf16.msra.mxu0 %v4640
        %4700 = vmatprep.subr.bf16.mxu0 0
        %4701 = vmatpush1.bf16.msra.mxu0 %v4641
        %4702 = vmatprep.subr.bf16.mxu0 0
        %4703 = vmatpush1.bf16.msra.mxu0 %v4642
        %4704 = vmatprep.subr.bf16.mxu0 0
        %4705 = vmatpush1.bf16.msra.mxu0 %v4643
        %4706 = vmatprep.subr.bf16.mxu0 0
        %4707 = vmatpush1.bf16.msra.mxu0 %v4644
        %4708 = vmatprep.subr.bf16.mxu0 0
        %4709 = vmatpush1.bf16.msra.mxu0 %v4645
        %4710 = vmatprep.mubr.bf16.mxu0 %v4438
        %4711 = vmatmul.mubr.bf16.gmra.mrb[0].mxu0 %v4437
        %v4712 = vpop.f32.mrb[0].mxu0
        %v4713 = vadd.f32 0.0, %v4712
        %v4714 = vpop.f32.mrb[0].mxu0
        %v4715 = vpop.f32.mrb[0].mxu0
        %v4716 = vadd.f32 0.0, %v4715
        %v4717 = vpop.f32.mrb[0].mxu0
        %4718 = vmatprep.mubr.bf16.mxu0 %v4441
        %4719 = vmatmul.mubr.bf16.gmra.mrb[0].mxu0 %v4440
        %v4720 = vpop.f32.mrb[0].mxu0
        %v4721 = vadd.f32 0.0, %v4720
        %v4722 = vpop.f32.mrb[0].mxu0
        %v4723 = vpop.f32.mrb[0].mxu0
        %v4724 = vadd.f32 0.0, %v4723
        %v4725 = vpop.f32.mrb[0].mxu0
        %4726 = vmatprep.mubr.bf16.mxu0 %v4444
        %4727 = vmatmul.mubr.bf16.gmra.mrb[0].mxu0 %v4443
        %v4728 = vpop.f32.mrb[0].mxu0
        %v4729 = vadd.f32 0.0, %v4728
        %v4730 = vpop.f32.mrb[0].mxu0
        %v4731 = vpop.f32.mrb[0].mxu0
        %v4732 = vadd.f32 0.0, %v4731
        %v4733 = vpop.f32.mrb[0].mxu0
        %4734 = vmatprep.mubr.bf16.mxu0 %v4447
        %4735 = vmatmul.mubr.bf16.gmra.mrb[0].mxu0 %v4446
        %v4736 = vpop.f32.mrb[0].mxu0
        %v4737 = vadd.f32 0.0, %v4736
        %v4738 = vpop.f32.mrb[0].mxu0
        %v4739 = vpop.f32.mrb[0].mxu0
        %v4740 = vadd.f32 0.0, %v4739
        %v4741 = vpop.f32.mrb[0].mxu0
        %4742 = vmatprep.mubr.bf16.mxu0 %v4450
        %4743 = vmatmul.mubr.bf16.gmra.mrb[0].mxu0 %v4449
        %v4744 = vpop.f32.mrb[0].mxu0
        %v4745 = vadd.f32 0.0, %v4744
        %v4746 = vpop.f32.mrb[0].mxu0
        %v4747 = vpop.f32.mrb[0].mxu0
        %v4748 = vadd.f32 0.0, %v4747
        %v4749 = vpop.f32.mrb[0].mxu0
        %4750 = vmatprep.mubr.bf16.mxu0 %v4453
        %4751 = vmatmul.mubr.bf16.gmra.mrb[0].mxu0 %v4452
        %v4752 = vpop.f32.mrb[0].mxu0
        %v4753 = vadd.f32 0.0, %v4752
        %v4754 = vpop.f32.mrb[0].mxu0
        %v4755 = vpop.f32.mrb[0].mxu0
        %v4756 = vadd.f32 0.0, %v4755
        %v4757 = vpop.f32.mrb[0].mxu0
        %4758 = vmatprep.mubr.bf16.mxu0 %v4456
        %4759 = vmatmul.mubr.bf16.gmra.mrb[0].mxu0 %v4455
        %v4760 = vpop.f32.mrb[0].mxu0
        %v4761 = vadd.f32 0.0, %v4760
        %v4762 = vpop.f32.mrb[0].mxu0
        %v4763 = vpop.f32.mrb[0].mxu0
        %v4764 = vadd.f32 0.0, %v4763
        %v4765 = vpop.f32.mrb[0].mxu0
        %4766 = vmatprep.mubr.bf16.mxu0 %v4459
        %4767 = vmatmul.mubr.bf16.gmra.mrb[0].mxu0 %v4458
        %v4768 = vpop.f32.mrb[0].mxu0
        %v4769 = vadd.f32 0.0, %v4768
        %v4770 = vpop.f32.mrb[0].mxu0
        %v4771 = vpop.f32.mrb[0].mxu0
        %v4772 = vadd.f32 0.0, %v4771
        %v4773 = vpop.f32.mrb[0].mxu0
        %4774 = vmatprep.mubr.bf16.mxu0 %v4462
        %4775 = vmatmul.mubr.bf16.gmra.mrb[0].mxu0 %v4461
        %v4776 = vpop.f32.mrb[0].mxu0
        %v4777 = vadd.f32 0.0, %v4776
        %v4778 = vpop.f32.mrb[0].mxu0
        %v4779 = vpop.f32.mrb[0].mxu0
        %v4780 = vadd.f32 0.0, %v4779
        %v4781 = vpop.f32.mrb[0].mxu0
        %4782 = vmatprep.mubr.bf16.mxu0 %v4465
        %4783 = vmatmul.mubr.bf16.gmra.mrb[0].mxu0 %v4464
        %v4784 = vpop.f32.mrb[0].mxu0
        %v4785 = vadd.f32 0.0, %v4784
        %v4786 = vpop.f32.mrb[0].mxu0
        %v4787 = vpop.f32.mrb[0].mxu0
        %v4788 = vadd.f32 0.0, %v4787
        %v4789 = vpop.f32.mrb[0].mxu0
        %4790 = vmatprep.mubr.bf16.mxu0 %v4468
        %4791 = vmatmul.mubr.bf16.gmra.mrb[0].mxu0 %v4467
        %v4792 = vpop.f32.mrb[0].mxu0
        %v4793 = vadd.f32 0.0, %v4792
        %v4794 = vpop.f32.mrb[0].mxu0
        %v4795 = vpop.f32.mrb[0].mxu0
        %v4796 = vadd.f32 0.0, %v4795
        %v4797 = vpop.f32.mrb[0].mxu0
        %4798 = vmatprep.mubr.bf16.mxu0 %v4471
        %4799 = vmatmul.mubr.bf16.gmra.mrb[0].mxu0 %v4470
        %v4800 = vpop.f32.mrb[0].mxu0
        %v4801 = vadd.f32 0.0, %v4800
        %v4802 = vpop.f32.mrb[0].mxu0
        %v4803 = vpop.f32.mrb[0].mxu0
        %v4804 = vadd.f32 0.0, %v4803
        %v4805 = vpop.f32.mrb[0].mxu0
        %4806 = vmatprep.mubr.bf16.mxu0 %v4474
        %4807 = vmatmul.mubr.bf16.gmra.mrb[0].mxu0 %v4473
        %v4808 = vpop.f32.mrb[0].mxu0
        %v4809 = vadd.f32 0.0, %v4808
        %v4810 = vpop.f32.mrb[0].mxu0
        %v4811 = vpop.f32.mrb[0].mxu0
        %v4812 = vadd.f32 0.0, %v4811
        %v4813 = vpop.f32.mrb[0].mxu0
        %4814 = vmatprep.mubr.bf16.mxu0 %v4477
        %4815 = vmatmul.mubr.bf16.gmra.mrb[0].mxu0 %v4476
        %v4816 = vpop.f32.mrb[0].mxu0
        %v4817 = vadd.f32 0.0, %v4816
        %v4818 = vpop.f32.mrb[0].mxu0
        %v4819 = vpop.f32.mrb[0].mxu0
        %v4820 = vadd.f32 0.0, %v4819
        %v4821 = vpop.f32.mrb[0].mxu0
        %4822 = vmatprep.mubr.bf16.mxu0 %v4480
        %4823 = vmatmul.mubr.bf16.gmra.mrb[0].mxu0 %v4479
        %v4824 = vpop.f32.mrb[0].mxu0
        %v4825 = vadd.f32 0.0, %v4824
        %v4826 = vpop.f32.mrb[0].mxu0
        %v4827 = vpop.f32.mrb[0].mxu0
        %v4828 = vadd.f32 0.0, %v4827
        %v4829 = vpop.f32.mrb[0].mxu0
        %4830 = vmatprep.mubr.bf16.mxu0 %v4483
        %4831 = vmatmul.mubr.bf16.gmra.mrb[0].mxu0 %v4482
        %v4832 = vpop.f32.mrb[0].mxu0
        %v4833 = vadd.f32 0.0, %v4832
        %v4834 = vpop.f32.mrb[0].mxu0
        %v4835 = vpop.f32.mrb[0].mxu0
        %v4836 = vadd.f32 0.0, %v4835
        %v4837 = vpop.f32.mrb[0].mxu0
        %4838 = vdwg.mxu0
        %4839 = vmatprep.subr.bf16.mxu0 0
        %4840 = vmatpush1.bf16.msra.mxu0 %v4646
        %4841 = vmatprep.subr.bf16.mxu0 0
        %4842 = vmatpush1.bf16.msra.mxu0 %v4647
        %4843 = vmatprep.subr.bf16.mxu0 0
        %4844 = vmatpush1.bf16.msra.mxu0 %v4648
        %4845 = vmatprep.subr.bf16.mxu0 0
        %4846 = vmatpush1.bf16.msra.mxu0 %v4649
        %4847 = vmatprep.subr.bf16.mxu0 0
        %4848 = vmatpush1.bf16.msra.mxu0 %v4650
        %4849 = vmatprep.subr.bf16.mxu0 0
        %4850 = vmatpush1.bf16.msra.mxu0 %v4651
        %4851 = vmatprep.subr.bf16.mxu0 0
        %4852 = vmatpush1.bf16.msra.mxu0 %v4652
        %4853 = vmatprep.subr.bf16.mxu0 0
        %4854 = vmatpush1.bf16.msra.mxu0 %v4653
        %4855 = vmatprep.subr.bf16.mxu0 0
        %4856 = vmatpush1.bf16.msra.mxu0 0
        %4857 = vmatprep.subr.bf16.mxu0 0
        %4858 = vmatpush1.bf16.msra.mxu0 0
        %4859 = vmatprep.subr.bf16.mxu0 0
        %4860 = vmatpush1.bf16.msra.mxu0 0
        %4861 = vmatprep.subr.bf16.mxu0 0
        %4862 = vmatpush1.bf16.msra.mxu0 0
        %4863 = vmatprep.subr.bf16.mxu0 0
        %4864 = vmatpush1.bf16.msra.mxu0 0
        %4865 = vmatprep.subr.bf16.mxu0 0
        %4866 = vmatpush1.bf16.msra.mxu0 0
        %4867 = vmatprep.subr.bf16.mxu0 0
        %4868 = vmatpush1.bf16.msra.mxu0 0
        %4869 = vmatprep.subr.bf16.mxu0 0
        %4870 = vmatpush1.bf16.msra.mxu0 0
        %4871 = vmatprep.mubr.bf16.mxu0 0
        %4872 = vmatmul.mubr.bf16.gmra.mrb[0].mxu0 %v4439
        %v4873 = vpop.f32.mrb[0].mxu0
        %v4874 = vadd.f32 %v4713, %v4873
        %v4875 = vpop.f32.mrb[0].mxu0
        %v4876 = vpop.f32.mrb[0].mxu0
        %v4877 = vadd.f32 %v4716, %v4876
        %v4878 = vpop.f32.mrb[0].mxu0
        %4879 = vmatprep.mubr.bf16.mxu0 0
        %4880 = vmatmul.mubr.bf16.gmra.mrb[0].mxu0 %v4442
        %v4881 = vpop.f32.mrb[0].mxu0
        %v4882 = vadd.f32 %v4721, %v4881
        %v4883 = vpop.f32.mrb[0].mxu0
        %v4884 = vpop.f32.mrb[0].mxu0
        %v4885 = vadd.f32 %v4724, %v4884
        %v4886 = vpop.f32.mrb[0].mxu0
        %4887 = vmatprep.mubr.bf16.mxu0 0
        %4888 = vmatmul.mubr.bf16.gmra.mrb[0].mxu0 %v4445
        %v4889 = vpop.f32.mrb[0].mxu0
        %v4890 = vadd.f32 %v4729, %v4889
        %v4891 = vpop.f32.mrb[0].mxu0
        %v4892 = vpop.f32.mrb[0].mxu0
        %v4893 = vadd.f32 %v4732, %v4892
        %v4894 = vpop.f32.mrb[0].mxu0
        %4895 = vmatprep.mubr.bf16.mxu0 0
        %4896 = vmatmul.mubr.bf16.gmra.mrb[0].mxu0 %v4448
        %v4897 = vpop.f32.mrb[0].mxu0
        %v4898 = vadd.f32 %v4737, %v4897
        %v4899 = vpop.f32.mrb[0].mxu0
        %v4900 = vpop.f32.mrb[0].mxu0
        %v4901 = vadd.f32 %v4740, %v4900
        %v4902 = vpop.f32.mrb[0].mxu0
        %4903 = vmatprep.mubr.bf16.mxu0 0
        %4904 = vmatmul.mubr.bf16.gmra.mrb[0].mxu0 %v4451
        %v4905 = vpop.f32.mrb[0].mxu0
        %v4906 = vadd.f32 %v4745, %v4905
        %v4907 = vpop.f32.mrb[0].mxu0
        %v4908 = vpop.f32.mrb[0].mxu0
        %v4909 = vadd.f32 %v4748, %v4908
        %v4910 = vpop.f32.mrb[0].mxu0
        %4911 = vmatprep.mubr.bf16.mxu0 0
        %4912 = vmatmul.mubr.bf16.gmra.mrb[0].mxu0 %v4454
        %v4913 = vpop.f32.mrb[0].mxu0
        %v4914 = vadd.f32 %v4753, %v4913
        %v4915 = vpop.f32.mrb[0].mxu0
        %v4916 = vpop.f32.mrb[0].mxu0
        %v4917 = vadd.f32 %v4756, %v4916
        %v4918 = vpop.f32.mrb[0].mxu0
        %4919 = vmatprep.mubr.bf16.mxu0 0
        %4920 = vmatmul.mubr.bf16.gmra.mrb[0].mxu0 %v4457
        %v4921 = vpop.f32.mrb[0].mxu0
        %v4922 = vadd.f32 %v4761, %v4921
        %v4923 = vpop.f32.mrb[0].mxu0
        %v4924 = vpop.f32.mrb[0].mxu0
        %v4925 = vadd.f32 %v4764, %v4924
        %v4926 = vpop.f32.mrb[0].mxu0
        %4927 = vmatprep.mubr.bf16.mxu0 0
        %4928 = vmatmul.mubr.bf16.gmra.mrb[0].mxu0 %v4460
        %v4929 = vpop.f32.mrb[0].mxu0
        %v4930 = vadd.f32 %v4769, %v4929
        %v4931 = vpop.f32.mrb[0].mxu0
        %v4932 = vpop.f32.mrb[0].mxu0
        %v4933 = vadd.f32 %v4772, %v4932
        %v4934 = vpop.f32.mrb[0].mxu0
        %4935 = vmatprep.mubr.bf16.mxu0 0
        %4936 = vmatmul.mubr.bf16.gmra.mrb[0].mxu0 %v4463
        %v4937 = vpop.f32.mrb[0].mxu0
        %v4938 = vadd.f32 %v4777, %v4937
        %v4939 = vpop.f32.mrb[0].mxu0
        %v4940 = vpop.f32.mrb[0].mxu0
        %v4941 = vadd.f32 %v4780, %v4940
        %v4942 = vpop.f32.mrb[0].mxu0
        %4943 = vmatprep.mubr.bf16.mxu0 0
        %4944 = vmatmul.mubr.bf16.gmra.mrb[0].mxu0 %v4466
        %v4945 = vpop.f32.mrb[0].mxu0
        %v4946 = vadd.f32 %v4785, %v4945
        %v4947 = vpop.f32.mrb[0].mxu0
        %v4948 = vpop.f32.mrb[0].mxu0
        %v4949 = vadd.f32 %v4788, %v4948
        %v4950 = vpop.f32.mrb[0].mxu0
        %4951 = vmatprep.mubr.bf16.mxu0 0
        %4952 = vmatmul.mubr.bf16.gmra.mrb[0].mxu0 %v4469
        %v4953 = vpop.f32.mrb[0].mxu0
        %v4954 = vadd.f32 %v4793, %v4953
        %v4955 = vpop.f32.mrb[0].mxu0
        %v4956 = vpop.f32.mrb[0].mxu0
        %v4957 = vadd.f32 %v4796, %v4956
        %v4958 = vpop.f32.mrb[0].mxu0
        %4959 = vmatprep.mubr.bf16.mxu0 0
        %4960 = vmatmul.mubr.bf16.gmra.mrb[0].mxu0 %v4472
        %v4961 = vpop.f32.mrb[0].mxu0
        %v4962 = vadd.f32 %v4801, %v4961
        %v4963 = vpop.f32.mrb[0].mxu0
        %v4964 = vpop.f32.mrb[0].mxu0
        %v4965 = vadd.f32 %v4804, %v4964
        %v4966 = vpop.f32.mrb[0].mxu0
        %4967 = vmatprep.mubr.bf16.mxu0 0
        %4968 = vmatmul.mubr.bf16.gmra.mrb[0].mxu0 %v4475
        %v4969 = vpop.f32.mrb[0].mxu0
        %v4970 = vadd.f32 %v4809, %v4969
        %v4971 = vpop.f32.mrb[0].mxu0
        %v4972 = vpop.f32.mrb[0].mxu0
        %v4973 = vadd.f32 %v4812, %v4972
        %v4974 = vpop.f32.mrb[0].mxu0
        %4975 = vmatprep.mubr.bf16.mxu0 0
        %4976 = vmatmul.mubr.bf16.gmra.mrb[0].mxu0 %v4478
        %v4977 = vpop.f32.mrb[0].mxu0
        %v4978 = vadd.f32 %v4817, %v4977
        %v4979 = vpop.f32.mrb[0].mxu0
        %v4980 = vpop.f32.mrb[0].mxu0
        %v4981 = vadd.f32 %v4820, %v4980
        %v4982 = vpop.f32.mrb[0].mxu0
        %4983 = vmatprep.mubr.bf16.mxu0 0
        %4984 = vmatmul.mubr.bf16.gmra.mrb[0].mxu0 %v4481
        %v4985 = vpop.f32.mrb[0].mxu0
        %v4986 = vadd.f32 %v4825, %v4985
        %v4987 = vpop.f32.mrb[0].mxu0
        %v4988 = vpop.f32.mrb[0].mxu0
        %v4989 = vadd.f32 %v4828, %v4988
        %v4990 = vpop.f32.mrb[0].mxu0
        %4991 = vmatprep.mubr.bf16.mxu0 0
        %4992 = vmatmul.mubr.bf16.gmra.mrb[0].mxu0 %v4484
        %v4993 = vpop.f32.mrb[0].mxu0
        %v4994 = vadd.f32 %v4833, %v4993
        %v4995 = vpop.f32.mrb[0].mxu0
        %v4996 = vpop.f32.mrb[0].mxu0
        %v4997 = vadd.f32 %v4836, %v4996
        %v4998 = vpop.f32.mrb[0].mxu0
        %4999 = vdwg.mxu0
        %v5000 = vadd.f32 %v4311, %v4874
        %v5001 = vadd.f32 %v4314, %v4877
        %v5002 = vadd.f32 %v4319, %v4882
        %v5003 = vadd.f32 %v4322, %v4885
        %v5004 = vadd.f32 %v4327, %v4890
        %v5005 = vadd.f32 %v4330, %v4893
        %v5006 = vadd.f32 %v4335, %v4898
        %v5007 = vadd.f32 %v4338, %v4901
        %v5008 = vadd.f32 %v4343, %v4906
        %v5009 = vadd.f32 %v4346, %v4909
        %v5010 = vadd.f32 %v4351, %v4914
        %v5011 = vadd.f32 %v4354, %v4917
        %v5012 = vadd.f32 %v4359, %v4922
        %v5013 = vadd.f32 %v4362, %v4925
        %v5014 = vadd.f32 %v4367, %v4930
        %v5015 = vadd.f32 %v4370, %v4933
        %v5016 = vadd.f32 %v4375, %v4938
        %v5017 = vadd.f32 %v4378, %v4941
        %v5018 = vadd.f32 %v4383, %v4946
        %v5019 = vadd.f32 %v4386, %v4949
        %v5020 = vadd.f32 %v4391, %v4954
        %v5021 = vadd.f32 %v4394, %v4957
        %v5022 = vadd.f32 %v4399, %v4962
        %v5023 = vadd.f32 %v4402, %v4965
        %v5024 = vadd.f32 %v4407, %v4970
        %v5025 = vadd.f32 %v4410, %v4973
        %v5026 = vadd.f32 %v4415, %v4978
        %v5027 = vadd.f32 %v4418, %v4981
        %v5028 = vadd.f32 %v4423, %v4986
        %v5029 = vadd.f32 %v4426, %v4989
        %v5030 = vadd.f32 %v4431, %v4994
        %v5031 = vadd.f32 %v4434, %v4997
        %v5033 = vlaneseq
        %v5034 = vshrl.u32 %v5033, 7
        %v5035 = vsub.s32 0, %v5034
        %v5036 = vrot.slane %v3356, %v5035
        %v5038 = vadd.f32 %v5000, %v5036
        %v5039 = vadd.f32 %v5001, %v5036
        %v5040 = vadd.f32 %v5002, %v5036
        %v5041 = vadd.f32 %v5003, %v5036
        %v5042 = vadd.f32 %v5004, %v5036
        %v5043 = vadd.f32 %v5005, %v5036
        %v5044 = vadd.f32 %v5006, %v5036
        %v5045 = vadd.f32 %v5007, %v5036
        %v5046 = vadd.f32 %v5008, %v5036
        %v5047 = vadd.f32 %v5009, %v5036
        %v5048 = vadd.f32 %v5010, %v5036
        %v5049 = vadd.f32 %v5011, %v5036
        %v5050 = vadd.f32 %v5012, %v5036
        %v5051 = vadd.f32 %v5013, %v5036
        %v5052 = vadd.f32 %v5014, %v5036
        %v5053 = vadd.f32 %v5015, %v5036
        %v5054 = vadd.f32 %v5016, %v5036
        %v5055 = vadd.f32 %v5017, %v5036
        %v5056 = vadd.f32 %v5018, %v5036
        %v5057 = vadd.f32 %v5019, %v5036
        %v5058 = vadd.f32 %v5020, %v5036
        %v5059 = vadd.f32 %v5021, %v5036
        %v5060 = vadd.f32 %v5022, %v5036
        %v5061 = vadd.f32 %v5023, %v5036
        %v5062 = vadd.f32 %v5024, %v5036
        %v5063 = vadd.f32 %v5025, %v5036
        %v5064 = vadd.f32 %v5026, %v5036
        %v5065 = vadd.f32 %v5027, %v5036
        %v5066 = vadd.f32 %v5028, %v5036
        %v5067 = vadd.f32 %v5029, %v5036
        %v5068 = vadd.f32 %v5030, %v5036
        %v5069 = vadd.f32 %v5031, %v5036
        %v5070 = vld [vmem:[#allocation2 + $0x20] sm:$0xff]
        %v5071 = vld [vmem:[#allocation2 + $0x38] sm:$0xff]
        %v5072 = vld [vmem:[#allocation2 + $0x50] sm:$0xff]
        %v5073 = vld [vmem:[#allocation2 + $0x68] sm:$0xff]
        %v5074 = vld [vmem:[#allocation2 + $0x80] sm:$0xff]
        %v5075 = vld [vmem:[#allocation2 + $0x98] sm:$0xff]
        %v5076 = vld [vmem:[#allocation2 + $0xb0] sm:$0xff]
        %v5077 = vld [vmem:[#allocation2 + $0xc8] sm:$0xff]
        %v5078 = vld [vmem:[#allocation2 + $0xe0] sm:$0xff]
        %v5079 = vld [vmem:[#allocation2 + $0xf8] sm:$0xff]
        %v5080 = vld [vmem:[#allocation2 + $0x110] sm:$0xff]
        %v5081 = vld [vmem:[#allocation2 + $0x128] sm:$0xff]
        %v5082 = vld [vmem:[#allocation2 + $0x140] sm:$0xff]
        %v5083 = vld [vmem:[#allocation2 + $0x158] sm:$0xff]
        %v5084 = vld [vmem:[#allocation2 + $0x170] sm:$0xff]
        %v5085 = vld [vmem:[#allocation2 + $0x188] sm:$0xff]
        %v5086 = vld [vmem:[#allocation13] sm:$0xf]
        %v5087 = vld [vmem:[#allocation13 + $0x4] sm:$0xf]
        %v5088 = vld [vmem:[#allocation13 + $0x8] sm:$0xf]
        %v5089 = vld [vmem:[#allocation13 + $0xc] sm:$0xf]
        %v5090 = vld [vmem:[#allocation13 + $0x10] sm:$0xf]
        %v5091 = vld [vmem:[#allocation13 + $0x14] sm:$0xf]
        %v5092 = vld [vmem:[#allocation13 + $0x18] sm:$0xf]
        %v5093 = vld [vmem:[#allocation13 + $0x1c] sm:$0xf]
        %v5094 = vld [vmem:[#allocation13 + $0x20] sm:$0xf]
        %v5095 = vld [vmem:[#allocation13 + $0x24] sm:$0xf]
        %v5096 = vld [vmem:[#allocation13 + $0x28] sm:$0xf]
        %v5097 = vld [vmem:[#allocation13 + $0x2c] sm:$0xf]
        %v5098 = vld [vmem:[#allocation13 + $0x30] sm:$0xf]
        %v5099 = vld [vmem:[#allocation13 + $0x34] sm:$0xf]
        %v5100 = vld [vmem:[#allocation13 + $0x38] sm:$0xf]
        %v5101 = vld [vmem:[#allocation13 + $0x3c] sm:$0xf]
        %v5102 = vld [vmem:[#allocation15] sm:$0x1]
        %v5104 = vlaneseq
        %v5105 = vshrl.u32 %v5104, 7
        %v5106 = vsub.s32 0, %v5105
        %v5107 = vrot.slane %v5102, %v5106
        %v5125 = vunpack.c.l.b16 %v5086
        %v5126 = vunpack.c.l.b16 %v5087
        %v5127 = vunpack.c.l.b16 %v5088
        %v5128 = vunpack.c.l.b16 %v5089
        %v5129 = vunpack.c.l.b16 %v5090
        %v5130 = vunpack.c.l.b16 %v5091
        %v5131 = vunpack.c.l.b16 %v5092
        %v5132 = vunpack.c.l.b16 %v5093
        %v5133 = vunpack.c.l.b16 %v5094
        %v5134 = vunpack.c.l.b16 %v5095
        %v5135 = vunpack.c.l.b16 %v5096
        %v5136 = vunpack.c.l.b16 %v5097
        %v5137 = vunpack.c.l.b16 %v5098
        %v5138 = vunpack.c.l.b16 %v5099
        %v5139 = vunpack.c.l.b16 %v5100
        %v5140 = vunpack.c.l.b16 %v5101
        %v5141 = vpack.c.b16 %v5126, %v5125
        %v5142 = vpack.c.b16 %v5128, %v5127
        %v5143 = vpack.c.b16 %v5130, %v5129
        %v5144 = vpack.c.b16 %v5132, %v5131
        %v5145 = vpack.c.b16 %v5134, %v5133
        %v5146 = vpack.c.b16 %v5136, %v5135
        %v5147 = vpack.c.b16 %v5138, %v5137
        %v5148 = vpack.c.b16 %v5140, %v5139
        %5157 = vmatprep.subr.bf16.mxu0 0
        %5158 = vmatpush1.bf16.msra.mxu0 %v5141
        %5159 = vmatprep.subr.bf16.mxu0 0
        %5160 = vmatpush1.bf16.msra.mxu0 %v5142
        %5161 = vmatprep.subr.bf16.mxu0 0
        %5162 = vmatpush1.bf16.msra.mxu0 %v5143
        %5163 = vmatprep.subr.bf16.mxu0 0
        %5164 = vmatpush1.bf16.msra.mxu0 %v5144
        %5165 = vmatprep.subr.bf16.mxu0 0
        %5166 = vmatpush1.bf16.msra.mxu0 %v5145
        %5167 = vmatprep.subr.bf16.mxu0 0
        %5168 = vmatpush1.bf16.msra.mxu0 %v5146
        %5169 = vmatprep.subr.bf16.mxu0 0
        %5170 = vmatpush1.bf16.msra.mxu0 %v5147
        %5171 = vmatprep.subr.bf16.mxu0 0
        %5172 = vmatpush1.bf16.msra.mxu0 %v5148
        %5173 = vmatprep.subr.bf16.mxu0 0
        %5174 = vmatpush1.bf16.msra.mxu0 0
        %5175 = vmatprep.subr.bf16.mxu0 0
        %5176 = vmatpush1.bf16.msra.mxu0 0
        %5177 = vmatprep.subr.bf16.mxu0 0
        %5178 = vmatpush1.bf16.msra.mxu0 0
        %5179 = vmatprep.subr.bf16.mxu0 0
        %5180 = vmatpush1.bf16.msra.mxu0 0
        %5181 = vmatprep.subr.bf16.mxu0 0
        %5182 = vmatpush1.bf16.msra.mxu0 0
        %5183 = vmatprep.subr.bf16.mxu0 0
        %5184 = vmatpush1.bf16.msra.mxu0 0
        %5185 = vmatprep.subr.bf16.mxu0 0
        %5186 = vmatpush1.bf16.msra.mxu0 0
        %5187 = vmatprep.subr.bf16.mxu0 0
        %5188 = vmatpush1.bf16.msra.mxu0 0
        %5189 = vmatprep.mubr.bf16.mxu0 0
        %5190 = vmatmul.mubr.bf16.gmra.mrb[0].mxu0 %v5070
        %v5191 = vpop.f32.mrb[0].mxu0
        %v5192 = vadd.f32 %v5107, %v5191
        %v5193 = vpop.f32.mrb[0].mxu0
        %v5194 = vpop.f32.mrb[0].mxu0
        %v5195 = vadd.f32 %v5107, %v5194
        %v5196 = vpop.f32.mrb[0].mxu0
        %5197 = vmatprep.mubr.bf16.mxu0 0
        %5198 = vmatmul.mubr.bf16.gmra.mrb[0].mxu0 %v5071
        %v5199 = vpop.f32.mrb[0].mxu0
        %v5200 = vadd.f32 %v5107, %v5199
        %v5201 = vpop.f32.mrb[0].mxu0
        %v5202 = vpop.f32.mrb[0].mxu0
        %v5203 = vadd.f32 %v5107, %v5202
        %v5204 = vpop.f32.mrb[0].mxu0
        %5205 = vmatprep.mubr.bf16.mxu0 0
        %5206 = vmatmul.mubr.bf16.gmra.mrb[0].mxu0 %v5072
        %v5207 = vpop.f32.mrb[0].mxu0
        %v5208 = vadd.f32 %v5107, %v5207
        %v5209 = vpop.f32.mrb[0].mxu0
        %v5210 = vpop.f32.mrb[0].mxu0
        %v5211 = vadd.f32 %v5107, %v5210
        %v5212 = vpop.f32.mrb[0].mxu0
        %5213 = vmatprep.mubr.bf16.mxu0 0
        %5214 = vmatmul.mubr.bf16.gmra.mrb[0].mxu0 %v5073
        %v5215 = vpop.f32.mrb[0].mxu0
        %v5216 = vadd.f32 %v5107, %v5215
        %v5217 = vpop.f32.mrb[0].mxu0
        %v5218 = vpop.f32.mrb[0].mxu0
        %v5219 = vadd.f32 %v5107, %v5218
        %v5220 = vpop.f32.mrb[0].mxu0
        %5221 = vmatprep.mubr.bf16.mxu0 0
        %5222 = vmatmul.mubr.bf16.gmra.mrb[0].mxu0 %v5074
        %v5223 = vpop.f32.mrb[0].mxu0
        %v5224 = vadd.f32 %v5107, %v5223
        %v5225 = vpop.f32.mrb[0].mxu0
        %v5226 = vpop.f32.mrb[0].mxu0
        %v5227 = vadd.f32 %v5107, %v5226
        %v5228 = vpop.f32.mrb[0].mxu0
        %5229 = vmatprep.mubr.bf16.mxu0 0
        %5230 = vmatmul.mubr.bf16.gmra.mrb[0].mxu0 %v5075
        %v5231 = vpop.f32.mrb[0].mxu0
        %v5232 = vadd.f32 %v5107, %v5231
        %v5233 = vpop.f32.mrb[0].mxu0
        %v5234 = vpop.f32.mrb[0].mxu0
        %v5235 = vadd.f32 %v5107, %v5234
        %v5236 = vpop.f32.mrb[0].mxu0
        %5237 = vmatprep.mubr.bf16.mxu0 0
        %5238 = vmatmul.mubr.bf16.gmra.mrb[0].mxu0 %v5076
        %v5239 = vpop.f32.mrb[0].mxu0
        %v5240 = vadd.f32 %v5107, %v5239
        %v5241 = vpop.f32.mrb[0].mxu0
        %v5242 = vpop.f32.mrb[0].mxu0
        %v5243 = vadd.f32 %v5107, %v5242
        %v5244 = vpop.f32.mrb[0].mxu0
        %5245 = vmatprep.mubr.bf16.mxu0 0
        %5246 = vmatmul.mubr.bf16.gmra.mrb[0].mxu0 %v5077
        %v5247 = vpop.f32.mrb[0].mxu0
        %v5248 = vadd.f32 %v5107, %v5247
        %v5249 = vpop.f32.mrb[0].mxu0
        %v5250 = vpop.f32.mrb[0].mxu0
        %v5251 = vadd.f32 %v5107, %v5250
        %v5252 = vpop.f32.mrb[0].mxu0
        %5253 = vmatprep.mubr.bf16.mxu0 0
        %5254 = vmatmul.mubr.bf16.gmra.mrb[0].mxu0 %v5078
        %v5255 = vpop.f32.mrb[0].mxu0
        %v5256 = vadd.f32 %v5107, %v5255
        %v5257 = vpop.f32.mrb[0].mxu0
        %v5258 = vpop.f32.mrb[0].mxu0
        %v5259 = vadd.f32 %v5107, %v5258
        %v5260 = vpop.f32.mrb[0].mxu0
        %5261 = vmatprep.mubr.bf16.mxu0 0
        %5262 = vmatmul.mubr.bf16.gmra.mrb[0].mxu0 %v5079
        %v5263 = vpop.f32.mrb[0].mxu0
        %v5264 = vadd.f32 %v5107, %v5263
        %v5265 = vpop.f32.mrb[0].mxu0
        %v5266 = vpop.f32.mrb[0].mxu0
        %v5267 = vadd.f32 %v5107, %v5266
        %v5268 = vpop.f32.mrb[0].mxu0
        %5269 = vmatprep.mubr.bf16.mxu0 0
        %5270 = vmatmul.mubr.bf16.gmra.mrb[0].mxu0 %v5080
        %v5271 = vpop.f32.mrb[0].mxu0
        %v5272 = vadd.f32 %v5107, %v5271
        %v5273 = vpop.f32.mrb[0].mxu0
        %v5274 = vpop.f32.mrb[0].mxu0
        %v5275 = vadd.f32 %v5107, %v5274
        %v5276 = vpop.f32.mrb[0].mxu0
        %5277 = vmatprep.mubr.bf16.mxu0 0
        %5278 = vmatmul.mubr.bf16.gmra.mrb[0].mxu0 %v5081
        %v5279 = vpop.f32.mrb[0].mxu0
        %v5280 = vadd.f32 %v5107, %v5279
        %v5281 = vpop.f32.mrb[0].mxu0
        %v5282 = vpop.f32.mrb[0].mxu0
        %v5283 = vadd.f32 %v5107, %v5282
        %v5284 = vpop.f32.mrb[0].mxu0
        %5285 = vmatprep.mubr.bf16.mxu0 0
        %5286 = vmatmul.mubr.bf16.gmra.mrb[0].mxu0 %v5082
        %v5287 = vpop.f32.mrb[0].mxu0
        %v5288 = vadd.f32 %v5107, %v5287
        %v5289 = vpop.f32.mrb[0].mxu0
        %v5290 = vpop.f32.mrb[0].mxu0
        %v5291 = vadd.f32 %v5107, %v5290
        %v5292 = vpop.f32.mrb[0].mxu0
        %5293 = vmatprep.mubr.bf16.mxu0 0
        %5294 = vmatmul.mubr.bf16.gmra.mrb[0].mxu0 %v5083
        %v5295 = vpop.f32.mrb[0].mxu0
        %v5296 = vadd.f32 %v5107, %v5295
        %v5297 = vpop.f32.mrb[0].mxu0
        %v5298 = vpop.f32.mrb[0].mxu0
        %v5299 = vadd.f32 %v5107, %v5298
        %v5300 = vpop.f32.mrb[0].mxu0
        %5301 = vmatprep.mubr.bf16.mxu0 0
        %5302 = vmatmul.mubr.bf16.gmra.mrb[0].mxu0 %v5084
        %v5303 = vpop.f32.mrb[0].mxu0
        %v5304 = vadd.f32 %v5107, %v5303
        %v5305 = vpop.f32.mrb[0].mxu0
        %v5306 = vpop.f32.mrb[0].mxu0
        %v5307 = vadd.f32 %v5107, %v5306
        %v5308 = vpop.f32.mrb[0].mxu0
        %5309 = vmatprep.mubr.bf16.mxu0 0
        %5310 = vmatmul.mubr.bf16.gmra.mrb[0].mxu0 %v5085
        %v5311 = vpop.f32.mrb[0].mxu0
        %v5312 = vadd.f32 %v5107, %v5311
        %v5313 = vpop.f32.mrb[0].mxu0
        %v5314 = vpop.f32.mrb[0].mxu0
        %v5315 = vadd.f32 %v5107, %v5314
        %v5316 = vpop.f32.mrb[0].mxu0
        %5317 = vdwg.mxu0
        %v5318 = vadd.f32 %v5038, %v5192
        %v5319 = vadd.f32 %v5039, %v5195
        %v5320 = vadd.f32 %v5040, %v5200
        %v5321 = vadd.f32 %v5041, %v5203
        %v5322 = vadd.f32 %v5042, %v5208
        %v5323 = vadd.f32 %v5043, %v5211
        %v5324 = vadd.f32 %v5044, %v5216
        %v5325 = vadd.f32 %v5045, %v5219
        %v5326 = vadd.f32 %v5046, %v5224
        %v5327 = vadd.f32 %v5047, %v5227
        %v5328 = vadd.f32 %v5048, %v5232
        %v5329 = vadd.f32 %v5049, %v5235
        %v5330 = vadd.f32 %v5050, %v5240
        %v5331 = vadd.f32 %v5051, %v5243
        %v5332 = vadd.f32 %v5052, %v5248
        %v5333 = vadd.f32 %v5053, %v5251
        %v5334 = vadd.f32 %v5054, %v5256
        %v5335 = vadd.f32 %v5055, %v5259
        %v5336 = vadd.f32 %v5056, %v5264
        %v5337 = vadd.f32 %v5057, %v5267
        %v5338 = vadd.f32 %v5058, %v5272
        %v5339 = vadd.f32 %v5059, %v5275
        %v5340 = vadd.f32 %v5060, %v5280
        %v5341 = vadd.f32 %v5061, %v5283
        %v5342 = vadd.f32 %v5062, %v5288
        %v5343 = vadd.f32 %v5063, %v5291
        %v5344 = vadd.f32 %v5064, %v5296
        %v5345 = vadd.f32 %v5065, %v5299
        %v5346 = vadd.f32 %v5066, %v5304
        %v5347 = vadd.f32 %v5067, %v5307
        %v5348 = vadd.f32 %v5068, %v5312
        %v5349 = vadd.f32 %v5069, %v5315
        %v5350 = vmax.f32 %v5318, 0.0
        %v5351 = vmax.f32 %v5319, 0.0
        %v5352 = vmax.f32 %v5320, 0.0
        %v5353 = vmax.f32 %v5321, 0.0
        %v5354 = vmax.f32 %v5322, 0.0
        %v5355 = vmax.f32 %v5323, 0.0
        %v5356 = vmax.f32 %v5324, 0.0
        %v5357 = vmax.f32 %v5325, 0.0
        %v5358 = vmax.f32 %v5326, 0.0
        %v5359 = vmax.f32 %v5327, 0.0
        %v5360 = vmax.f32 %v5328, 0.0
        %v5361 = vmax.f32 %v5329, 0.0
        %v5362 = vmax.f32 %v5330, 0.0
        %v5363 = vmax.f32 %v5331, 0.0
        %v5364 = vmax.f32 %v5332, 0.0
        %v5365 = vmax.f32 %v5333, 0.0
        %v5366 = vmax.f32 %v5334, 0.0
        %v5367 = vmax.f32 %v5335, 0.0
        %v5368 = vmax.f32 %v5336, 0.0
        %v5369 = vmax.f32 %v5337, 0.0
        %v5370 = vmax.f32 %v5338, 0.0
        %v5371 = vmax.f32 %v5339, 0.0
        %v5372 = vmax.f32 %v5340, 0.0
        %v5373 = vmax.f32 %v5341, 0.0
        %v5374 = vmax.f32 %v5342, 0.0
        %v5375 = vmax.f32 %v5343, 0.0
        %v5376 = vmax.f32 %v5344, 0.0
        %v5377 = vmax.f32 %v5345, 0.0
        %v5378 = vmax.f32 %v5346, 0.0
        %v5379 = vmax.f32 %v5347, 0.0
        %v5380 = vmax.f32 %v5348, 0.0
        %v5381 = vmax.f32 %v5349, 0.0
        %5382 = vst [vmem:[%s377] sm:$0xff] %v5350
        %5383 = vst [vmem:[%s377 + $0x8] sm:$0xff] %v5351
        %5384 = vst [vmem:[%s377 + $0x10] sm:$0xff] %v5352
        %5385 = vst [vmem:[%s377 + $0x18] sm:$0xff] %v5353
        %5386 = vst [vmem:[%s377 + $0x20] sm:$0xff] %v5354
        %5387 = vst [vmem:[%s377 + $0x28] sm:$0xff] %v5355
        %5388 = vst [vmem:[%s377 + $0x30] sm:$0xff] %v5356
        %5389 = vst [vmem:[%s377 + $0x38] sm:$0xff] %v5357
        %5390 = vst [vmem:[%s377 + $0x40] sm:$0xff] %v5358
        %5391 = vst [vmem:[%s377 + $0x48] sm:$0xff] %v5359
        %5392 = vst [vmem:[%s377 + $0x50] sm:$0xff] %v5360
        %5393 = vst [vmem:[%s377 + $0x58] sm:$0xff] %v5361
        %5394 = vst [vmem:[%s377 + $0x60] sm:$0xff] %v5362
        %5395 = vst [vmem:[%s377 + $0x68] sm:$0xff] %v5363
        %5396 = vst [vmem:[%s377 + $0x70] sm:$0xff] %v5364
        %5397 = vst [vmem:[%s377 + $0x78] sm:$0xff] %v5365
        %5398 = vst [vmem:[%s377 + $0x80] sm:$0xff] %v5366
        %5399 = vst [vmem:[%s377 + $0x88] sm:$0xff] %v5367
        %5400 = vst [vmem:[%s377 + $0x90] sm:$0xff] %v5368
        %5401 = vst [vmem:[%s377 + $0x98] sm:$0xff] %v5369
        %5402 = vst [vmem:[%s377 + $0xa0] sm:$0xff] %v5370
        %5403 = vst [vmem:[%s377 + $0xa8] sm:$0xff] %v5371
        %5404 = vst [vmem:[%s377 + $0xb0] sm:$0xff] %v5372
        %5405 = vst [vmem:[%s377 + $0xb8] sm:$0xff] %v5373
        %5406 = vst [vmem:[%s377 + $0xc0] sm:$0xff] %v5374
        %5407 = vst [vmem:[%s377 + $0xc8] sm:$0xff] %v5375
        %5408 = vst [vmem:[%s377 + $0xd0] sm:$0xff] %v5376
        %5409 = vst [vmem:[%s377 + $0xd8] sm:$0xff] %v5377
        %5410 = vst [vmem:[%s377 + $0xe0] sm:$0xff] %v5378
        %5411 = vst [vmem:[%s377 + $0xe8] sm:$0xff] %v5379
        %5412 = vst [vmem:[%s377 + $0xf0] sm:$0xff] %v5380
        %5413 = vst [vmem:[%s377 + $0xf8] sm:$0xff] %v5381
        %s5414 = sand.u32 %s187, 1
        %s5415 = scalar_lea.sflag [#allocation6], %s5414
        %s5416 = sand.u32 %s187, 1
        %s5417 = smul.addr %s5416, 256
        %s5418 = scalar_lea.vmem [#allocation16], %s5417
        // Predicated region
        $region77: #{tpu_custom_call.1} parent=47 // pred_check
          %p5419 = pneg %p197
        $region78: #{tpu_custom_call.1} parent=47 // pred_check_branch
          %5421 = sbr.rel (%p5419) target = $region80
        $region79: #{tpu_custom_call.1} parent=47 // pred_region
          %s5423 = ssub.s32 4096, 4096
          %5424 = vsyncadd %s5415, %s5423
          %s5425 = smul.addr %s27, 32
          %s5426 = smul.addr %s5425, 128
          %s5427 = scalar_lea.hbm %s7, %s5426
          %s5428 = sshll.u32 %s5418, 4
          %s5429 = int_to_ptr.vmem [resolvable:$true] %s5428
          %5434 = dma.vmem_to_hbm [thread:$0]  %s5429, 4096, %s5427, %s5415, 128, 128, 8
        $region80: #{tpu_custom_call.1} parent=47 // pred_fallthru
          _
      $region48: #{tpu_custom_call.1} parent=5 // pred_fallthru
        _
      %p5435 = scmp.le.s32.totalorder 2, %s22
      // Predicated region
      $region81: #{tpu_custom_call.1} parent=5 // pred_check
        %p5436 = pneg %p5435
      $region82: #{tpu_custom_call.1} parent=5 // pred_check_branch
        %5438 = sbr.rel (%p5436) target = $region84
      $region83: #{tpu_custom_call.1} parent=5 // pred_region
        %s5439 = ssub.s32 %s22, 2
        // Predicated region
        $region85: #{tpu_custom_call.1} parent=83 // pred_check
          %p5440 = pneg %p203
        $region86: #{tpu_custom_call.1} parent=83 // pred_check_branch
          %5442 = sbr.rel (%p5440) target = $region88
        $region87: #{tpu_custom_call.1} parent=83 // pred_region
          %s5443 = sand.u32 %s188, 1
          %s5444 = scalar_lea.sflag [#allocation6], %s5443
          %s5445 = sand.u32 %s188, 1
          %s5446 = smul.addr %s5445, 256
          %s5447 = scalar_lea.vmem [#allocation16], %s5446
          %5448 = dma.done %s5444, 4096
        $region88: #{tpu_custom_call.1} parent=83 // pred_fallthru
          _
      $region84: #{tpu_custom_call.1} parent=5 // pred_fallthru
        _
    $region6: #{tpu_custom_call.1} parent=1 // loop_footer
      %s26 = sadd.s32 1, %s22
    $region7: #{tpu_custom_call.1} parent=1 // loop_footer_branch
      %21 = sbr.rel target = $region3
    $region8: #{tpu_custom_call.1} parent=1 // loop_exit
      _
    %5449 = vsyncpa [#allocation5], 1
    %s5450 = scalar_lea.sflag [#allocation5], 1
    %5451 = vsyncpa %s5450, 1
    %5452 = vsyncpa [#allocation8], 1
    %5453 = vsyncpa [#allocation11], 1
    %5454 = vsyncpa [#allocation14], 1
    %5455 = vsyncpa [#allocation6], 1
    %s5456 = scalar_lea.sflag [#allocation6], 1
    %5457 = vsyncpa %s5456, 1

</llo_original>
